<compile_context>
chip_gen: v6e
topology: v6e:2x2x1
jax: 0.10.0
libtpu: 0.0.40
codegen_flags: <defaults>
</compile_context>

<pallas_src>
import numpy as np
import jax
import jax.numpy as jnp
from jax.experimental import pallas as pl
from jax.experimental.pallas import tpu as pltpu


def _round_up(x, m):
    return (x + m - 1) // m * m


def _conv_out(size, k, stride):
    return (size - k) // stride + 1


def _gather_mats(oh_in, ow_in, kh, kw, stride, rows_in_pad, rows_out_pad):
    """One-hot gather matrices G of shape (kh*kw, rows_out_pad, rows_in_pad).

    G[i*kw+j, p, r] = 1 iff input row r (row-major spatial index of the
    previous layer's output) feeds output position p for kernel offset (i, j).
    Padded rows/cols stay 0, so relu(bias) garbage living in padded activation
    rows is never selected by the next layer.
    """
    oh_out = _conv_out(oh_in, kh, stride)
    ow_out = _conv_out(ow_in, kw, stride)
    g = np.zeros((kh * kw, rows_out_pad, rows_in_pad), np.float32)
    for i in range(kh):
        for j in range(kw):
            for oh in range(oh_out):
                for ow in range(ow_out):
                    r = (oh * stride + i) * ow_in + (ow * stride + j)
                    g[i * kw + j, oh * ow_out + ow, r] = 1.0
    return jnp.asarray(g, jnp.bfloat16)


# ----------------------------------------------------------------------------
# Fused kernel: the whole convnet for one image per grid step.
# ----------------------------------------------------------------------------
def _atari_convnet_kernel(p1_ref, w1_ref, b1_ref,
                          g2_ref, w2_ref, b2_ref,
                          g3_ref, w3_ref, b3_ref, out_ref):
    f32, bf16 = jnp.float32, jnp.bfloat16

    # Layer 1: pre-gathered patches (P1p, K1p) @ (K1p, C1) + b, ReLU.
    a1 = jnp.dot(p1_ref[...], w1_ref[...], preferred_element_type=f32)
    a1 = jnp.maximum(a1 + b1_ref[...], 0.0).astype(bf16)

    # Layer 2: conv = sum over kernel offsets of (G2_ij @ a1) @ W2_ij.
    # The one-hot G matmul is an exact row gather (burns idle MXU cycles
    # instead of strided-slice/reshape relayouts); accumulation stays in f32.
    acc2 = None
    for ij in range(g2_ref.shape[0]):
        sel = jnp.dot(g2_ref[ij], a1, preferred_element_type=f32).astype(bf16)
        part = jnp.dot(sel, w2_ref[ij], preferred_element_type=f32)
        acc2 = part if acc2 is None else acc2 + part
    a2 = jnp.maximum(acc2 + b2_ref[...], 0.0).astype(bf16)

    # Layer 3: same scheme.
    acc3 = None
    for ij in range(g3_ref.shape[0]):
        sel = jnp.dot(g3_ref[ij], a2, preferred_element_type=f32).astype(bf16)
        part = jnp.dot(sel, w3_ref[ij], preferred_element_type=f32)
        acc3 = part if acc3 is None else acc3 + part
    out_ref[...] = jnp.maximum(acc3 + b3_ref[...], 0.0).astype(out_ref.dtype)


# ----------------------------------------------------------------------------
# Wrapper: layer-1 im2col (single conv HLO on the raw input) + fused kernel.
# ----------------------------------------------------------------------------
def atari_net_forward(x_nchw, params):
    """AtariNet convnet forward.  x_nchw: (N, C, H, W) f32 -> (N, C3*OH3*OW3)."""
    (w1, b1, s1), (w2, b2, s2), (w3, b3, s3) = params
    n, cin, h, w = x_nchw.shape
    c1, _, kh1, kw1 = w1.shape
    c2, _, kh2, kw2 = w2.shape
    c3, _, kh3, kw3 = w3.shape

    oh1, ow1 = _conv_out(h, kh1, s1), _conv_out(w, kw1, s1)
    oh2, ow2 = _conv_out(oh1, kh2, s2), _conv_out(ow1, kw2, s2)
    oh3, ow3 = _conv_out(oh2, kh3, s3), _conv_out(ow2, kw3, s3)
    p1, p2, p3 = oh1 * ow1, oh2 * ow2, oh3 * ow3
    p1p, p2p, p3p = _round_up(p1, 8), _round_up(p2, 8), _round_up(p3, 8)
    k1 = cin * kh1 * kw1
    k1p = _round_up(k1, 128)            # lane-aligned layer-1 contraction dim

    # Spatial gather matrices for layers 2/3 (compile-time constants).
    g2 = _gather_mats(oh1, ow1, kh2, kw2, s2, p1p, p2p)
    g3 = _gather_mats(oh2, ow2, kh3, kw3, s3, p2p, p3p)

    # Weights.  The layer-1 matrix matches conv_general_dilated_patches'
    # channel-major (c, kh, kw) patch ordering; layers 2/3 keep per-offset
    # (cin, cout) matrices so no flatten ordering is involved at all.
    w1m = jnp.transpose(w1, (1, 2, 3, 0)).reshape(k1, c1)
    w1m = jnp.pad(w1m, ((0, k1p - k1), (0, 0))).astype(jnp.bfloat16)
    w2s = jnp.transpose(w2, (2, 3, 1, 0)).reshape(kh2 * kw2, c1, c2).astype(jnp.bfloat16)
    w3s = jnp.transpose(w3, (2, 3, 1, 0)).reshape(kh3 * kw3, c2, c3).astype(jnp.bfloat16)
    b1m = b1.reshape(1, c1).astype(jnp.float32)
    b2m = b2.reshape(1, c2).astype(jnp.float32)
    b3m = b3.reshape(1, c3).astype(jnp.float32)

    # Layer-1 im2col on the tiny raw input: one identity-kernel conv HLO.
    # Output feature ordering is channel-major (c, kh, kw), matching w1m.
    patches = jax.lax.conv_general_dilated_patches(
        x_nchw, filter_shape=(kh1, kw1), window_strides=(s1, s1),
        padding="VALID", precision=jax.lax.Precision.HIGHEST)
    patches = jnp.transpose(patches, (0, 2, 3, 1)).reshape(n, p1, k1)
    patches = jnp.pad(patches, ((0, 0), (0, p1p - p1), (0, k1p - k1)))
    patches = patches.astype(jnp.bfloat16)

    # VMEM budget: double-buffered operands + intermediates with headroom,
    # capped below v7x's 64 MiB physical VMEM (v5e/v6e have 128 MiB).
    resident_bytes = sum(int(a.size) * a.dtype.itemsize
                         for a in (w1m, b1m, g2, w2s, b2m, g3, w3s, b3m))
    block_bytes = p1p * k1p * 2 + p3p * c3 * 4
    interm_bytes = 8 * (p1p * c1 + p2p * c2 + p3p * c3 + p2p * p1p) * 4
    vmem_limit = int(min(48 * 2 ** 20,
                         max(16 * 2 ** 20,
                             2 * (resident_bytes + block_bytes) + interm_bytes)))
    flops = 2 * n * (p1p * k1p * c1
                     + kh2 * kw2 * (p2p * p1p * c1 + p2p * c1 * c2)
                     + kh3 * kw3 * (p3p * p2p * c2 + p3p * c2 * c3))
    bytes_accessed = int(patches.size) * 2 + resident_bytes + n * p3p * c3 * 4

    out = pl.pallas_call(
        _atari_convnet_kernel,
        out_shape=jax.ShapeDtypeStruct((n, p3p, c3), jnp.float32),
        grid=(n,),
        in_specs=[
            pl.BlockSpec((None, p1p, k1p), lambda b: (b, 0, 0)),      # per-image patches (pipelined)
            pl.BlockSpec((k1p, c1), lambda b: (0, 0)),                # resident weights / biases / G
            pl.BlockSpec((1, c1), lambda b: (0, 0)),
            pl.BlockSpec((kh2 * kw2, p2p, p1p), lambda b: (0, 0, 0)),
            pl.BlockSpec((kh2 * kw2, c1, c2), lambda b: (0, 0, 0)),
            pl.BlockSpec((1, c2), lambda b: (0, 0)),
            pl.BlockSpec((kh3 * kw3, p3p, p2p), lambda b: (0, 0, 0)),
            pl.BlockSpec((kh3 * kw3, c2, c3), lambda b: (0, 0, 0)),
            pl.BlockSpec((1, c3), lambda b: (0, 0)),
        ],
        out_specs=pl.BlockSpec((None, p3p, c3), lambda b: (b, 0, 0)),
        compiler_params=pltpu.CompilerParams(
            dimension_semantics=("parallel",),      # batch over TCs (v7x megacore)
            vmem_limit_bytes=vmem_limit),
        cost_estimate=pl.CostEstimate(
            flops=flops, transcendentals=0, bytes_accessed=int(bytes_accessed)),
    )(patches, w1m, b1m, g2, w2s, b2m, g3, w3s, b3m)

    # nn.Flatten() on the NCHW conv output -> (N, C3*OH3*OW3) in (c, h, w) order.
    out = out[:, :p3, :]                            # drop padded spatial rows
    return jnp.transpose(out, (0, 2, 1)).reshape(n, c3 * p3)


# ----------------------------------------------------------------------------
# Parameter init (deterministic; mimics PyTorch Conv2d default uniform bound)
# ----------------------------------------------------------------------------
def init_params(key, channels):
    layer_defs = [
        (channels, 32, 8, 4),   # (cin, cout, kernel, stride)
        (32, 64, 4, 2),
        (64, 64, 3, 1),
    ]
    params = []
    for (cin, cout, k, stride) in layer_defs:
        key, kw_, kb_ = jax.random.split(key, 3)
        fan_in = cin * k * k
        bound = 1.0 / jnp.sqrt(float(fan_in))
        w = jax.random.uniform(kw_, (cout, cin, k, k), jnp.float32, -bound, bound)
        b = jax.random.uniform(kb_, (cout,), jnp.float32, -bound, bound)
        params.append((w, b, stride))
    return params


# ----------------------------------------------------------------------------
# Pure-JAX f32 reference (correctness check for the Pallas path)
# ----------------------------------------------------------------------------
def reference_forward(x_nchw, params):
    h = x_nchw
    for w, b, stride in params:
        h = jax.lax.conv_general_dilated(
            h, w, window_strides=(stride, stride), padding="VALID",
            dimension_numbers=("NCHW", "OIHW", "NCHW"))
        h = jnp.maximum(h + b[None, :, None, None], 0.0)
    return h.reshape(h.shape[0], -1)


if __name__ == "__main__":
    key = jax.random.PRNGKey(0)
    k_x, k_p = jax.random.split(key)

    # Small-but-valid Atari-style input: batch=2, channels=4, spatial=36
    # (36 -> conv8/4 -> 8 -> conv4/2 -> 3 -> conv3/1 -> 1; output (2, 64)).
    N, C, H, W = 2, 4, 36, 36
    x = jax.random.normal(k_x, (N, C, H, W), jnp.float32)
    params = init_params(k_p, C)

    fwd = jax.jit(lambda xx: atari_net_forward(xx, params))
    out = jax.block_until_ready(fwd(x))

    ref = jax.block_until_ready(reference_forward(x, params))
    assert out.shape == ref.shape == (N, 64), (out.shape, ref.shape)
    # bf16 MXU operands / bf16 inter-layer activations vs. f32 reference
    # (fine for inference/RL; too loose for training gradients).
    assert jnp.allclose(out, ref, rtol=5e-2, atol=5e-2), "Pallas output mismatch"

    print("KERNEL_OK")
</pallas_src>

<mosaic_0001>
module attributes {stable_mosaic.version = 11 : i64} {
  func.func @_atari_convnet_kernel(%arg0: i32, %arg1: memref<1x64x256xbf16, #tpu.memory_space<vmem>>, %arg2: memref<256x32xbf16, #tpu.memory_space<vmem>>, %arg3: memref<1x32xf32, #tpu.memory_space<vmem>>, %arg4: memref<16x16x64xbf16, #tpu.memory_space<vmem>>, %arg5: memref<16x32x64xbf16, #tpu.memory_space<vmem>>, %arg6: memref<1x64xf32, #tpu.memory_space<vmem>>, %arg7: memref<9x8x16xbf16, #tpu.memory_space<vmem>>, %arg8: memref<9x64x64xbf16, #tpu.memory_space<vmem>>, %arg9: memref<1x64xf32, #tpu.memory_space<vmem>>, %arg10: memref<1x8x64xf32, #tpu.memory_space<vmem>>) attributes {dimension_semantics = [#tpu.dimension_semantics<parallel>], iteration_bounds = array<i64: 2>, scalar_prefetch = 0 : i64, scratch_operands = 0 : i64, tpu.core_type = #tpu.core_type<tc>, window_params = [{transform_indices = @transform_0, window_bounds = array<i64: 1, 64, 256>}, {pipeline_mode = #tpu.pipeline_mode<synchronous>, transform_indices = @transform_1, window_bounds = array<i64: 256, 32>}, {pipeline_mode = #tpu.pipeline_mode<synchronous>, transform_indices = @transform_2, window_bounds = array<i64: 1, 32>}, {pipeline_mode = #tpu.pipeline_mode<synchronous>, transform_indices = @transform_3, window_bounds = array<i64: 16, 16, 64>}, {pipeline_mode = #tpu.pipeline_mode<synchronous>, transform_indices = @transform_4, window_bounds = array<i64: 16, 32, 64>}, {pipeline_mode = #tpu.pipeline_mode<synchronous>, transform_indices = @transform_5, window_bounds = array<i64: 1, 64>}, {pipeline_mode = #tpu.pipeline_mode<synchronous>, transform_indices = @transform_6, window_bounds = array<i64: 9, 8, 16>}, {pipeline_mode = #tpu.pipeline_mode<synchronous>, transform_indices = @transform_7, window_bounds = array<i64: 9, 64, 64>}, {pipeline_mode = #tpu.pipeline_mode<synchronous>, transform_indices = @transform_8, window_bounds = array<i64: 1, 64>}, {transform_indices = @transform_9, window_bounds = array<i64: 1, 8, 64>}]} {
    %c0 = arith.constant 0 : index
    %c0_0 = arith.constant 0 : index
    %c0_1 = arith.constant 0 : index
    %0 = vector.load %arg1[%c0, %c0_0, %c0_1] : memref<1x64x256xbf16, #tpu.memory_space<vmem>>, vector<1x64x256xbf16>
    %1 = vector.shape_cast %0 : vector<1x64x256xbf16> to vector<64x256xbf16>
    %c0_2 = arith.constant 0 : index
    %c0_3 = arith.constant 0 : index
    %2 = vector.load %arg2[%c0_2, %c0_3] : memref<256x32xbf16, #tpu.memory_space<vmem>>, vector<256x32xbf16>
    %cst = arith.constant dense<0.000000e+00> : vector<64x32xf32>
    %3 = tpu.matmul %1, %2, %cst {dimension_numbers = #tpu.dot_dimension_numbers<[1], [0], [0], [1], [0, 0, 1, 1], [], []>} : vector<64x256xbf16>, vector<256x32xbf16>, vector<64x32xf32> -> vector<64x32xf32>
    %c0_4 = arith.constant 0 : index
    %c0_5 = arith.constant 0 : index
    %4 = vector.load %arg3[%c0_4, %c0_5] : memref<1x32xf32, #tpu.memory_space<vmem>>, vector<1x32xf32>
    %5 = vector.broadcast %4 : vector<1x32xf32> to vector<64x32xf32>
    %6 = arith.addf %3, %5 : vector<64x32xf32>
    %cst_6 = arith.constant 0.000000e+00 : f32
    %7 = vector.broadcast %cst_6 : f32 to vector<64x32xf32>
    %8 = arith.maximumf %6, %7 : vector<64x32xf32>
    %9 = arith.truncf %8 : vector<64x32xf32> to vector<64x32xbf16>
    %c0_7 = arith.constant 0 : index
    %c0_8 = arith.constant 0 : index
    %c0_9 = arith.constant 0 : index
    %10 = vector.load %arg4[%c0_7, %c0_8, %c0_9] : memref<16x16x64xbf16, #tpu.memory_space<vmem>>, vector<1x16x64xbf16>
    %11 = vector.shape_cast %10 : vector<1x16x64xbf16> to vector<16x64xbf16>
    %cst_10 = arith.constant dense<0.000000e+00> : vector<16x32xf32>
    %12 = tpu.matmul %11, %9, %cst_10 {dimension_numbers = #tpu.dot_dimension_numbers<[1], [0], [0], [1], [0, 0, 1, 1], [], []>} : vector<16x64xbf16>, vector<64x32xbf16>, vector<16x32xf32> -> vector<16x32xf32>
    %13 = arith.truncf %12 : vector<16x32xf32> to vector<16x32xbf16>
    %c0_11 = arith.constant 0 : index
    %c0_12 = arith.constant 0 : index
    %c0_13 = arith.constant 0 : index
    %14 = vector.load %arg5[%c0_11, %c0_12, %c0_13] : memref<16x32x64xbf16, #tpu.memory_space<vmem>>, vector<1x32x64xbf16>
    %15 = vector.shape_cast %14 : vector<1x32x64xbf16> to vector<32x64xbf16>
    %cst_14 = arith.constant dense<0.000000e+00> : vector<16x64xf32>
    %16 = tpu.matmul %13, %15, %cst_14 {dimension_numbers = #tpu.dot_dimension_numbers<[1], [0], [0], [1], [0, 0, 1, 1], [], []>} : vector<16x32xbf16>, vector<32x64xbf16>, vector<16x64xf32> -> vector<16x64xf32>
    %c1 = arith.constant 1 : index
    %c0_15 = arith.constant 0 : index
    %c0_16 = arith.constant 0 : index
    %17 = vector.load %arg4[%c1, %c0_15, %c0_16] : memref<16x16x64xbf16, #tpu.memory_space<vmem>>, vector<1x16x64xbf16>
    %18 = vector.shape_cast %17 : vector<1x16x64xbf16> to vector<16x64xbf16>
    %cst_17 = arith.constant dense<0.000000e+00> : vector<16x32xf32>
    %19 = tpu.matmul %18, %9, %cst_17 {dimension_numbers = #tpu.dot_dimension_numbers<[1], [0], [0], [1], [0, 0, 1, 1], [], []>} : vector<16x64xbf16>, vector<64x32xbf16>, vector<16x32xf32> -> vector<16x32xf32>
    %20 = arith.truncf %19 : vector<16x32xf32> to vector<16x32xbf16>
    %c1_18 = arith.constant 1 : index
    %c0_19 = arith.constant 0 : index
    %c0_20 = arith.constant 0 : index
    %21 = vector.load %arg5[%c1_18, %c0_19, %c0_20] : memref<16x32x64xbf16, #tpu.memory_space<vmem>>, vector<1x32x64xbf16>
    %22 = vector.shape_cast %21 : vector<1x32x64xbf16> to vector<32x64xbf16>
    %cst_21 = arith.constant dense<0.000000e+00> : vector<16x64xf32>
    %23 = tpu.matmul %20, %22, %cst_21 {dimension_numbers = #tpu.dot_dimension_numbers<[1], [0], [0], [1], [0, 0, 1, 1], [], []>} : vector<16x32xbf16>, vector<32x64xbf16>, vector<16x64xf32> -> vector<16x64xf32>
    %24 = arith.addf %16, %23 : vector<16x64xf32>
    %c2 = arith.constant 2 : index
    %c0_22 = arith.constant 0 : index
    %c0_23 = arith.constant 0 : index
    %25 = vector.load %arg4[%c2, %c0_22, %c0_23] : memref<16x16x64xbf16, #tpu.memory_space<vmem>>, vector<1x16x64xbf16>
    %26 = vector.shape_cast %25 : vector<1x16x64xbf16> to vector<16x64xbf16>
    %cst_24 = arith.constant dense<0.000000e+00> : vector<16x32xf32>
    %27 = tpu.matmul %26, %9, %cst_24 {dimension_numbers = #tpu.dot_dimension_numbers<[1], [0], [0], [1], [0, 0, 1, 1], [], []>} : vector<16x64xbf16>, vector<64x32xbf16>, vector<16x32xf32> -> vector<16x32xf32>
    %28 = arith.truncf %27 : vector<16x32xf32> to vector<16x32xbf16>
    %c2_25 = arith.constant 2 : index
    %c0_26 = arith.constant 0 : index
    %c0_27 = arith.constant 0 : index
    %29 = vector.load %arg5[%c2_25, %c0_26, %c0_27] : memref<16x32x64xbf16, #tpu.memory_space<vmem>>, vector<1x32x64xbf16>
    %30 = vector.shape_cast %29 : vector<1x32x64xbf16> to vector<32x64xbf16>
    %cst_28 = arith.constant dense<0.000000e+00> : vector<16x64xf32>
    %31 = tpu.matmul %28, %30, %cst_28 {dimension_numbers = #tpu.dot_dimension_numbers<[1], [0], [0], [1], [0, 0, 1, 1], [], []>} : vector<16x32xbf16>, vector<32x64xbf16>, vector<16x64xf32> -> vector<16x64xf32>
    %32 = arith.addf %24, %31 : vector<16x64xf32>
    %c3 = arith.constant 3 : index
    %c0_29 = arith.constant 0 : index
    %c0_30 = arith.constant 0 : index
    %33 = vector.load %arg4[%c3, %c0_29, %c0_30] : memref<16x16x64xbf16, #tpu.memory_space<vmem>>, vector<1x16x64xbf16>
    %34 = vector.shape_cast %33 : vector<1x16x64xbf16> to vector<16x64xbf16>
    %cst_31 = arith.constant dense<0.000000e+00> : vector<16x32xf32>
    %35 = tpu.matmul %34, %9, %cst_31 {dimension_numbers = #tpu.dot_dimension_numbers<[1], [0], [0], [1], [0, 0, 1, 1], [], []>} : vector<16x64xbf16>, vector<64x32xbf16>, vector<16x32xf32> -> vector<16x32xf32>
    %36 = arith.truncf %35 : vector<16x32xf32> to vector<16x32xbf16>
    %c3_32 = arith.constant 3 : index
    %c0_33 = arith.constant 0 : index
    %c0_34 = arith.constant 0 : index
    %37 = vector.load %arg5[%c3_32, %c0_33, %c0_34] : memref<16x32x64xbf16, #tpu.memory_space<vmem>>, vector<1x32x64xbf16>
    %38 = vector.shape_cast %37 : vector<1x32x64xbf16> to vector<32x64xbf16>
    %cst_35 = arith.constant dense<0.000000e+00> : vector<16x64xf32>
    %39 = tpu.matmul %36, %38, %cst_35 {dimension_numbers = #tpu.dot_dimension_numbers<[1], [0], [0], [1], [0, 0, 1, 1], [], []>} : vector<16x32xbf16>, vector<32x64xbf16>, vector<16x64xf32> -> vector<16x64xf32>
    %40 = arith.addf %32, %39 : vector<16x64xf32>
    %c4 = arith.constant 4 : index
    %c0_36 = arith.constant 0 : index
    %c0_37 = arith.constant 0 : index
    %41 = vector.load %arg4[%c4, %c0_36, %c0_37] : memref<16x16x64xbf16, #tpu.memory_space<vmem>>, vector<1x16x64xbf16>
    %42 = vector.shape_cast %41 : vector<1x16x64xbf16> to vector<16x64xbf16>
    %cst_38 = arith.constant dense<0.000000e+00> : vector<16x32xf32>
    %43 = tpu.matmul %42, %9, %cst_38 {dimension_numbers = #tpu.dot_dimension_numbers<[1], [0], [0], [1], [0, 0, 1, 1], [], []>} : vector<16x64xbf16>, vector<64x32xbf16>, vector<16x32xf32> -> vector<16x32xf32>
    %44 = arith.truncf %43 : vector<16x32xf32> to vector<16x32xbf16>
    %c4_39 = arith.constant 4 : index
    %c0_40 = arith.constant 0 : index
    %c0_41 = arith.constant 0 : index
    %45 = vector.load %arg5[%c4_39, %c0_40, %c0_41] : memref<16x32x64xbf16, #tpu.memory_space<vmem>>, vector<1x32x64xbf16>
    %46 = vector.shape_cast %45 : vector<1x32x64xbf16> to vector<32x64xbf16>
    %cst_42 = arith.constant dense<0.000000e+00> : vector<16x64xf32>
    %47 = tpu.matmul %44, %46, %cst_42 {dimension_numbers = #tpu.dot_dimension_numbers<[1], [0], [0], [1], [0, 0, 1, 1], [], []>} : vector<16x32xbf16>, vector<32x64xbf16>, vector<16x64xf32> -> vector<16x64xf32>
    %48 = arith.addf %40, %47 : vector<16x64xf32>
    %c5 = arith.constant 5 : index
    %c0_43 = arith.constant 0 : index
    %c0_44 = arith.constant 0 : index
    %49 = vector.load %arg4[%c5, %c0_43, %c0_44] : memref<16x16x64xbf16, #tpu.memory_space<vmem>>, vector<1x16x64xbf16>
    %50 = vector.shape_cast %49 : vector<1x16x64xbf16> to vector<16x64xbf16>
    %cst_45 = arith.constant dense<0.000000e+00> : vector<16x32xf32>
    %51 = tpu.matmul %50, %9, %cst_45 {dimension_numbers = #tpu.dot_dimension_numbers<[1], [0], [0], [1], [0, 0, 1, 1], [], []>} : vector<16x64xbf16>, vector<64x32xbf16>, vector<16x32xf32> -> vector<16x32xf32>
    %52 = arith.truncf %51 : vector<16x32xf32> to vector<16x32xbf16>
    %c5_46 = arith.constant 5 : index
    %c0_47 = arith.constant 0 : index
    %c0_48 = arith.constant 0 : index
    %53 = vector.load %arg5[%c5_46, %c0_47, %c0_48] : memref<16x32x64xbf16, #tpu.memory_space<vmem>>, vector<1x32x64xbf16>
    %54 = vector.shape_cast %53 : vector<1x32x64xbf16> to vector<32x64xbf16>
    %cst_49 = arith.constant dense<0.000000e+00> : vector<16x64xf32>
    %55 = tpu.matmul %52, %54, %cst_49 {dimension_numbers = #tpu.dot_dimension_numbers<[1], [0], [0], [1], [0, 0, 1, 1], [], []>} : vector<16x32xbf16>, vector<32x64xbf16>, vector<16x64xf32> -> vector<16x64xf32>
    %56 = arith.addf %48, %55 : vector<16x64xf32>
    %c6 = arith.constant 6 : index
    %c0_50 = arith.constant 0 : index
    %c0_51 = arith.constant 0 : index
    %57 = vector.load %arg4[%c6, %c0_50, %c0_51] : memref<16x16x64xbf16, #tpu.memory_space<vmem>>, vector<1x16x64xbf16>
    %58 = vector.shape_cast %57 : vector<1x16x64xbf16> to vector<16x64xbf16>
    %cst_52 = arith.constant dense<0.000000e+00> : vector<16x32xf32>
    %59 = tpu.matmul %58, %9, %cst_52 {dimension_numbers = #tpu.dot_dimension_numbers<[1], [0], [0], [1], [0, 0, 1, 1], [], []>} : vector<16x64xbf16>, vector<64x32xbf16>, vector<16x32xf32> -> vector<16x32xf32>
    %60 = arith.truncf %59 : vector<16x32xf32> to vector<16x32xbf16>
    %c6_53 = arith.constant 6 : index
    %c0_54 = arith.constant 0 : index
    %c0_55 = arith.constant 0 : index
    %61 = vector.load %arg5[%c6_53, %c0_54, %c0_55] : memref<16x32x64xbf16, #tpu.memory_space<vmem>>, vector<1x32x64xbf16>
    %62 = vector.shape_cast %61 : vector<1x32x64xbf16> to vector<32x64xbf16>
    %cst_56 = arith.constant dense<0.000000e+00> : vector<16x64xf32>
    %63 = tpu.matmul %60, %62, %cst_56 {dimension_numbers = #tpu.dot_dimension_numbers<[1], [0], [0], [1], [0, 0, 1, 1], [], []>} : vector<16x32xbf16>, vector<32x64xbf16>, vector<16x64xf32> -> vector<16x64xf32>
    %64 = arith.addf %56, %63 : vector<16x64xf32>
    %c7 = arith.constant 7 : index
    %c0_57 = arith.constant 0 : index
    %c0_58 = arith.constant 0 : index
    %65 = vector.load %arg4[%c7, %c0_57, %c0_58] : memref<16x16x64xbf16, #tpu.memory_space<vmem>>, vector<1x16x64xbf16>
    %66 = vector.shape_cast %65 : vector<1x16x64xbf16> to vector<16x64xbf16>
    %cst_59 = arith.constant dense<0.000000e+00> : vector<16x32xf32>
    %67 = tpu.matmul %66, %9, %cst_59 {dimension_numbers = #tpu.dot_dimension_numbers<[1], [0], [0], [1], [0, 0, 1, 1], [], []>} : vector<16x64xbf16>, vector<64x32xbf16>, vector<16x32xf32> -> vector<16x32xf32>
    %68 = arith.truncf %67 : vector<16x32xf32> to vector<16x32xbf16>
    %c7_60 = arith.constant 7 : index
    %c0_61 = arith.constant 0 : index
    %c0_62 = arith.constant 0 : index
    %69 = vector.load %arg5[%c7_60, %c0_61, %c0_62] : memref<16x32x64xbf16, #tpu.memory_space<vmem>>, vector<1x32x64xbf16>
    %70 = vector.shape_cast %69 : vector<1x32x64xbf16> to vector<32x64xbf16>
    %cst_63 = arith.constant dense<0.000000e+00> : vector<16x64xf32>
    %71 = tpu.matmul %68, %70, %cst_63 {dimension_numbers = #tpu.dot_dimension_numbers<[1], [0], [0], [1], [0, 0, 1, 1], [], []>} : vector<16x32xbf16>, vector<32x64xbf16>, vector<16x64xf32> -> vector<16x64xf32>
    %72 = arith.addf %64, %71 : vector<16x64xf32>
    %c8 = arith.constant 8 : index
    %c0_64 = arith.constant 0 : index
    %c0_65 = arith.constant 0 : index
    %73 = vector.load %arg4[%c8, %c0_64, %c0_65] : memref<16x16x64xbf16, #tpu.memory_space<vmem>>, vector<1x16x64xbf16>
    %74 = vector.shape_cast %73 : vector<1x16x64xbf16> to vector<16x64xbf16>
    %cst_66 = arith.constant dense<0.000000e+00> : vector<16x32xf32>
    %75 = tpu.matmul %74, %9, %cst_66 {dimension_numbers = #tpu.dot_dimension_numbers<[1], [0], [0], [1], [0, 0, 1, 1], [], []>} : vector<16x64xbf16>, vector<64x32xbf16>, vector<16x32xf32> -> vector<16x32xf32>
    %76 = arith.truncf %75 : vector<16x32xf32> to vector<16x32xbf16>
    %c8_67 = arith.constant 8 : index
    %c0_68 = arith.constant 0 : index
    %c0_69 = arith.constant 0 : index
    %77 = vector.load %arg5[%c8_67, %c0_68, %c0_69] : memref<16x32x64xbf16, #tpu.memory_space<vmem>>, vector<1x32x64xbf16>
    %78 = vector.shape_cast %77 : vector<1x32x64xbf16> to vector<32x64xbf16>
    %cst_70 = arith.constant dense<0.000000e+00> : vector<16x64xf32>
    %79 = tpu.matmul %76, %78, %cst_70 {dimension_numbers = #tpu.dot_dimension_numbers<[1], [0], [0], [1], [0, 0, 1, 1], [], []>} : vector<16x32xbf16>, vector<32x64xbf16>, vector<16x64xf32> -> vector<16x64xf32>
    %80 = arith.addf %72, %79 : vector<16x64xf32>
    %c9 = arith.constant 9 : index
    %c0_71 = arith.constant 0 : index
    %c0_72 = arith.constant 0 : index
    %81 = vector.load %arg4[%c9, %c0_71, %c0_72] : memref<16x16x64xbf16, #tpu.memory_space<vmem>>, vector<1x16x64xbf16>
    %82 = vector.shape_cast %81 : vector<1x16x64xbf16> to vector<16x64xbf16>
    %cst_73 = arith.constant dense<0.000000e+00> : vector<16x32xf32>
    %83 = tpu.matmul %82, %9, %cst_73 {dimension_numbers = #tpu.dot_dimension_numbers<[1], [0], [0], [1], [0, 0, 1, 1], [], []>} : vector<16x64xbf16>, vector<64x32xbf16>, vector<16x32xf32> -> vector<16x32xf32>
    %84 = arith.truncf %83 : vector<16x32xf32> to vector<16x32xbf16>
    %c9_74 = arith.constant 9 : index
    %c0_75 = arith.constant 0 : index
    %c0_76 = arith.constant 0 : index
    %85 = vector.load %arg5[%c9_74, %c0_75, %c0_76] : memref<16x32x64xbf16, #tpu.memory_space<vmem>>, vector<1x32x64xbf16>
    %86 = vector.shape_cast %85 : vector<1x32x64xbf16> to vector<32x64xbf16>
    %cst_77 = arith.constant dense<0.000000e+00> : vector<16x64xf32>
    %87 = tpu.matmul %84, %86, %cst_77 {dimension_numbers = #tpu.dot_dimension_numbers<[1], [0], [0], [1], [0, 0, 1, 1], [], []>} : vector<16x32xbf16>, vector<32x64xbf16>, vector<16x64xf32> -> vector<16x64xf32>
    %88 = arith.addf %80, %87 : vector<16x64xf32>
    %c10 = arith.constant 10 : index
    %c0_78 = arith.constant 0 : index
    %c0_79 = arith.constant 0 : index
    %89 = vector.load %arg4[%c10, %c0_78, %c0_79] : memref<16x16x64xbf16, #tpu.memory_space<vmem>>, vector<1x16x64xbf16>
    %90 = vector.shape_cast %89 : vector<1x16x64xbf16> to vector<16x64xbf16>
    %cst_80 = arith.constant dense<0.000000e+00> : vector<16x32xf32>
    %91 = tpu.matmul %90, %9, %cst_80 {dimension_numbers = #tpu.dot_dimension_numbers<[1], [0], [0], [1], [0, 0, 1, 1], [], []>} : vector<16x64xbf16>, vector<64x32xbf16>, vector<16x32xf32> -> vector<16x32xf32>
    %92 = arith.truncf %91 : vector<16x32xf32> to vector<16x32xbf16>
    %c10_81 = arith.constant 10 : index
    %c0_82 = arith.constant 0 : index
    %c0_83 = arith.constant 0 : index
    %93 = vector.load %arg5[%c10_81, %c0_82, %c0_83] : memref<16x32x64xbf16, #tpu.memory_space<vmem>>, vector<1x32x64xbf16>
    %94 = vector.shape_cast %93 : vector<1x32x64xbf16> to vector<32x64xbf16>
    %cst_84 = arith.constant dense<0.000000e+00> : vector<16x64xf32>
    %95 = tpu.matmul %92, %94, %cst_84 {dimension_numbers = #tpu.dot_dimension_numbers<[1], [0], [0], [1], [0, 0, 1, 1], [], []>} : vector<16x32xbf16>, vector<32x64xbf16>, vector<16x64xf32> -> vector<16x64xf32>
    %96 = arith.addf %88, %95 : vector<16x64xf32>
    %c11 = arith.constant 11 : index
    %c0_85 = arith.constant 0 : index
    %c0_86 = arith.constant 0 : index
    %97 = vector.load %arg4[%c11, %c0_85, %c0_86] : memref<16x16x64xbf16, #tpu.memory_space<vmem>>, vector<1x16x64xbf16>
    %98 = vector.shape_cast %97 : vector<1x16x64xbf16> to vector<16x64xbf16>
    %cst_87 = arith.constant dense<0.000000e+00> : vector<16x32xf32>
    %99 = tpu.matmul %98, %9, %cst_87 {dimension_numbers = #tpu.dot_dimension_numbers<[1], [0], [0], [1], [0, 0, 1, 1], [], []>} : vector<16x64xbf16>, vector<64x32xbf16>, vector<16x32xf32> -> vector<16x32xf32>
    %100 = arith.truncf %99 : vector<16x32xf32> to vector<16x32xbf16>
    %c11_88 = arith.constant 11 : index
    %c0_89 = arith.constant 0 : index
    %c0_90 = arith.constant 0 : index
    %101 = vector.load %arg5[%c11_88, %c0_89, %c0_90] : memref<16x32x64xbf16, #tpu.memory_space<vmem>>, vector<1x32x64xbf16>
    %102 = vector.shape_cast %101 : vector<1x32x64xbf16> to vector<32x64xbf16>
    %cst_91 = arith.constant dense<0.000000e+00> : vector<16x64xf32>
    %103 = tpu.matmul %100, %102, %cst_91 {dimension_numbers = #tpu.dot_dimension_numbers<[1], [0], [0], [1], [0, 0, 1, 1], [], []>} : vector<16x32xbf16>, vector<32x64xbf16>, vector<16x64xf32> -> vector<16x64xf32>
    %104 = arith.addf %96, %103 : vector<16x64xf32>
    %c12 = arith.constant 12 : index
    %c0_92 = arith.constant 0 : index
    %c0_93 = arith.constant 0 : index
    %105 = vector.load %arg4[%c12, %c0_92, %c0_93] : memref<16x16x64xbf16, #tpu.memory_space<vmem>>, vector<1x16x64xbf16>
    %106 = vector.shape_cast %105 : vector<1x16x64xbf16> to vector<16x64xbf16>
    %cst_94 = arith.constant dense<0.000000e+00> : vector<16x32xf32>
    %107 = tpu.matmul %106, %9, %cst_94 {dimension_numbers = #tpu.dot_dimension_numbers<[1], [0], [0], [1], [0, 0, 1, 1], [], []>} : vector<16x64xbf16>, vector<64x32xbf16>, vector<16x32xf32> -> vector<16x32xf32>
    %108 = arith.truncf %107 : vector<16x32xf32> to vector<16x32xbf16>
    %c12_95 = arith.constant 12 : index
    %c0_96 = arith.constant 0 : index
    %c0_97 = arith.constant 0 : index
    %109 = vector.load %arg5[%c12_95, %c0_96, %c0_97] : memref<16x32x64xbf16, #tpu.memory_space<vmem>>, vector<1x32x64xbf16>
    %110 = vector.shape_cast %109 : vector<1x32x64xbf16> to vector<32x64xbf16>
    %cst_98 = arith.constant dense<0.000000e+00> : vector<16x64xf32>
    %111 = tpu.matmul %108, %110, %cst_98 {dimension_numbers = #tpu.dot_dimension_numbers<[1], [0], [0], [1], [0, 0, 1, 1], [], []>} : vector<16x32xbf16>, vector<32x64xbf16>, vector<16x64xf32> -> vector<16x64xf32>
    %112 = arith.addf %104, %111 : vector<16x64xf32>
    %c13 = arith.constant 13 : index
    %c0_99 = arith.constant 0 : index
    %c0_100 = arith.constant 0 : index
    %113 = vector.load %arg4[%c13, %c0_99, %c0_100] : memref<16x16x64xbf16, #tpu.memory_space<vmem>>, vector<1x16x64xbf16>
    %114 = vector.shape_cast %113 : vector<1x16x64xbf16> to vector<16x64xbf16>
    %cst_101 = arith.constant dense<0.000000e+00> : vector<16x32xf32>
    %115 = tpu.matmul %114, %9, %cst_101 {dimension_numbers = #tpu.dot_dimension_numbers<[1], [0], [0], [1], [0, 0, 1, 1], [], []>} : vector<16x64xbf16>, vector<64x32xbf16>, vector<16x32xf32> -> vector<16x32xf32>
    %116 = arith.truncf %115 : vector<16x32xf32> to vector<16x32xbf16>
    %c13_102 = arith.constant 13 : index
    %c0_103 = arith.constant 0 : index
    %c0_104 = arith.constant 0 : index
    %117 = vector.load %arg5[%c13_102, %c0_103, %c0_104] : memref<16x32x64xbf16, #tpu.memory_space<vmem>>, vector<1x32x64xbf16>
    %118 = vector.shape_cast %117 : vector<1x32x64xbf16> to vector<32x64xbf16>
    %cst_105 = arith.constant dense<0.000000e+00> : vector<16x64xf32>
    %119 = tpu.matmul %116, %118, %cst_105 {dimension_numbers = #tpu.dot_dimension_numbers<[1], [0], [0], [1], [0, 0, 1, 1], [], []>} : vector<16x32xbf16>, vector<32x64xbf16>, vector<16x64xf32> -> vector<16x64xf32>
    %120 = arith.addf %112, %119 : vector<16x64xf32>
    %c14 = arith.constant 14 : index
    %c0_106 = arith.constant 0 : index
    %c0_107 = arith.constant 0 : index
    %121 = vector.load %arg4[%c14, %c0_106, %c0_107] : memref<16x16x64xbf16, #tpu.memory_space<vmem>>, vector<1x16x64xbf16>
    %122 = vector.shape_cast %121 : vector<1x16x64xbf16> to vector<16x64xbf16>
    %cst_108 = arith.constant dense<0.000000e+00> : vector<16x32xf32>
    %123 = tpu.matmul %122, %9, %cst_108 {dimension_numbers = #tpu.dot_dimension_numbers<[1], [0], [0], [1], [0, 0, 1, 1], [], []>} : vector<16x64xbf16>, vector<64x32xbf16>, vector<16x32xf32> -> vector<16x32xf32>
    %124 = arith.truncf %123 : vector<16x32xf32> to vector<16x32xbf16>
    %c14_109 = arith.constant 14 : index
    %c0_110 = arith.constant 0 : index
    %c0_111 = arith.constant 0 : index
    %125 = vector.load %arg5[%c14_109, %c0_110, %c0_111] : memref<16x32x64xbf16, #tpu.memory_space<vmem>>, vector<1x32x64xbf16>
    %126 = vector.shape_cast %125 : vector<1x32x64xbf16> to vector<32x64xbf16>
    %cst_112 = arith.constant dense<0.000000e+00> : vector<16x64xf32>
    %127 = tpu.matmul %124, %126, %cst_112 {dimension_numbers = #tpu.dot_dimension_numbers<[1], [0], [0], [1], [0, 0, 1, 1], [], []>} : vector<16x32xbf16>, vector<32x64xbf16>, vector<16x64xf32> -> vector<16x64xf32>
    %128 = arith.addf %120, %127 : vector<16x64xf32>
    %c15 = arith.constant 15 : index
    %c0_113 = arith.constant 0 : index
    %c0_114 = arith.constant 0 : index
    %129 = vector.load %arg4[%c15, %c0_113, %c0_114] : memref<16x16x64xbf16, #tpu.memory_space<vmem>>, vector<1x16x64xbf16>
    %130 = vector.shape_cast %129 : vector<1x16x64xbf16> to vector<16x64xbf16>
    %cst_115 = arith.constant dense<0.000000e+00> : vector<16x32xf32>
    %131 = tpu.matmul %130, %9, %cst_115 {dimension_numbers = #tpu.dot_dimension_numbers<[1], [0], [0], [1], [0, 0, 1, 1], [], []>} : vector<16x64xbf16>, vector<64x32xbf16>, vector<16x32xf32> -> vector<16x32xf32>
    %132 = arith.truncf %131 : vector<16x32xf32> to vector<16x32xbf16>
    %c15_116 = arith.constant 15 : index
    %c0_117 = arith.constant 0 : index
    %c0_118 = arith.constant 0 : index
    %133 = vector.load %arg5[%c15_116, %c0_117, %c0_118] : memref<16x32x64xbf16, #tpu.memory_space<vmem>>, vector<1x32x64xbf16>
    %134 = vector.shape_cast %133 : vector<1x32x64xbf16> to vector<32x64xbf16>
    %cst_119 = arith.constant dense<0.000000e+00> : vector<16x64xf32>
    %135 = tpu.matmul %132, %134, %cst_119 {dimension_numbers = #tpu.dot_dimension_numbers<[1], [0], [0], [1], [0, 0, 1, 1], [], []>} : vector<16x32xbf16>, vector<32x64xbf16>, vector<16x64xf32> -> vector<16x64xf32>
    %136 = arith.addf %128, %135 : vector<16x64xf32>
    %c0_120 = arith.constant 0 : index
    %c0_121 = arith.constant 0 : index
    %137 = vector.load %arg6[%c0_120, %c0_121] : memref<1x64xf32, #tpu.memory_space<vmem>>, vector<1x64xf32>
    %138 = vector.broadcast %137 : vector<1x64xf32> to vector<16x64xf32>
    %139 = arith.addf %136, %138 : vector<16x64xf32>
    %cst_122 = arith.constant 0.000000e+00 : f32
    %140 = vector.broadcast %cst_122 : f32 to vector<16x64xf32>
    %141 = arith.maximumf %139, %140 : vector<16x64xf32>
    %142 = arith.truncf %141 : vector<16x64xf32> to vector<16x64xbf16>
    %c0_123 = arith.constant 0 : index
    %c0_124 = arith.constant 0 : index
    %c0_125 = arith.constant 0 : index
    %143 = vector.load %arg7[%c0_123, %c0_124, %c0_125] : memref<9x8x16xbf16, #tpu.memory_space<vmem>>, vector<1x8x16xbf16>
    %144 = vector.shape_cast %143 : vector<1x8x16xbf16> to vector<8x16xbf16>
    %cst_126 = arith.constant dense<0.000000e+00> : vector<8x64xf32>
    %145 = tpu.matmul %144, %142, %cst_126 {dimension_numbers = #tpu.dot_dimension_numbers<[1], [0], [0], [1], [0, 0, 1, 1], [], []>} : vector<8x16xbf16>, vector<16x64xbf16>, vector<8x64xf32> -> vector<8x64xf32>
    %146 = arith.truncf %145 : vector<8x64xf32> to vector<8x64xbf16>
    %c0_127 = arith.constant 0 : index
    %c0_128 = arith.constant 0 : index
    %c0_129 = arith.constant 0 : index
    %147 = vector.load %arg8[%c0_127, %c0_128, %c0_129] : memref<9x64x64xbf16, #tpu.memory_space<vmem>>, vector<1x64x64xbf16>
    %148 = vector.shape_cast %147 : vector<1x64x64xbf16> to vector<64x64xbf16>
    %cst_130 = arith.constant dense<0.000000e+00> : vector<8x64xf32>
    %149 = tpu.matmul %146, %148, %cst_130 {dimension_numbers = #tpu.dot_dimension_numbers<[1], [0], [0], [1], [0, 0, 1, 1], [], []>} : vector<8x64xbf16>, vector<64x64xbf16>, vector<8x64xf32> -> vector<8x64xf32>
    %c1_131 = arith.constant 1 : index
    %c0_132 = arith.constant 0 : index
    %c0_133 = arith.constant 0 : index
    %150 = vector.load %arg7[%c1_131, %c0_132, %c0_133] : memref<9x8x16xbf16, #tpu.memory_space<vmem>>, vector<1x8x16xbf16>
    %151 = vector.shape_cast %150 : vector<1x8x16xbf16> to vector<8x16xbf16>
    %cst_134 = arith.constant dense<0.000000e+00> : vector<8x64xf32>
    %152 = tpu.matmul %151, %142, %cst_134 {dimension_numbers = #tpu.dot_dimension_numbers<[1], [0], [0], [1], [0, 0, 1, 1], [], []>} : vector<8x16xbf16>, vector<16x64xbf16>, vector<8x64xf32> -> vector<8x64xf32>
    %153 = arith.truncf %152 : vector<8x64xf32> to vector<8x64xbf16>
    %c1_135 = arith.constant 1 : index
    %c0_136 = arith.constant 0 : index
    %c0_137 = arith.constant 0 : index
    %154 = vector.load %arg8[%c1_135, %c0_136, %c0_137] : memref<9x64x64xbf16, #tpu.memory_space<vmem>>, vector<1x64x64xbf16>
    %155 = vector.shape_cast %154 : vector<1x64x64xbf16> to vector<64x64xbf16>
    %cst_138 = arith.constant dense<0.000000e+00> : vector<8x64xf32>
    %156 = tpu.matmul %153, %155, %cst_138 {dimension_numbers = #tpu.dot_dimension_numbers<[1], [0], [0], [1], [0, 0, 1, 1], [], []>} : vector<8x64xbf16>, vector<64x64xbf16>, vector<8x64xf32> -> vector<8x64xf32>
    %157 = arith.addf %149, %156 : vector<8x64xf32>
    %c2_139 = arith.constant 2 : index
    %c0_140 = arith.constant 0 : index
    %c0_141 = arith.constant 0 : index
    %158 = vector.load %arg7[%c2_139, %c0_140, %c0_141] : memref<9x8x16xbf16, #tpu.memory_space<vmem>>, vector<1x8x16xbf16>
    %159 = vector.shape_cast %158 : vector<1x8x16xbf16> to vector<8x16xbf16>
    %cst_142 = arith.constant dense<0.000000e+00> : vector<8x64xf32>
    %160 = tpu.matmul %159, %142, %cst_142 {dimension_numbers = #tpu.dot_dimension_numbers<[1], [0], [0], [1], [0, 0, 1, 1], [], []>} : vector<8x16xbf16>, vector<16x64xbf16>, vector<8x64xf32> -> vector<8x64xf32>
    %161 = arith.truncf %160 : vector<8x64xf32> to vector<8x64xbf16>
    %c2_143 = arith.constant 2 : index
    %c0_144 = arith.constant 0 : index
    %c0_145 = arith.constant 0 : index
    %162 = vector.load %arg8[%c2_143, %c0_144, %c0_145] : memref<9x64x64xbf16, #tpu.memory_space<vmem>>, vector<1x64x64xbf16>
    %163 = vector.shape_cast %162 : vector<1x64x64xbf16> to vector<64x64xbf16>
    %cst_146 = arith.constant dense<0.000000e+00> : vector<8x64xf32>
    %164 = tpu.matmul %161, %163, %cst_146 {dimension_numbers = #tpu.dot_dimension_numbers<[1], [0], [0], [1], [0, 0, 1, 1], [], []>} : vector<8x64xbf16>, vector<64x64xbf16>, vector<8x64xf32> -> vector<8x64xf32>
    %165 = arith.addf %157, %164 : vector<8x64xf32>
    %c3_147 = arith.constant 3 : index
    %c0_148 = arith.constant 0 : index
    %c0_149 = arith.constant 0 : index
    %166 = vector.load %arg7[%c3_147, %c0_148, %c0_149] : memref<9x8x16xbf16, #tpu.memory_space<vmem>>, vector<1x8x16xbf16>
    %167 = vector.shape_cast %166 : vector<1x8x16xbf16> to vector<8x16xbf16>
    %cst_150 = arith.constant dense<0.000000e+00> : vector<8x64xf32>
    %168 = tpu.matmul %167, %142, %cst_150 {dimension_numbers = #tpu.dot_dimension_numbers<[1], [0], [0], [1], [0, 0, 1, 1], [], []>} : vector<8x16xbf16>, vector<16x64xbf16>, vector<8x64xf32> -> vector<8x64xf32>
    %169 = arith.truncf %168 : vector<8x64xf32> to vector<8x64xbf16>
    %c3_151 = arith.constant 3 : index
    %c0_152 = arith.constant 0 : index
    %c0_153 = arith.constant 0 : index
    %170 = vector.load %arg8[%c3_151, %c0_152, %c0_153] : memref<9x64x64xbf16, #tpu.memory_space<vmem>>, vector<1x64x64xbf16>
    %171 = vector.shape_cast %170 : vector<1x64x64xbf16> to vector<64x64xbf16>
    %cst_154 = arith.constant dense<0.000000e+00> : vector<8x64xf32>
    %172 = tpu.matmul %169, %171, %cst_154 {dimension_numbers = #tpu.dot_dimension_numbers<[1], [0], [0], [1], [0, 0, 1, 1], [], []>} : vector<8x64xbf16>, vector<64x64xbf16>, vector<8x64xf32> -> vector<8x64xf32>
    %173 = arith.addf %165, %172 : vector<8x64xf32>
    %c4_155 = arith.constant 4 : index
    %c0_156 = arith.constant 0 : index
    %c0_157 = arith.constant 0 : index
    %174 = vector.load %arg7[%c4_155, %c0_156, %c0_157] : memref<9x8x16xbf16, #tpu.memory_space<vmem>>, vector<1x8x16xbf16>
    %175 = vector.shape_cast %174 : vector<1x8x16xbf16> to vector<8x16xbf16>
    %cst_158 = arith.constant dense<0.000000e+00> : vector<8x64xf32>
    %176 = tpu.matmul %175, %142, %cst_158 {dimension_numbers = #tpu.dot_dimension_numbers<[1], [0], [0], [1], [0, 0, 1, 1], [], []>} : vector<8x16xbf16>, vector<16x64xbf16>, vector<8x64xf32> -> vector<8x64xf32>
    %177 = arith.truncf %176 : vector<8x64xf32> to vector<8x64xbf16>
    %c4_159 = arith.constant 4 : index
    %c0_160 = arith.constant 0 : index
    %c0_161 = arith.constant 0 : index
    %178 = vector.load %arg8[%c4_159, %c0_160, %c0_161] : memref<9x64x64xbf16, #tpu.memory_space<vmem>>, vector<1x64x64xbf16>
    %179 = vector.shape_cast %178 : vector<1x64x64xbf16> to vector<64x64xbf16>
    %cst_162 = arith.constant dense<0.000000e+00> : vector<8x64xf32>
    %180 = tpu.matmul %177, %179, %cst_162 {dimension_numbers = #tpu.dot_dimension_numbers<[1], [0], [0], [1], [0, 0, 1, 1], [], []>} : vector<8x64xbf16>, vector<64x64xbf16>, vector<8x64xf32> -> vector<8x64xf32>
    %181 = arith.addf %173, %180 : vector<8x64xf32>
    %c5_163 = arith.constant 5 : index
    %c0_164 = arith.constant 0 : index
    %c0_165 = arith.constant 0 : index
    %182 = vector.load %arg7[%c5_163, %c0_164, %c0_165] : memref<9x8x16xbf16, #tpu.memory_space<vmem>>, vector<1x8x16xbf16>
    %183 = vector.shape_cast %182 : vector<1x8x16xbf16> to vector<8x16xbf16>
    %cst_166 = arith.constant dense<0.000000e+00> : vector<8x64xf32>
    %184 = tpu.matmul %183, %142, %cst_166 {dimension_numbers = #tpu.dot_dimension_numbers<[1], [0], [0], [1], [0, 0, 1, 1], [], []>} : vector<8x16xbf16>, vector<16x64xbf16>, vector<8x64xf32> -> vector<8x64xf32>
    %185 = arith.truncf %184 : vector<8x64xf32> to vector<8x64xbf16>
    %c5_167 = arith.constant 5 : index
    %c0_168 = arith.constant 0 : index
    %c0_169 = arith.constant 0 : index
    %186 = vector.load %arg8[%c5_167, %c0_168, %c0_169] : memref<9x64x64xbf16, #tpu.memory_space<vmem>>, vector<1x64x64xbf16>
    %187 = vector.shape_cast %186 : vector<1x64x64xbf16> to vector<64x64xbf16>
    %cst_170 = arith.constant dense<0.000000e+00> : vector<8x64xf32>
    %188 = tpu.matmul %185, %187, %cst_170 {dimension_numbers = #tpu.dot_dimension_numbers<[1], [0], [0], [1], [0, 0, 1, 1], [], []>} : vector<8x64xbf16>, vector<64x64xbf16>, vector<8x64xf32> -> vector<8x64xf32>
    %189 = arith.addf %181, %188 : vector<8x64xf32>
    %c6_171 = arith.constant 6 : index
    %c0_172 = arith.constant 0 : index
    %c0_173 = arith.constant 0 : index
    %190 = vector.load %arg7[%c6_171, %c0_172, %c0_173] : memref<9x8x16xbf16, #tpu.memory_space<vmem>>, vector<1x8x16xbf16>
    %191 = vector.shape_cast %190 : vector<1x8x16xbf16> to vector<8x16xbf16>
    %cst_174 = arith.constant dense<0.000000e+00> : vector<8x64xf32>
    %192 = tpu.matmul %191, %142, %cst_174 {dimension_numbers = #tpu.dot_dimension_numbers<[1], [0], [0], [1], [0, 0, 1, 1], [], []>} : vector<8x16xbf16>, vector<16x64xbf16>, vector<8x64xf32> -> vector<8x64xf32>
    %193 = arith.truncf %192 : vector<8x64xf32> to vector<8x64xbf16>
    %c6_175 = arith.constant 6 : index
    %c0_176 = arith.constant 0 : index
    %c0_177 = arith.constant 0 : index
    %194 = vector.load %arg8[%c6_175, %c0_176, %c0_177] : memref<9x64x64xbf16, #tpu.memory_space<vmem>>, vector<1x64x64xbf16>
    %195 = vector.shape_cast %194 : vector<1x64x64xbf16> to vector<64x64xbf16>
    %cst_178 = arith.constant dense<0.000000e+00> : vector<8x64xf32>
    %196 = tpu.matmul %193, %195, %cst_178 {dimension_numbers = #tpu.dot_dimension_numbers<[1], [0], [0], [1], [0, 0, 1, 1], [], []>} : vector<8x64xbf16>, vector<64x64xbf16>, vector<8x64xf32> -> vector<8x64xf32>
    %197 = arith.addf %189, %196 : vector<8x64xf32>
    %c7_179 = arith.constant 7 : index
    %c0_180 = arith.constant 0 : index
    %c0_181 = arith.constant 0 : index
    %198 = vector.load %arg7[%c7_179, %c0_180, %c0_181] : memref<9x8x16xbf16, #tpu.memory_space<vmem>>, vector<1x8x16xbf16>
    %199 = vector.shape_cast %198 : vector<1x8x16xbf16> to vector<8x16xbf16>
    %cst_182 = arith.constant dense<0.000000e+00> : vector<8x64xf32>
    %200 = tpu.matmul %199, %142, %cst_182 {dimension_numbers = #tpu.dot_dimension_numbers<[1], [0], [0], [1], [0, 0, 1, 1], [], []>} : vector<8x16xbf16>, vector<16x64xbf16>, vector<8x64xf32> -> vector<8x64xf32>
    %201 = arith.truncf %200 : vector<8x64xf32> to vector<8x64xbf16>
    %c7_183 = arith.constant 7 : index
    %c0_184 = arith.constant 0 : index
    %c0_185 = arith.constant 0 : index
    %202 = vector.load %arg8[%c7_183, %c0_184, %c0_185] : memref<9x64x64xbf16, #tpu.memory_space<vmem>>, vector<1x64x64xbf16>
    %203 = vector.shape_cast %202 : vector<1x64x64xbf16> to vector<64x64xbf16>
    %cst_186 = arith.constant dense<0.000000e+00> : vector<8x64xf32>
    %204 = tpu.matmul %201, %203, %cst_186 {dimension_numbers = #tpu.dot_dimension_numbers<[1], [0], [0], [1], [0, 0, 1, 1], [], []>} : vector<8x64xbf16>, vector<64x64xbf16>, vector<8x64xf32> -> vector<8x64xf32>
    %205 = arith.addf %197, %204 : vector<8x64xf32>
    %c8_187 = arith.constant 8 : index
    %c0_188 = arith.constant 0 : index
    %c0_189 = arith.constant 0 : index
    %206 = vector.load %arg7[%c8_187, %c0_188, %c0_189] : memref<9x8x16xbf16, #tpu.memory_space<vmem>>, vector<1x8x16xbf16>
    %207 = vector.shape_cast %206 : vector<1x8x16xbf16> to vector<8x16xbf16>
    %cst_190 = arith.constant dense<0.000000e+00> : vector<8x64xf32>
    %208 = tpu.matmul %207, %142, %cst_190 {dimension_numbers = #tpu.dot_dimension_numbers<[1], [0], [0], [1], [0, 0, 1, 1], [], []>} : vector<8x16xbf16>, vector<16x64xbf16>, vector<8x64xf32> -> vector<8x64xf32>
    %209 = arith.truncf %208 : vector<8x64xf32> to vector<8x64xbf16>
    %c8_191 = arith.constant 8 : index
    %c0_192 = arith.constant 0 : index
    %c0_193 = arith.constant 0 : index
    %210 = vector.load %arg8[%c8_191, %c0_192, %c0_193] : memref<9x64x64xbf16, #tpu.memory_space<vmem>>, vector<1x64x64xbf16>
    %211 = vector.shape_cast %210 : vector<1x64x64xbf16> to vector<64x64xbf16>
    %cst_194 = arith.constant dense<0.000000e+00> : vector<8x64xf32>
    %212 = tpu.matmul %209, %211, %cst_194 {dimension_numbers = #tpu.dot_dimension_numbers<[1], [0], [0], [1], [0, 0, 1, 1], [], []>} : vector<8x64xbf16>, vector<64x64xbf16>, vector<8x64xf32> -> vector<8x64xf32>
    %213 = arith.addf %205, %212 : vector<8x64xf32>
    %c0_195 = arith.constant 0 : index
    %c0_196 = arith.constant 0 : index
    %214 = vector.load %arg9[%c0_195, %c0_196] : memref<1x64xf32, #tpu.memory_space<vmem>>, vector<1x64xf32>
    %215 = vector.broadcast %214 : vector<1x64xf32> to vector<8x64xf32>
    %216 = arith.addf %213, %215 : vector<8x64xf32>
    %cst_197 = arith.constant 0.000000e+00 : f32
    %217 = vector.broadcast %cst_197 : f32 to vector<8x64xf32>
    %218 = arith.maximumf %216, %217 : vector<8x64xf32>
    %c0_198 = arith.constant 0 : index
    %c0_199 = arith.constant 0 : index
    %c0_200 = arith.constant 0 : index
    %219 = vector.load %arg10[%c0_198, %c0_199, %c0_200] : memref<1x8x64xf32, #tpu.memory_space<vmem>>, vector<1x8x64xf32>
    %220 = vector.shape_cast %219 : vector<1x8x64xf32> to vector<8x64xf32>
    %221 = vector.shape_cast %218 : vector<8x64xf32> to vector<1x8x64xf32>
    tpu.vector_store %arg10[%c0_198, %c0_199, %c0_200], %221 {strides = array<i32>} : memref<1x8x64xf32, #tpu.memory_space<vmem>>, vector<1x8x64xf32>,
    return
  }
  func.func @transform_0(%arg0: i32) -> (i32, i32, i32) {
    %c0_i32 = arith.constant 0 : i32
    %c0_i32_0 = arith.constant 0 : i32
    %c0_i32_1 = arith.constant 0 : i32
    return %arg0, %c0_i32, %c0_i32_0 : i32, i32, i32
  }
  func.func @transform_1(%arg0: i32) -> (i32, i32) {
    %c0_i32 = arith.constant 0 : i32
    %c0_i32_0 = arith.constant 0 : i32
    %c0_i32_1 = arith.constant 0 : i32
    return %c0_i32, %c0_i32_0 : i32, i32
  }
  func.func @transform_2(%arg0: i32) -> (i32, i32) {
    %c0_i32 = arith.constant 0 : i32
    %c0_i32_0 = arith.constant 0 : i32
    %c0_i32_1 = arith.constant 0 : i32
    return %c0_i32, %c0_i32_0 : i32, i32
  }
  func.func @transform_3(%arg0: i32) -> (i32, i32, i32) {
    %c0_i32 = arith.constant 0 : i32
    %c0_i32_0 = arith.constant 0 : i32
    %c0_i32_1 = arith.constant 0 : i32
    %c0_i32_2 = arith.constant 0 : i32
    return %c0_i32, %c0_i32_0, %c0_i32_1 : i32, i32, i32
  }
  func.func @transform_4(%arg0: i32) -> (i32, i32, i32) {
    %c0_i32 = arith.constant 0 : i32
    %c0_i32_0 = arith.constant 0 : i32
    %c0_i32_1 = arith.constant 0 : i32
    %c0_i32_2 = arith.constant 0 : i32
    return %c0_i32, %c0_i32_0, %c0_i32_1 : i32, i32, i32
  }
  func.func @transform_5(%arg0: i32) -> (i32, i32) {
    %c0_i32 = arith.constant 0 : i32
    %c0_i32_0 = arith.constant 0 : i32
    %c0_i32_1 = arith.constant 0 : i32
    return %c0_i32, %c0_i32_0 : i32, i32
  }
  func.func @transform_6(%arg0: i32) -> (i32, i32, i32) {
    %c0_i32 = arith.constant 0 : i32
    %c0_i32_0 = arith.constant 0 : i32
    %c0_i32_1 = arith.constant 0 : i32
    %c0_i32_2 = arith.constant 0 : i32
    return %c0_i32, %c0_i32_0, %c0_i32_1 : i32, i32, i32
  }
  func.func @transform_7(%arg0: i32) -> (i32, i32, i32) {
    %c0_i32 = arith.constant 0 : i32
    %c0_i32_0 = arith.constant 0 : i32
    %c0_i32_1 = arith.constant 0 : i32
    %c0_i32_2 = arith.constant 0 : i32
    return %c0_i32, %c0_i32_0, %c0_i32_1 : i32, i32, i32
  }
  func.func @transform_8(%arg0: i32) -> (i32, i32) {
    %c0_i32 = arith.constant 0 : i32
    %c0_i32_0 = arith.constant 0 : i32
    %c0_i32_1 = arith.constant 0 : i32
    return %c0_i32, %c0_i32_0 : i32, i32
  }
  func.func @transform_9(%arg0: i32) -> (i32, i32, i32) {
    %c0_i32 = arith.constant 0 : i32
    %c0_i32_0 = arith.constant 0 : i32
    %c0_i32_1 = arith.constant 0 : i32
    return %arg0, %c0_i32, %c0_i32_0 : i32, i32, i32
  }
}

</mosaic_0001>

<llo_original>
// kernel: _lambda_.1
$region0: #{_lambda_.1}
  #allocation0 [shape = 'u32[]', space=smem, size = 0x4, offset = 0x4, fixed_abs, tag = 'smem constant byte address 0x4 - core index']
  #allocation1 [shape = 'u32[144,128]{1,0:T(1,128)}', space=vmem, size = 0x12000, scoped, tag = 'internal scratch']
  %s0 = inlined_call_operand.vmem [shape: bf16[2,64,256], index: 0, kind: input, shape index: {}]
  %s1 = inlined_call_operand.vmem [shape: bf16[256,32], index: 1, kind: input, shape index: {}]
  %s2 = inlined_call_operand.vmem [shape: f32[1,32], index: 2, kind: input, shape index: {}]
  %s3 = inlined_call_operand.vmem [shape: bf16[16,16,64], index: 3, kind: input, shape index: {}]
  %s4 = inlined_call_operand.vmem [shape: bf16[16,32,64], index: 4, kind: input, shape index: {}]
  %s5 = inlined_call_operand.vmem [shape: f32[1,64], index: 5, kind: input, shape index: {}]
  %s6 = inlined_call_operand.vmem [shape: bf16[9,8,16], index: 6, kind: input, shape index: {}]
  %s7 = inlined_call_operand.vmem [shape: bf16[9,64,64], index: 7, kind: input, shape index: {}]
  %s8 = inlined_call_operand.vmem [shape: f32[1,64], index: 8, kind: input, shape index: {}]
  %s9 = inlined_call_operand.vmem [shape: f32[2,8,64], index: 9, kind: output, shape index: {}]
  %s10 = sld [smem:[#allocation0]]
  $region69: #{_lambda_.1} parent=0
    _
  %s12 = ssub.s32 1, %s10
  %s13 = scalar_select 0, %s12, %s10
  loop: start=0, step=1, limit=4
  $region2: #{_lambda_.1} parent=0 // loop_pre_header
    _
  $region3: #{_lambda_.1} parent=0 // loop_header
    %s15 = sphi 0, %s19
    %p16 = scmp.ge.s32.totalorder %s15, 4
    %s25 = sphi 0, %s27
    %s28 = sphi 0, %s25
    %s29 = sphi 0, %s28
    %s45 = sphi 0, %s29
    %s49 = sphi 0, %s49
    %s51 = sphi 0, %s49
    %s52 = sphi 0, %s51
    %s66 = sphi 0, %s52
    %s70 = sphi 0, %s70
    %s72 = sphi 0, %s70
    %s73 = sphi 0, %s72
    %s87 = sphi 0, %s73
    %s91 = sphi 0, %s91
    %s93 = sphi 0, %s91
    %s94 = sphi 0, %s93
    %s108 = sphi 0, %s94
    %s112 = sphi 0, %s112
    %s114 = sphi 0, %s112
    %s115 = sphi 0, %s114
    %s129 = sphi 0, %s115
    %s133 = sphi 0, %s133
    %s135 = sphi 0, %s133
    %s136 = sphi 0, %s135
    %s150 = sphi 0, %s136
    %s154 = sphi 0, %s154
    %s156 = sphi 0, %s154
    %s157 = sphi 0, %s156
    %s171 = sphi 0, %s157
    %s175 = sphi 0, %s175
    %s177 = sphi 0, %s175
    %s178 = sphi 0, %s177
    %s192 = sphi 0, %s178
    %s196 = sphi 0, %s196
    %s198 = sphi 0, %s196
    %s199 = sphi 0, %s198
    %s213 = sphi 0, %s199
    %s219 = sphi 0, %s221
    %s222 = sphi 0, %s219
    %s223 = sphi 0, %s222
    %s239 = sphi 0, %s223
  $region4: #{_lambda_.1} parent=0 // loop_header_branch
    %18 = sbr.rel (%p16) target = $region8
  $region5: #{_lambda_.1} parent=0 // loop_body
    %s20 = ssub.s32 %s15, 1
    %s21 = ssub.s32 %s15, 2
    %s22 = sadd.s32 %s15, 1
    %s23 = ssub.s32 %s15, %s22
    %p24 = scmp.eq.s32.totalorder %s23, 0
    %s26 = sadd.s32 %s25, 1
    %s27 = scalar_select %p24, %s25, %s26
    %p30 = pneg %p24
    %p31 = scmp.eq.s32.totalorder %s15, 1
    %p32 = por %p30, %p31
    %p33 = scmp.ne.s32.totalorder %s25, %s28
    %p34 = scmp.eq.s32.totalorder %s15, 0
    %p35 = por %p33, %p34
    %p36 = scmp.ne.s32.totalorder %s25, %s28
    %p37 = scmp.eq.s32.totalorder %s20, 1
    %p38 = por %p36, %p37
    %p39 = scmp.ne.s32.totalorder %s28, %s29
    %p40 = scmp.eq.s32.totalorder %s20, 0
    %p41 = por %p39, %p40
    %p42 = scmp.ne.s32.totalorder %s28, %s29
    %p43 = scmp.eq.s32.totalorder %s21, 1
    %p44 = por %p42, %p43
    %p46 = scmp.ne.s32.totalorder %s29, %s45
    %p47 = scmp.eq.s32.totalorder %s21, 0
    %p48 = por %p46, %p47
    %s50 = sadd.s32 %s49, 1
    %p53 = scmp.eq.s32.totalorder %s15, 1
    %p54 = scmp.ne.s32.totalorder %s49, %s51
    %p55 = scmp.eq.s32.totalorder %s15, 0
    %p56 = por %p54, %p55
    %p57 = scmp.ne.s32.totalorder %s49, %s51
    %p58 = scmp.eq.s32.totalorder %s20, 1
    %p59 = por %p57, %p58
    %p60 = scmp.ne.s32.totalorder %s51, %s52
    %p61 = scmp.eq.s32.totalorder %s20, 0
    %p62 = por %p60, %p61
    %p63 = scmp.ne.s32.totalorder %s51, %s52
    %p64 = scmp.eq.s32.totalorder %s21, 1
    %p65 = por %p63, %p64
    %p67 = scmp.ne.s32.totalorder %s52, %s66
    %p68 = scmp.eq.s32.totalorder %s21, 0
    %p69 = por %p67, %p68
    %s71 = sadd.s32 %s70, 1
    %p74 = scmp.eq.s32.totalorder %s15, 1
    %p75 = scmp.ne.s32.totalorder %s70, %s72
    %p76 = scmp.eq.s32.totalorder %s15, 0
    %p77 = por %p75, %p76
    %p78 = scmp.ne.s32.totalorder %s70, %s72
    %p79 = scmp.eq.s32.totalorder %s20, 1
    %p80 = por %p78, %p79
    %p81 = scmp.ne.s32.totalorder %s72, %s73
    %p82 = scmp.eq.s32.totalorder %s20, 0
    %p83 = por %p81, %p82
    %p84 = scmp.ne.s32.totalorder %s72, %s73
    %p85 = scmp.eq.s32.totalorder %s21, 1
    %p86 = por %p84, %p85
    %p88 = scmp.ne.s32.totalorder %s73, %s87
    %p89 = scmp.eq.s32.totalorder %s21, 0
    %p90 = por %p88, %p89
    %s92 = sadd.s32 %s91, 1
    %p95 = scmp.eq.s32.totalorder %s15, 1
    %p96 = scmp.ne.s32.totalorder %s91, %s93
    %p97 = scmp.eq.s32.totalorder %s15, 0
    %p98 = por %p96, %p97
    %p99 = scmp.ne.s32.totalorder %s91, %s93
    %p100 = scmp.eq.s32.totalorder %s20, 1
    %p101 = por %p99, %p100
    %p102 = scmp.ne.s32.totalorder %s93, %s94
    %p103 = scmp.eq.s32.totalorder %s20, 0
    %p104 = por %p102, %p103
    %p105 = scmp.ne.s32.totalorder %s93, %s94
    %p106 = scmp.eq.s32.totalorder %s21, 1
    %p107 = por %p105, %p106
    %p109 = scmp.ne.s32.totalorder %s94, %s108
    %p110 = scmp.eq.s32.totalorder %s21, 0
    %p111 = por %p109, %p110
    %s113 = sadd.s32 %s112, 1
    %p116 = scmp.eq.s32.totalorder %s15, 1
    %p117 = scmp.ne.s32.totalorder %s112, %s114
    %p118 = scmp.eq.s32.totalorder %s15, 0
    %p119 = por %p117, %p118
    %p120 = scmp.ne.s32.totalorder %s112, %s114
    %p121 = scmp.eq.s32.totalorder %s20, 1
    %p122 = por %p120, %p121
    %p123 = scmp.ne.s32.totalorder %s114, %s115
    %p124 = scmp.eq.s32.totalorder %s20, 0
    %p125 = por %p123, %p124
    %p126 = scmp.ne.s32.totalorder %s114, %s115
    %p127 = scmp.eq.s32.totalorder %s21, 1
    %p128 = por %p126, %p127
    %p130 = scmp.ne.s32.totalorder %s115, %s129
    %p131 = scmp.eq.s32.totalorder %s21, 0
    %p132 = por %p130, %p131
    %s134 = sadd.s32 %s133, 1
    %p137 = scmp.eq.s32.totalorder %s15, 1
    %p138 = scmp.ne.s32.totalorder %s133, %s135
    %p139 = scmp.eq.s32.totalorder %s15, 0
    %p140 = por %p138, %p139
    %p141 = scmp.ne.s32.totalorder %s133, %s135
    %p142 = scmp.eq.s32.totalorder %s20, 1
    %p143 = por %p141, %p142
    %p144 = scmp.ne.s32.totalorder %s135, %s136
    %p145 = scmp.eq.s32.totalorder %s20, 0
    %p146 = por %p144, %p145
    %p147 = scmp.ne.s32.totalorder %s135, %s136
    %p148 = scmp.eq.s32.totalorder %s21, 1
    %p149 = por %p147, %p148
    %p151 = scmp.ne.s32.totalorder %s136, %s150
    %p152 = scmp.eq.s32.totalorder %s21, 0
    %p153 = por %p151, %p152
    %s155 = sadd.s32 %s154, 1
    %p158 = scmp.eq.s32.totalorder %s15, 1
    %p159 = scmp.ne.s32.totalorder %s154, %s156
    %p160 = scmp.eq.s32.totalorder %s15, 0
    %p161 = por %p159, %p160
    %p162 = scmp.ne.s32.totalorder %s154, %s156
    %p163 = scmp.eq.s32.totalorder %s20, 1
    %p164 = por %p162, %p163
    %p165 = scmp.ne.s32.totalorder %s156, %s157
    %p166 = scmp.eq.s32.totalorder %s20, 0
    %p167 = por %p165, %p166
    %p168 = scmp.ne.s32.totalorder %s156, %s157
    %p169 = scmp.eq.s32.totalorder %s21, 1
    %p170 = por %p168, %p169
    %p172 = scmp.ne.s32.totalorder %s157, %s171
    %p173 = scmp.eq.s32.totalorder %s21, 0
    %p174 = por %p172, %p173
    %s176 = sadd.s32 %s175, 1
    %p179 = scmp.eq.s32.totalorder %s15, 1
    %p180 = scmp.ne.s32.totalorder %s175, %s177
    %p181 = scmp.eq.s32.totalorder %s15, 0
    %p182 = por %p180, %p181
    %p183 = scmp.ne.s32.totalorder %s175, %s177
    %p184 = scmp.eq.s32.totalorder %s20, 1
    %p185 = por %p183, %p184
    %p186 = scmp.ne.s32.totalorder %s177, %s178
    %p187 = scmp.eq.s32.totalorder %s20, 0
    %p188 = por %p186, %p187
    %p189 = scmp.ne.s32.totalorder %s177, %s178
    %p190 = scmp.eq.s32.totalorder %s21, 1
    %p191 = por %p189, %p190
    %p193 = scmp.ne.s32.totalorder %s178, %s192
    %p194 = scmp.eq.s32.totalorder %s21, 0
    %p195 = por %p193, %p194
    %s197 = sadd.s32 %s196, 1
    %p200 = scmp.eq.s32.totalorder %s15, 1
    %p201 = scmp.ne.s32.totalorder %s196, %s198
    %p202 = scmp.eq.s32.totalorder %s15, 0
    %p203 = por %p201, %p202
    %p204 = scmp.ne.s32.totalorder %s196, %s198
    %p205 = scmp.eq.s32.totalorder %s20, 1
    %p206 = por %p204, %p205
    %p207 = scmp.ne.s32.totalorder %s198, %s199
    %p208 = scmp.eq.s32.totalorder %s20, 0
    %p209 = por %p207, %p208
    %p210 = scmp.ne.s32.totalorder %s198, %s199
    %p211 = scmp.eq.s32.totalorder %s21, 1
    %p212 = por %p210, %p211
    %p214 = scmp.ne.s32.totalorder %s199, %s213
    %p215 = scmp.eq.s32.totalorder %s21, 0
    %p216 = por %p214, %p215
    %s217 = ssub.s32 %s15, %s22
    %p218 = scmp.eq.s32.totalorder %s217, 0
    %s220 = sadd.s32 %s219, 1
    %s221 = scalar_select %p218, %s219, %s220
    %p224 = pneg %p218
    %p225 = scmp.eq.s32.totalorder %s15, 1
    %p226 = por %p224, %p225
    %p227 = scmp.ne.s32.totalorder %s219, %s222
    %p228 = scmp.eq.s32.totalorder %s15, 0
    %p229 = por %p227, %p228
    %p230 = scmp.ne.s32.totalorder %s219, %s222
    %p231 = scmp.eq.s32.totalorder %s20, 1
    %p232 = por %p230, %p231
    %p233 = scmp.ne.s32.totalorder %s222, %s223
    %p234 = scmp.eq.s32.totalorder %s20, 0
    %p235 = por %p233, %p234
    %p236 = scmp.ne.s32.totalorder %s222, %s223
    %p237 = scmp.eq.s32.totalorder %s21, 1
    %p238 = por %p236, %p237
    %p240 = scmp.ne.s32.totalorder %s223, %s239
    %p241 = scmp.eq.s32.totalorder %s21, 0
    %p242 = por %p240, %p241
    %p243 = scmp.le.s32.totalorder 1, %s15
    %p244 = scmp.lt.s32.totalorder %s15, 3
    %p245 = pnand %p243, %p244
    %p246 = pneg %p245
    // Predicated region
    $region9: #{_lambda_.1} parent=5 // pred_check
      _
    $region10: #{_lambda_.1} parent=5 // pred_check_branch
      %248 = sbr.rel (%p245) target = $region12
    $region11: #{_lambda_.1} parent=5 // pred_region
      %s249 = ssub.s32 %s15, 1
      // Predicated region
      $region13: #{_lambda_.1} parent=11 // pred_check
        %p250 = pneg %p62
      $region14: #{_lambda_.1} parent=11 // pred_check_branch
        %252 = sbr.rel (%p250) target = $region16
      $region15: #{_lambda_.1} parent=11 // pred_region
        _
      $region16: #{_lambda_.1} parent=11 // pred_fallthru
        _
      // Predicated region
      $region17: #{_lambda_.1} parent=11 // pred_check
        %p253 = pneg %p83
      $region18: #{_lambda_.1} parent=11 // pred_check_branch
        %255 = sbr.rel (%p253) target = $region20
      $region19: #{_lambda_.1} parent=11 // pred_region
        _
      $region20: #{_lambda_.1} parent=11 // pred_fallthru
        _
      // Predicated region
      $region21: #{_lambda_.1} parent=11 // pred_check
        %p256 = pneg %p104
      $region22: #{_lambda_.1} parent=11 // pred_check_branch
        %258 = sbr.rel (%p256) target = $region24
      $region23: #{_lambda_.1} parent=11 // pred_region
        _
      $region24: #{_lambda_.1} parent=11 // pred_fallthru
        _
      // Predicated region
      $region25: #{_lambda_.1} parent=11 // pred_check
        %p259 = pneg %p125
      $region26: #{_lambda_.1} parent=11 // pred_check_branch
        %261 = sbr.rel (%p259) target = $region28
      $region27: #{_lambda_.1} parent=11 // pred_region
        _
      $region28: #{_lambda_.1} parent=11 // pred_fallthru
        _
      // Predicated region
      $region29: #{_lambda_.1} parent=11 // pred_check
        %p262 = pneg %p146
      $region30: #{_lambda_.1} parent=11 // pred_check_branch
        %264 = sbr.rel (%p262) target = $region32
      $region31: #{_lambda_.1} parent=11 // pred_region
        _
      $region32: #{_lambda_.1} parent=11 // pred_fallthru
        _
      // Predicated region
      $region33: #{_lambda_.1} parent=11 // pred_check
        %p265 = pneg %p167
      $region34: #{_lambda_.1} parent=11 // pred_check_branch
        %267 = sbr.rel (%p265) target = $region36
      $region35: #{_lambda_.1} parent=11 // pred_region
        _
      $region36: #{_lambda_.1} parent=11 // pred_fallthru
        _
      // Predicated region
      $region37: #{_lambda_.1} parent=11 // pred_check
        %p268 = pneg %p188
      $region38: #{_lambda_.1} parent=11 // pred_check_branch
        %270 = sbr.rel (%p268) target = $region40
      $region39: #{_lambda_.1} parent=11 // pred_region
        _
      $region40: #{_lambda_.1} parent=11 // pred_fallthru
        _
      // Predicated region
      $region41: #{_lambda_.1} parent=11 // pred_check
        %p271 = pneg %p209
      $region42: #{_lambda_.1} parent=11 // pred_check_branch
        %273 = sbr.rel (%p271) target = $region44
      $region43: #{_lambda_.1} parent=11 // pred_region
        _
      $region44: #{_lambda_.1} parent=11 // pred_fallthru
        _
    $region12: #{_lambda_.1} parent=5 // pred_fallthru
      _
    %p274 = scmp.lt.s32.totalorder %s15, 2
    // Predicated region
    $region45: #{_lambda_.1} parent=5 // pred_check
      %p275 = pneg %p274
    $region46: #{_lambda_.1} parent=5 // pred_check_branch
      %277 = sbr.rel (%p275) target = $region48
    $region47: #{_lambda_.1} parent=5 // pred_region
      // Predicated region
      $region49: #{_lambda_.1} parent=47 // pred_check
        %p278 = pneg %p35
      $region50: #{_lambda_.1} parent=47 // pred_check_branch
        %280 = sbr.rel (%p278) target = $region52
      $region51: #{_lambda_.1} parent=47 // pred_region
        %p281 = scmp.lt.s32.totalorder %s15, 1
        %s282 = scalar_select %p281, %s15, 1
        %s283 = smul.addr %s282, 16
        %s284 = smul.addr %s283, 4
        %s285 = scalar_lea.vmem %s0, %s284
      $region52: #{_lambda_.1} parent=47 // pred_fallthru
        _
    $region48: #{_lambda_.1} parent=5 // pred_fallthru
      _
    %p286 = scmp.le.s32.totalorder 1, %s15
    %p287 = scmp.lt.s32.totalorder %s15, 3
    %p288 = pnand %p286, %p287
    %p289 = pneg %p288
    // Predicated region
    $region53: #{_lambda_.1} parent=5 // pred_check
      _
    $region54: #{_lambda_.1} parent=5 // pred_check_branch
      %291 = sbr.rel (%p288) target = $region56
    $region55: #{_lambda_.1} parent=5 // pred_region
      %s292 = ssub.s32 %s15, 1
      %p293 = scmp.lt.s32.totalorder %s20, 1
      %s294 = scalar_select %p293, %s20, 1
      %s295 = smul.addr %s294, 16
      %s296 = smul.addr %s295, 4
      %s297 = scalar_lea.vmem %s0, %s296
      %p298 = pneg %p41
      %p299 = pneg %p38
      %p300 = pneg %p62
      %p301 = pneg %p59
      %p302 = pneg %p83
      %p303 = pneg %p80
      %p304 = pneg %p104
      %p305 = pneg %p101
      %p306 = pneg %p125
      %p307 = pneg %p122
      %p308 = pneg %p146
      %p309 = pneg %p143
      %p310 = pneg %p167
      %p311 = pneg %p164
      %p312 = pneg %p188
      %p313 = pneg %p185
      %p314 = pneg %p209
      %p315 = pneg %p206
      %p316 = pneg %p235
      %p317 = pneg %p232
      %p318 = scmp.lt.s32.totalorder %s20, 1
      %s319 = scalar_select %p318, %s20, 1
      %s320 = smul.addr %s319, 8
      %s321 = scalar_lea.vmem %s9, %s320
      %p322 = scmp.lt.s32.totalorder %s20, 1
      %s323 = scalar_select %p322, %s20, 1
      %s324 = smul.addr %s323, 16
      %s325 = smul.addr %s324, 4
      %s326 = scalar_lea.vmem %s0, %s325
      %p327 = scmp.lt.s32.totalorder %s20, 1
      %s328 = scalar_select %p327, %s20, 1
      %s329 = smul.addr %s328, 8
      %s330 = scalar_lea.vmem %s9, %s329
      %v332 = vld [vmem:[%s326] sm:$0xff]
      %v333 = vld [vmem:[%s326 + $0x8] sm:$0xff]
      %v334 = vld [vmem:[%s326 + $0x10] sm:$0xff]
      %v335 = vld [vmem:[%s326 + $0x18] sm:$0xff]
      %v336 = vld [vmem:[%s326 + $0x20] sm:$0xff]
      %v337 = vld [vmem:[%s326 + $0x28] sm:$0xff]
      %v338 = vld [vmem:[%s326 + $0x30] sm:$0xff]
      %v339 = vld [vmem:[%s326 + $0x38] sm:$0xff]
      %v340 = vld [vmem:[%s1] sm:$0xf]
      %v341 = vld [vmem:[%s1 + $0x4] sm:$0xf]
      %v342 = vld [vmem:[%s1 + $0x8] sm:$0xf]
      %v343 = vld [vmem:[%s1 + $0xc] sm:$0xf]
      %v344 = vld [vmem:[%s1 + $0x10] sm:$0xf]
      %v345 = vld [vmem:[%s1 + $0x14] sm:$0xf]
      %v346 = vld [vmem:[%s1 + $0x18] sm:$0xf]
      %v347 = vld [vmem:[%s1 + $0x1c] sm:$0xf]
      %v348 = vld [vmem:[%s1 + $0x20] sm:$0xf]
      %v349 = vld [vmem:[%s1 + $0x24] sm:$0xf]
      %v350 = vld [vmem:[%s1 + $0x28] sm:$0xf]
      %v351 = vld [vmem:[%s1 + $0x2c] sm:$0xf]
      %v352 = vld [vmem:[%s1 + $0x30] sm:$0xf]
      %v353 = vld [vmem:[%s1 + $0x34] sm:$0xf]
      %v354 = vld [vmem:[%s1 + $0x38] sm:$0xf]
      %v355 = vld [vmem:[%s1 + $0x3c] sm:$0xf]
      %v356 = vld [vmem:[%s1 + $0x40] sm:$0xf]
      %v357 = vld [vmem:[%s1 + $0x44] sm:$0xf]
      %v358 = vld [vmem:[%s1 + $0x48] sm:$0xf]
      %v359 = vld [vmem:[%s1 + $0x4c] sm:$0xf]
      %v360 = vld [vmem:[%s1 + $0x50] sm:$0xf]
      %v361 = vld [vmem:[%s1 + $0x54] sm:$0xf]
      %v362 = vld [vmem:[%s1 + $0x58] sm:$0xf]
      %v363 = vld [vmem:[%s1 + $0x5c] sm:$0xf]
      %v364 = vld [vmem:[%s1 + $0x60] sm:$0xf]
      %v365 = vld [vmem:[%s1 + $0x64] sm:$0xf]
      %v366 = vld [vmem:[%s1 + $0x68] sm:$0xf]
      %v367 = vld [vmem:[%s1 + $0x6c] sm:$0xf]
      %v368 = vld [vmem:[%s1 + $0x70] sm:$0xf]
      %v369 = vld [vmem:[%s1 + $0x74] sm:$0xf]
      %v370 = vld [vmem:[%s1 + $0x78] sm:$0xf]
      %v371 = vld [vmem:[%s1 + $0x7c] sm:$0xf]
      %v372 = vld [vmem:[%s2] sm:$0x1]
      %v374 = vlaneseq
      %v375 = vshrl.u32 %v374, 7
      %v376 = vsub.s32 0, %v375
      %v377 = vrot.slane %v372, %v376
      %v387 = vunpack.c.l.b16 %v332
      %v388 = vunpack.c.h.b16 %v332
      %v389 = vunpack.c.l.b16 %v333
      %v390 = vunpack.c.h.b16 %v333
      %v391 = vunpack.c.l.b16 %v334
      %v392 = vunpack.c.h.b16 %v334
      %v393 = vunpack.c.l.b16 %v335
      %v394 = vunpack.c.h.b16 %v335
      %v395 = vunpack.c.l.b16 %v336
      %v396 = vunpack.c.h.b16 %v336
      %v397 = vunpack.c.l.b16 %v337
      %v398 = vunpack.c.h.b16 %v337
      %v399 = vunpack.c.l.b16 %v338
      %v400 = vunpack.c.h.b16 %v338
      %v401 = vunpack.c.l.b16 %v339
      %v402 = vunpack.c.h.b16 %v339
      %v403 = vpack.c.b16 %v389, %v387
      %v404 = vpack.c.b16 %v390, %v388
      %v405 = vpack.c.b16 %v393, %v391
      %v406 = vpack.c.b16 %v394, %v392
      %v407 = vpack.c.b16 %v397, %v395
      %v408 = vpack.c.b16 %v398, %v396
      %v409 = vpack.c.b16 %v401, %v399
      %v410 = vpack.c.b16 %v402, %v400
      %v451 = vunpack.c.l.b16 %v340
      %v452 = vunpack.c.l.b16 %v341
      %v453 = vunpack.c.l.b16 %v342
      %v454 = vunpack.c.l.b16 %v343
      %v455 = vunpack.c.l.b16 %v344
      %v456 = vunpack.c.l.b16 %v345
      %v457 = vunpack.c.l.b16 %v346
      %v458 = vunpack.c.l.b16 %v347
      %v459 = vunpack.c.l.b16 %v348
      %v460 = vunpack.c.l.b16 %v349
      %v461 = vunpack.c.l.b16 %v350
      %v462 = vunpack.c.l.b16 %v351
      %v463 = vunpack.c.l.b16 %v352
      %v464 = vunpack.c.l.b16 %v353
      %v465 = vunpack.c.l.b16 %v354
      %v466 = vunpack.c.l.b16 %v355
      %v467 = vunpack.c.l.b16 %v356
      %v468 = vunpack.c.l.b16 %v357
      %v469 = vunpack.c.l.b16 %v358
      %v470 = vunpack.c.l.b16 %v359
      %v471 = vunpack.c.l.b16 %v360
      %v472 = vunpack.c.l.b16 %v361
      %v473 = vunpack.c.l.b16 %v362
      %v474 = vunpack.c.l.b16 %v363
      %v475 = vunpack.c.l.b16 %v364
      %v476 = vunpack.c.l.b16 %v365
      %v477 = vunpack.c.l.b16 %v366
      %v478 = vunpack.c.l.b16 %v367
      %v479 = vunpack.c.l.b16 %v368
      %v480 = vunpack.c.l.b16 %v369
      %v481 = vunpack.c.l.b16 %v370
      %v482 = vunpack.c.l.b16 %v371
      %v483 = vpack.c.b16 %v452, %v451
      %v484 = vpack.c.b16 %v454, %v453
      %v485 = vpack.c.b16 %v456, %v455
      %v486 = vpack.c.b16 %v458, %v457
      %v487 = vpack.c.b16 %v460, %v459
      %v488 = vpack.c.b16 %v462, %v461
      %v489 = vpack.c.b16 %v464, %v463
      %v490 = vpack.c.b16 %v466, %v465
      %v491 = vpack.c.b16 %v468, %v467
      %v492 = vpack.c.b16 %v470, %v469
      %v493 = vpack.c.b16 %v472, %v471
      %v494 = vpack.c.b16 %v474, %v473
      %v495 = vpack.c.b16 %v476, %v475
      %v496 = vpack.c.b16 %v478, %v477
      %v497 = vpack.c.b16 %v480, %v479
      %v498 = vpack.c.b16 %v482, %v481
      %515 = vmatprep.subr.bf16.mxu0 0
      %516 = vmatpush1.bf16.msra.mxu0 %v490
      %517 = vmatprep.subr.bf16.mxu0 0
      %518 = vmatpush1.bf16.msra.mxu0 %v489
      %519 = vmatprep.subr.bf16.mxu0 0
      %520 = vmatpush1.bf16.msra.mxu0 %v488
      %521 = vmatprep.subr.bf16.mxu0 0
      %522 = vmatpush1.bf16.msra.mxu0 %v487
      %523 = vmatprep.subr.bf16.mxu0 0
      %524 = vmatpush1.bf16.msra.mxu0 %v486
      %525 = vmatprep.subr.bf16.mxu0 0
      %526 = vmatpush1.bf16.msra.mxu0 %v485
      %527 = vmatprep.subr.bf16.mxu0 0
      %528 = vmatpush1.bf16.msra.mxu0 %v484
      %529 = vmatprep.subr.bf16.mxu0 0
      %530 = vmatpush1.bf16.msra.mxu0 %v483
      %531 = vmatprep.subr.bf16.mxu0 0
      %532 = vmatpush2.bf16.msra.mxu0 %v498
      %533 = vmatprep.subr.bf16.mxu0 0
      %534 = vmatpush2.bf16.msra.mxu0 %v497
      %535 = vmatprep.subr.bf16.mxu0 0
      %536 = vmatpush2.bf16.msra.mxu0 %v496
      %537 = vmatprep.subr.bf16.mxu0 0
      %538 = vmatpush2.bf16.msra.mxu0 %v495
      %539 = vmatprep.subr.bf16.mxu0 0
      %540 = vmatpush2.bf16.msra.mxu0 %v494
      %541 = vmatprep.subr.bf16.mxu0 0
      %542 = vmatpush2.bf16.msra.mxu0 %v493
      %543 = vmatprep.subr.bf16.mxu0 0
      %544 = vmatpush2.bf16.msra.mxu0 %v492
      %545 = vmatprep.subr.bf16.mxu0 0
      %546 = vmatpush2.bf16.msra.mxu0 %v491
      %547 = vmatprep.mubr.bf16.mxu0 %v404
      %548 = vmatmul.mubr.bf16.gmra.mxu0 %v403
      %v549 = vpop.f32.mrf.mxu0
      %v550 = vadd.f32 %v377, %v549
      %v551 = vpop.f32.mrf.mxu0
      %v552 = vpop.f32.mrf.mxu0
      %v553 = vadd.f32 %v377, %v552
      %v554 = vpop.f32.mrf.mxu0
      %555 = vmatprep.mubr.bf16.mxu0 %v406
      %556 = vmatmul.mubr.bf16.gmra.mxu0 %v405
      %v557 = vpop.f32.mrf.mxu0
      %v558 = vadd.f32 %v377, %v557
      %v559 = vpop.f32.mrf.mxu0
      %v560 = vpop.f32.mrf.mxu0
      %v561 = vadd.f32 %v377, %v560
      %v562 = vpop.f32.mrf.mxu0
      %563 = vmatprep.mubr.bf16.mxu0 %v408
      %564 = vmatmul.mubr.bf16.gmra.mxu0 %v407
      %v565 = vpop.f32.mrf.mxu0
      %v566 = vadd.f32 %v377, %v565
      %v567 = vpop.f32.mrf.mxu0
      %v568 = vpop.f32.mrf.mxu0
      %v569 = vadd.f32 %v377, %v568
      %v570 = vpop.f32.mrf.mxu0
      %571 = vmatprep.mubr.bf16.mxu0 %v410
      %572 = vmatmul.mubr.bf16.gmra.mxu0 %v409
      %v573 = vpop.f32.mrf.mxu0
      %v574 = vadd.f32 %v377, %v573
      %v575 = vpop.f32.mrf.mxu0
      %v576 = vpop.f32.mrf.mxu0
      %v577 = vadd.f32 %v377, %v576
      %v578 = vpop.f32.mrf.mxu0
      %579 = vdwg.mxu0
      %v580 = vmax.f32 %v550, 0.0
      %v581 = vmax.f32 %v553, 0.0
      %v582 = vmax.f32 %v558, 0.0
      %v583 = vmax.f32 %v561, 0.0
      %v584 = vmax.f32 %v566, 0.0
      %v585 = vmax.f32 %v569, 0.0
      %v586 = vmax.f32 %v574, 0.0
      %v587 = vmax.f32 %v577, 0.0
      %v588 = vpack.c.bf16 %v581, %v580
      %v589 = vpack.c.bf16 %v583, %v582
      %v590 = vpack.c.bf16 %v585, %v584
      %v591 = vpack.c.bf16 %v587, %v586
      %v592 = vld [vmem:[%s3] sm:$0xf]
      %v593 = vld [vmem:[%s3 + $0x4] sm:$0xf]
      %v596 = vunpack.c.l.b16 %v592
      %v597 = vunpack.c.l.b16 %v593
      %v598 = vpack.c.b16 %v597, %v596
      %vm599 = vcmask 523264
      %v601 = vsel %vm599, %v598, 0
      %603 = vmatprep.subr.bf16.mxu0 0
      %604 = vmatpush1.bf16.msra.mxu0 0
      %605 = vmatprep.subr.bf16.mxu0 0
      %606 = vmatpush1.bf16.msra.mxu0 0
      %607 = vmatprep.subr.bf16.mxu0 0
      %608 = vmatpush1.bf16.msra.mxu0 0
      %609 = vmatprep.subr.bf16.mxu0 0
      %610 = vmatpush1.bf16.msra.mxu0 0
      %611 = vmatprep.subr.bf16.mxu0 0
      %612 = vmatpush1.bf16.msra.mxu0 %v591
      %613 = vmatprep.subr.bf16.mxu0 0
      %614 = vmatpush1.bf16.msra.mxu0 %v590
      %615 = vmatprep.subr.bf16.mxu0 0
      %616 = vmatpush1.bf16.msra.mxu0 %v589
      %617 = vmatprep.subr.bf16.mxu0 0
      %618 = vmatpush1.bf16.msra.mxu0 %v588
      %619 = vmatprep.subr.bf16.mxu0 0
      %620 = vmatpush2.bf16.msra.mxu0 0
      %621 = vmatprep.subr.bf16.mxu0 0
      %622 = vmatpush2.bf16.msra.mxu0 0
      %623 = vmatprep.subr.bf16.mxu0 0
      %624 = vmatpush2.bf16.msra.mxu0 0
      %625 = vmatprep.subr.bf16.mxu0 0
      %626 = vmatpush2.bf16.msra.mxu0 0
      %627 = vmatprep.subr.bf16.mxu0 0
      %628 = vmatpush2.bf16.msra.mxu0 0
      %629 = vmatprep.subr.bf16.mxu0 0
      %630 = vmatpush2.bf16.msra.mxu0 0
      %631 = vmatprep.subr.bf16.mxu0 0
      %632 = vmatpush2.bf16.msra.mxu0 0
      %633 = vmatprep.subr.bf16.mxu0 0
      %634 = vmatpush2.bf16.msra.mxu0 0
      %635 = vmatprep.mubr.bf16.mxu0 0
      %636 = vmatmul.mubr.bf16.gmra.mxu0 %v601
      %v637 = vpop.f32.mrf.mxu0
      %v638 = vadd.f32 0.0, %v637
      %v639 = vpop.f32.mrf.mxu0
      %v640 = vpop.f32.mrf.mxu0
      %v641 = vadd.f32 0.0, %v640
      %v642 = vpop.f32.mrf.mxu0
      %643 = vdwg.mxu0
      %v644 = vpack.c.bf16 %v641, %v638
      %v645 = vld [vmem:[%s4] sm:$0xf]
      %v646 = vld [vmem:[%s4 + $0x4] sm:$0xf]
      %v647 = vld [vmem:[%s4 + $0x8] sm:$0xf]
      %v648 = vld [vmem:[%s4 + $0xc] sm:$0xf]
      %s649 = scalar_lea.vmem %s3, 8
      %v650 = vld [vmem:[%s649] sm:$0xf]
      %v651 = vld [vmem:[%s649 + $0x4] sm:$0xf]
      %v654 = vunpack.c.l.b16 %v650
      %v655 = vunpack.c.l.b16 %v651
      %v656 = vpack.c.b16 %v655, %v654
      %v658 = vsel %vm599, %v656, 0
      %660 = vmatprep.subr.bf16.mxu0 0
      %661 = vmatpush1.bf16.msra.mxu0 0
      %662 = vmatprep.subr.bf16.mxu0 0
      %663 = vmatpush1.bf16.msra.mxu0 0
      %664 = vmatprep.subr.bf16.mxu0 0
      %665 = vmatpush1.bf16.msra.mxu0 0
      %666 = vmatprep.subr.bf16.mxu0 0
      %667 = vmatpush1.bf16.msra.mxu0 0
      %668 = vmatprep.subr.bf16.mxu0 0
      %669 = vmatpush1.bf16.msra.mxu0 %v591
      %670 = vmatprep.subr.bf16.mxu0 0
      %671 = vmatpush1.bf16.msra.mxu0 %v590
      %672 = vmatprep.subr.bf16.mxu0 0
      %673 = vmatpush1.bf16.msra.mxu0 %v589
      %674 = vmatprep.subr.bf16.mxu0 0
      %675 = vmatpush1.bf16.msra.mxu0 %v588
      %676 = vmatprep.subr.bf16.mxu0 0
      %677 = vmatpush2.bf16.msra.mxu0 0
      %678 = vmatprep.subr.bf16.mxu0 0
      %679 = vmatpush2.bf16.msra.mxu0 0
      %680 = vmatprep.subr.bf16.mxu0 0
      %681 = vmatpush2.bf16.msra.mxu0 0
      %682 = vmatprep.subr.bf16.mxu0 0
      %683 = vmatpush2.bf16.msra.mxu0 0
      %684 = vmatprep.subr.bf16.mxu0 0
      %685 = vmatpush2.bf16.msra.mxu0 0
      %686 = vmatprep.subr.bf16.mxu0 0
      %687 = vmatpush2.bf16.msra.mxu0 0
      %688 = vmatprep.subr.bf16.mxu0 0
      %689 = vmatpush2.bf16.msra.mxu0 0
      %690 = vmatprep.subr.bf16.mxu0 0
      %691 = vmatpush2.bf16.msra.mxu0 0
      %692 = vmatprep.mubr.bf16.mxu0 0
      %693 = vmatmul.mubr.bf16.gmra.mxu0 %v658
      %v694 = vpop.f32.mrf.mxu0
      %v695 = vadd.f32 0.0, %v694
      %v696 = vpop.f32.mrf.mxu0
      %v697 = vpop.f32.mrf.mxu0
      %v698 = vadd.f32 0.0, %v697
      %v699 = vpop.f32.mrf.mxu0
      %700 = vdwg.mxu0
      %v701 = vpack.c.bf16 %v698, %v695
      %s702 = scalar_lea.vmem %s4, 16
      %v703 = vld [vmem:[%s702] sm:$0xf]
      %v704 = vld [vmem:[%s702 + $0x4] sm:$0xf]
      %v705 = vld [vmem:[%s702 + $0x8] sm:$0xf]
      %v706 = vld [vmem:[%s702 + $0xc] sm:$0xf]
      %v711 = vunpack.c.l.b16 %v703
      %v712 = vunpack.c.l.b16 %v704
      %v713 = vunpack.c.l.b16 %v705
      %v714 = vunpack.c.l.b16 %v706
      %v715 = vpack.c.b16 %v712, %v711
      %v716 = vpack.c.b16 %v714, %v713
      %vm719 = vcmask 261120
      %v721 = vsel %vm719, %v701, 0
      %723 = vmatprep.subr.bf16.mxu0 0
      %724 = vmatpush1.bf16.msra.mxu0 0
      %725 = vmatprep.subr.bf16.mxu0 0
      %726 = vmatpush1.bf16.msra.mxu0 0
      %727 = vmatprep.subr.bf16.mxu0 0
      %728 = vmatpush1.bf16.msra.mxu0 0
      %729 = vmatprep.subr.bf16.mxu0 0
      %730 = vmatpush1.bf16.msra.mxu0 0
      %731 = vmatprep.subr.bf16.mxu0 0
      %732 = vmatpush1.bf16.msra.mxu0 0
      %733 = vmatprep.subr.bf16.mxu0 0
      %734 = vmatpush1.bf16.msra.mxu0 0
      %735 = vmatprep.subr.bf16.mxu0 0
      %736 = vmatpush1.bf16.msra.mxu0 %v716
      %737 = vmatprep.subr.bf16.mxu0 0
      %738 = vmatpush1.bf16.msra.mxu0 %v715
      %739 = vmatprep.subr.bf16.mxu0 0
      %740 = vmatpush2.bf16.msra.mxu0 0
      %741 = vmatprep.subr.bf16.mxu0 0
      %742 = vmatpush2.bf16.msra.mxu0 0
      %743 = vmatprep.subr.bf16.mxu0 0
      %744 = vmatpush2.bf16.msra.mxu0 0
      %745 = vmatprep.subr.bf16.mxu0 0
      %746 = vmatpush2.bf16.msra.mxu0 0
      %747 = vmatprep.subr.bf16.mxu0 0
      %748 = vmatpush2.bf16.msra.mxu0 0
      %749 = vmatprep.subr.bf16.mxu0 0
      %750 = vmatpush2.bf16.msra.mxu0 0
      %751 = vmatprep.subr.bf16.mxu0 0
      %752 = vmatpush2.bf16.msra.mxu0 0
      %753 = vmatprep.subr.bf16.mxu0 0
      %754 = vmatpush2.bf16.msra.mxu0 0
      %755 = vmatprep.mubr.bf16.mxu0 0
      %756 = vmatmul.mubr.bf16.gmra.mxu0 %v721
      %v757 = vpop.f32.mrf.mxu0
      %v758 = vadd.f32 0.0, %v757
      %v759 = vpop.f32.mrf.mxu0
      %v760 = vpop.f32.mrf.mxu0
      %v761 = vadd.f32 0.0, %v760
      %v762 = vpop.f32.mrf.mxu0
      %763 = vdwg.mxu0
      %v768 = vunpack.c.l.b16 %v645
      %v769 = vunpack.c.l.b16 %v646
      %v770 = vunpack.c.l.b16 %v647
      %v771 = vunpack.c.l.b16 %v648
      %v772 = vpack.c.b16 %v769, %v768
      %v773 = vpack.c.b16 %v771, %v770
      %v777 = vsel %vm719, %v644, 0
      %779 = vmatprep.subr.bf16.mxu0 0
      %780 = vmatpush1.bf16.msra.mxu0 0
      %781 = vmatprep.subr.bf16.mxu0 0
      %782 = vmatpush1.bf16.msra.mxu0 0
      %783 = vmatprep.subr.bf16.mxu0 0
      %784 = vmatpush1.bf16.msra.mxu0 0
      %785 = vmatprep.subr.bf16.mxu0 0
      %786 = vmatpush1.bf16.msra.mxu0 0
      %787 = vmatprep.subr.bf16.mxu0 0
      %788 = vmatpush1.bf16.msra.mxu0 0
      %789 = vmatprep.subr.bf16.mxu0 0
      %790 = vmatpush1.bf16.msra.mxu0 0
      %791 = vmatprep.subr.bf16.mxu0 0
      %792 = vmatpush1.bf16.msra.mxu0 %v773
      %793 = vmatprep.subr.bf16.mxu0 0
      %794 = vmatpush1.bf16.msra.mxu0 %v772
      %795 = vmatprep.subr.bf16.mxu0 0
      %796 = vmatpush2.bf16.msra.mxu0 0
      %797 = vmatprep.subr.bf16.mxu0 0
      %798 = vmatpush2.bf16.msra.mxu0 0
      %799 = vmatprep.subr.bf16.mxu0 0
      %800 = vmatpush2.bf16.msra.mxu0 0
      %801 = vmatprep.subr.bf16.mxu0 0
      %802 = vmatpush2.bf16.msra.mxu0 0
      %803 = vmatprep.subr.bf16.mxu0 0
      %804 = vmatpush2.bf16.msra.mxu0 0
      %805 = vmatprep.subr.bf16.mxu0 0
      %806 = vmatpush2.bf16.msra.mxu0 0
      %807 = vmatprep.subr.bf16.mxu0 0
      %808 = vmatpush2.bf16.msra.mxu0 0
      %809 = vmatprep.subr.bf16.mxu0 0
      %810 = vmatpush2.bf16.msra.mxu0 0
      %811 = vmatprep.mubr.bf16.mxu0 0
      %812 = vmatmul.mubr.bf16.gmra.mxu0 %v777
      %v813 = vpop.f32.mrf.mxu0
      %v814 = vadd.f32 %v758, %v813
      %v815 = vpop.f32.mrf.mxu0
      %v816 = vpop.f32.mrf.mxu0
      %v817 = vadd.f32 %v761, %v816
      %v818 = vpop.f32.mrf.mxu0
      %819 = vdwg.mxu0
      %s820 = scalar_lea.vmem %s3, 16
      %v821 = vld [vmem:[%s820] sm:$0xf]
      %v822 = vld [vmem:[%s820 + $0x4] sm:$0xf]
      %v825 = vunpack.c.l.b16 %v821
      %v826 = vunpack.c.l.b16 %v822
      %v827 = vpack.c.b16 %v826, %v825
      %v829 = vsel %vm599, %v827, 0
      %831 = vmatprep.subr.bf16.mxu0 0
      %832 = vmatpush1.bf16.msra.mxu0 0
      %833 = vmatprep.subr.bf16.mxu0 0
      %834 = vmatpush1.bf16.msra.mxu0 0
      %835 = vmatprep.subr.bf16.mxu0 0
      %836 = vmatpush1.bf16.msra.mxu0 0
      %837 = vmatprep.subr.bf16.mxu0 0
      %838 = vmatpush1.bf16.msra.mxu0 0
      %839 = vmatprep.subr.bf16.mxu0 0
      %840 = vmatpush1.bf16.msra.mxu0 %v591
      %841 = vmatprep.subr.bf16.mxu0 0
      %842 = vmatpush1.bf16.msra.mxu0 %v590
      %843 = vmatprep.subr.bf16.mxu0 0
      %844 = vmatpush1.bf16.msra.mxu0 %v589
      %845 = vmatprep.subr.bf16.mxu0 0
      %846 = vmatpush1.bf16.msra.mxu0 %v588
      %847 = vmatprep.subr.bf16.mxu0 0
      %848 = vmatpush2.bf16.msra.mxu0 0
      %849 = vmatprep.subr.bf16.mxu0 0
      %850 = vmatpush2.bf16.msra.mxu0 0
      %851 = vmatprep.subr.bf16.mxu0 0
      %852 = vmatpush2.bf16.msra.mxu0 0
      %853 = vmatprep.subr.bf16.mxu0 0
      %854 = vmatpush2.bf16.msra.mxu0 0
      %855 = vmatprep.subr.bf16.mxu0 0
      %856 = vmatpush2.bf16.msra.mxu0 0
      %857 = vmatprep.subr.bf16.mxu0 0
      %858 = vmatpush2.bf16.msra.mxu0 0
      %859 = vmatprep.subr.bf16.mxu0 0
      %860 = vmatpush2.bf16.msra.mxu0 0
      %861 = vmatprep.subr.bf16.mxu0 0
      %862 = vmatpush2.bf16.msra.mxu0 0
      %863 = vmatprep.mubr.bf16.mxu0 0
      %864 = vmatmul.mubr.bf16.gmra.mxu0 %v829
      %v865 = vpop.f32.mrf.mxu0
      %v866 = vadd.f32 0.0, %v865
      %v867 = vpop.f32.mrf.mxu0
      %v868 = vpop.f32.mrf.mxu0
      %v869 = vadd.f32 0.0, %v868
      %v870 = vpop.f32.mrf.mxu0
      %871 = vdwg.mxu0
      %v872 = vpack.c.bf16 %v869, %v866
      %s873 = scalar_lea.vmem %s4, 32
      %v874 = vld [vmem:[%s873] sm:$0xf]
      %v875 = vld [vmem:[%s873 + $0x4] sm:$0xf]
      %v876 = vld [vmem:[%s873 + $0x8] sm:$0xf]
      %v877 = vld [vmem:[%s873 + $0xc] sm:$0xf]
      %v882 = vunpack.c.l.b16 %v874
      %v883 = vunpack.c.l.b16 %v875
      %v884 = vunpack.c.l.b16 %v876
      %v885 = vunpack.c.l.b16 %v877
      %v886 = vpack.c.b16 %v883, %v882
      %v887 = vpack.c.b16 %v885, %v884
      %v891 = vsel %vm719, %v872, 0
      %893 = vmatprep.subr.bf16.mxu0 0
      %894 = vmatpush1.bf16.msra.mxu0 0
      %895 = vmatprep.subr.bf16.mxu0 0
      %896 = vmatpush1.bf16.msra.mxu0 0
      %897 = vmatprep.subr.bf16.mxu0 0
      %898 = vmatpush1.bf16.msra.mxu0 0
      %899 = vmatprep.subr.bf16.mxu0 0
      %900 = vmatpush1.bf16.msra.mxu0 0
      %901 = vmatprep.subr.bf16.mxu0 0
      %902 = vmatpush1.bf16.msra.mxu0 0
      %903 = vmatprep.subr.bf16.mxu0 0
      %904 = vmatpush1.bf16.msra.mxu0 0
      %905 = vmatprep.subr.bf16.mxu0 0
      %906 = vmatpush1.bf16.msra.mxu0 %v887
      %907 = vmatprep.subr.bf16.mxu0 0
      %908 = vmatpush1.bf16.msra.mxu0 %v886
      %909 = vmatprep.subr.bf16.mxu0 0
      %910 = vmatpush2.bf16.msra.mxu0 0
      %911 = vmatprep.subr.bf16.mxu0 0
      %912 = vmatpush2.bf16.msra.mxu0 0
      %913 = vmatprep.subr.bf16.mxu0 0
      %914 = vmatpush2.bf16.msra.mxu0 0
      %915 = vmatprep.subr.bf16.mxu0 0
      %916 = vmatpush2.bf16.msra.mxu0 0
      %917 = vmatprep.subr.bf16.mxu0 0
      %918 = vmatpush2.bf16.msra.mxu0 0
      %919 = vmatprep.subr.bf16.mxu0 0
      %920 = vmatpush2.bf16.msra.mxu0 0
      %921 = vmatprep.subr.bf16.mxu0 0
      %922 = vmatpush2.bf16.msra.mxu0 0
      %923 = vmatprep.subr.bf16.mxu0 0
      %924 = vmatpush2.bf16.msra.mxu0 0
      %925 = vmatprep.mubr.bf16.mxu0 0
      %926 = vmatmul.mubr.bf16.gmra.mxu0 %v891
      %v927 = vpop.f32.mrf.mxu0
      %v928 = vadd.f32 0.0, %v927
      %v929 = vpop.f32.mrf.mxu0
      %v930 = vpop.f32.mrf.mxu0
      %v931 = vadd.f32 0.0, %v930
      %v932 = vpop.f32.mrf.mxu0
      %933 = vdwg.mxu0
      %v934 = vadd.f32 %v814, %v928
      %v935 = vadd.f32 %v817, %v931
      %s936 = scalar_lea.vmem %s3, 24
      %v937 = vld [vmem:[%s936] sm:$0xf]
      %v938 = vld [vmem:[%s936 + $0x4] sm:$0xf]
      %v941 = vunpack.c.l.b16 %v937
      %v942 = vunpack.c.l.b16 %v938
      %v943 = vpack.c.b16 %v942, %v941
      %v945 = vsel %vm599, %v943, 0
      %947 = vmatprep.subr.bf16.mxu0 0
      %948 = vmatpush1.bf16.msra.mxu0 0
      %949 = vmatprep.subr.bf16.mxu0 0
      %950 = vmatpush1.bf16.msra.mxu0 0
      %951 = vmatprep.subr.bf16.mxu0 0
      %952 = vmatpush1.bf16.msra.mxu0 0
      %953 = vmatprep.subr.bf16.mxu0 0
      %954 = vmatpush1.bf16.msra.mxu0 0
      %955 = vmatprep.subr.bf16.mxu0 0
      %956 = vmatpush1.bf16.msra.mxu0 %v591
      %957 = vmatprep.subr.bf16.mxu0 0
      %958 = vmatpush1.bf16.msra.mxu0 %v590
      %959 = vmatprep.subr.bf16.mxu0 0
      %960 = vmatpush1.bf16.msra.mxu0 %v589
      %961 = vmatprep.subr.bf16.mxu0 0
      %962 = vmatpush1.bf16.msra.mxu0 %v588
      %963 = vmatprep.subr.bf16.mxu0 0
      %964 = vmatpush2.bf16.msra.mxu0 0
      %965 = vmatprep.subr.bf16.mxu0 0
      %966 = vmatpush2.bf16.msra.mxu0 0
      %967 = vmatprep.subr.bf16.mxu0 0
      %968 = vmatpush2.bf16.msra.mxu0 0
      %969 = vmatprep.subr.bf16.mxu0 0
      %970 = vmatpush2.bf16.msra.mxu0 0
      %971 = vmatprep.subr.bf16.mxu0 0
      %972 = vmatpush2.bf16.msra.mxu0 0
      %973 = vmatprep.subr.bf16.mxu0 0
      %974 = vmatpush2.bf16.msra.mxu0 0
      %975 = vmatprep.subr.bf16.mxu0 0
      %976 = vmatpush2.bf16.msra.mxu0 0
      %977 = vmatprep.subr.bf16.mxu0 0
      %978 = vmatpush2.bf16.msra.mxu0 0
      %979 = vmatprep.mubr.bf16.mxu0 0
      %980 = vmatmul.mubr.bf16.gmra.mxu0 %v945
      %v981 = vpop.f32.mrf.mxu0
      %v982 = vadd.f32 0.0, %v981
      %v983 = vpop.f32.mrf.mxu0
      %v984 = vpop.f32.mrf.mxu0
      %v985 = vadd.f32 0.0, %v984
      %v986 = vpop.f32.mrf.mxu0
      %987 = vdwg.mxu0
      %v988 = vpack.c.bf16 %v985, %v982
      %s989 = scalar_lea.vmem %s4, 48
      %v990 = vld [vmem:[%s989] sm:$0xf]
      %v991 = vld [vmem:[%s989 + $0x4] sm:$0xf]
      %v992 = vld [vmem:[%s989 + $0x8] sm:$0xf]
      %v993 = vld [vmem:[%s989 + $0xc] sm:$0xf]
      %v998 = vunpack.c.l.b16 %v990
      %v999 = vunpack.c.l.b16 %v991
      %v1000 = vunpack.c.l.b16 %v992
      %v1001 = vunpack.c.l.b16 %v993
      %v1002 = vpack.c.b16 %v999, %v998
      %v1003 = vpack.c.b16 %v1001, %v1000
      %v1007 = vsel %vm719, %v988, 0
      %1009 = vmatprep.subr.bf16.mxu0 0
      %1010 = vmatpush1.bf16.msra.mxu0 0
      %1011 = vmatprep.subr.bf16.mxu0 0
      %1012 = vmatpush1.bf16.msra.mxu0 0
      %1013 = vmatprep.subr.bf16.mxu0 0
      %1014 = vmatpush1.bf16.msra.mxu0 0
      %1015 = vmatprep.subr.bf16.mxu0 0
      %1016 = vmatpush1.bf16.msra.mxu0 0
      %1017 = vmatprep.subr.bf16.mxu0 0
      %1018 = vmatpush1.bf16.msra.mxu0 0
      %1019 = vmatprep.subr.bf16.mxu0 0
      %1020 = vmatpush1.bf16.msra.mxu0 0
      %1021 = vmatprep.subr.bf16.mxu0 0
      %1022 = vmatpush1.bf16.msra.mxu0 %v1003
      %1023 = vmatprep.subr.bf16.mxu0 0
      %1024 = vmatpush1.bf16.msra.mxu0 %v1002
      %1025 = vmatprep.subr.bf16.mxu0 0
      %1026 = vmatpush2.bf16.msra.mxu0 0
      %1027 = vmatprep.subr.bf16.mxu0 0
      %1028 = vmatpush2.bf16.msra.mxu0 0
      %1029 = vmatprep.subr.bf16.mxu0 0
      %1030 = vmatpush2.bf16.msra.mxu0 0
      %1031 = vmatprep.subr.bf16.mxu0 0
      %1032 = vmatpush2.bf16.msra.mxu0 0
      %1033 = vmatprep.subr.bf16.mxu0 0
      %1034 = vmatpush2.bf16.msra.mxu0 0
      %1035 = vmatprep.subr.bf16.mxu0 0
      %1036 = vmatpush2.bf16.msra.mxu0 0
      %1037 = vmatprep.subr.bf16.mxu0 0
      %1038 = vmatpush2.bf16.msra.mxu0 0
      %1039 = vmatprep.subr.bf16.mxu0 0
      %1040 = vmatpush2.bf16.msra.mxu0 0
      %1041 = vmatprep.mubr.bf16.mxu0 0
      %1042 = vmatmul.mubr.bf16.gmra.mxu0 %v1007
      %v1043 = vpop.f32.mrf.mxu0
      %v1044 = vadd.f32 0.0, %v1043
      %v1045 = vpop.f32.mrf.mxu0
      %v1046 = vpop.f32.mrf.mxu0
      %v1047 = vadd.f32 0.0, %v1046
      %v1048 = vpop.f32.mrf.mxu0
      %1049 = vdwg.mxu0
      %v1050 = vadd.f32 %v934, %v1044
      %v1051 = vadd.f32 %v935, %v1047
      %s1052 = scalar_lea.vmem %s3, 32
      %v1053 = vld [vmem:[%s1052] sm:$0xf]
      %v1054 = vld [vmem:[%s1052 + $0x4] sm:$0xf]
      %v1057 = vunpack.c.l.b16 %v1053
      %v1058 = vunpack.c.l.b16 %v1054
      %v1059 = vpack.c.b16 %v1058, %v1057
      %v1061 = vsel %vm599, %v1059, 0
      %1063 = vmatprep.subr.bf16.mxu0 0
      %1064 = vmatpush1.bf16.msra.mxu0 0
      %1065 = vmatprep.subr.bf16.mxu0 0
      %1066 = vmatpush1.bf16.msra.mxu0 0
      %1067 = vmatprep.subr.bf16.mxu0 0
      %1068 = vmatpush1.bf16.msra.mxu0 0
      %1069 = vmatprep.subr.bf16.mxu0 0
      %1070 = vmatpush1.bf16.msra.mxu0 0
      %1071 = vmatprep.subr.bf16.mxu0 0
      %1072 = vmatpush1.bf16.msra.mxu0 %v591
      %1073 = vmatprep.subr.bf16.mxu0 0
      %1074 = vmatpush1.bf16.msra.mxu0 %v590
      %1075 = vmatprep.subr.bf16.mxu0 0
      %1076 = vmatpush1.bf16.msra.mxu0 %v589
      %1077 = vmatprep.subr.bf16.mxu0 0
      %1078 = vmatpush1.bf16.msra.mxu0 %v588
      %1079 = vmatprep.subr.bf16.mxu0 0
      %1080 = vmatpush2.bf16.msra.mxu0 0
      %1081 = vmatprep.subr.bf16.mxu0 0
      %1082 = vmatpush2.bf16.msra.mxu0 0
      %1083 = vmatprep.subr.bf16.mxu0 0
      %1084 = vmatpush2.bf16.msra.mxu0 0
      %1085 = vmatprep.subr.bf16.mxu0 0
      %1086 = vmatpush2.bf16.msra.mxu0 0
      %1087 = vmatprep.subr.bf16.mxu0 0
      %1088 = vmatpush2.bf16.msra.mxu0 0
      %1089 = vmatprep.subr.bf16.mxu0 0
      %1090 = vmatpush2.bf16.msra.mxu0 0
      %1091 = vmatprep.subr.bf16.mxu0 0
      %1092 = vmatpush2.bf16.msra.mxu0 0
      %1093 = vmatprep.subr.bf16.mxu0 0
      %1094 = vmatpush2.bf16.msra.mxu0 0
      %1095 = vmatprep.mubr.bf16.mxu0 0
      %1096 = vmatmul.mubr.bf16.gmra.mxu0 %v1061
      %v1097 = vpop.f32.mrf.mxu0
      %v1098 = vadd.f32 0.0, %v1097
      %v1099 = vpop.f32.mrf.mxu0
      %v1100 = vpop.f32.mrf.mxu0
      %v1101 = vadd.f32 0.0, %v1100
      %v1102 = vpop.f32.mrf.mxu0
      %1103 = vdwg.mxu0
      %v1104 = vpack.c.bf16 %v1101, %v1098
      %s1105 = scalar_lea.vmem %s4, 64
      %v1106 = vld [vmem:[%s1105] sm:$0xf]
      %v1107 = vld [vmem:[%s1105 + $0x4] sm:$0xf]
      %v1108 = vld [vmem:[%s1105 + $0x8] sm:$0xf]
      %v1109 = vld [vmem:[%s1105 + $0xc] sm:$0xf]
      %v1114 = vunpack.c.l.b16 %v1106
      %v1115 = vunpack.c.l.b16 %v1107
      %v1116 = vunpack.c.l.b16 %v1108
      %v1117 = vunpack.c.l.b16 %v1109
      %v1118 = vpack.c.b16 %v1115, %v1114
      %v1119 = vpack.c.b16 %v1117, %v1116
      %v1123 = vsel %vm719, %v1104, 0
      %1125 = vmatprep.subr.bf16.mxu0 0
      %1126 = vmatpush1.bf16.msra.mxu0 0
      %1127 = vmatprep.subr.bf16.mxu0 0
      %1128 = vmatpush1.bf16.msra.mxu0 0
      %1129 = vmatprep.subr.bf16.mxu0 0
      %1130 = vmatpush1.bf16.msra.mxu0 0
      %1131 = vmatprep.subr.bf16.mxu0 0
      %1132 = vmatpush1.bf16.msra.mxu0 0
      %1133 = vmatprep.subr.bf16.mxu0 0
      %1134 = vmatpush1.bf16.msra.mxu0 0
      %1135 = vmatprep.subr.bf16.mxu0 0
      %1136 = vmatpush1.bf16.msra.mxu0 0
      %1137 = vmatprep.subr.bf16.mxu0 0
      %1138 = vmatpush1.bf16.msra.mxu0 %v1119
      %1139 = vmatprep.subr.bf16.mxu0 0
      %1140 = vmatpush1.bf16.msra.mxu0 %v1118
      %1141 = vmatprep.subr.bf16.mxu0 0
      %1142 = vmatpush2.bf16.msra.mxu0 0
      %1143 = vmatprep.subr.bf16.mxu0 0
      %1144 = vmatpush2.bf16.msra.mxu0 0
      %1145 = vmatprep.subr.bf16.mxu0 0
      %1146 = vmatpush2.bf16.msra.mxu0 0
      %1147 = vmatprep.subr.bf16.mxu0 0
      %1148 = vmatpush2.bf16.msra.mxu0 0
      %1149 = vmatprep.subr.bf16.mxu0 0
      %1150 = vmatpush2.bf16.msra.mxu0 0
      %1151 = vmatprep.subr.bf16.mxu0 0
      %1152 = vmatpush2.bf16.msra.mxu0 0
      %1153 = vmatprep.subr.bf16.mxu0 0
      %1154 = vmatpush2.bf16.msra.mxu0 0
      %1155 = vmatprep.subr.bf16.mxu0 0
      %1156 = vmatpush2.bf16.msra.mxu0 0
      %1157 = vmatprep.mubr.bf16.mxu0 0
      %1158 = vmatmul.mubr.bf16.gmra.mxu0 %v1123
      %v1159 = vpop.f32.mrf.mxu0
      %v1160 = vadd.f32 0.0, %v1159
      %v1161 = vpop.f32.mrf.mxu0
      %v1162 = vpop.f32.mrf.mxu0
      %v1163 = vadd.f32 0.0, %v1162
      %v1164 = vpop.f32.mrf.mxu0
      %1165 = vdwg.mxu0
      %v1166 = vadd.f32 %v1050, %v1160
      %v1167 = vadd.f32 %v1051, %v1163
      %s1168 = scalar_lea.vmem %s3, 40
      %v1169 = vld [vmem:[%s1168] sm:$0xf]
      %v1170 = vld [vmem:[%s1168 + $0x4] sm:$0xf]
      %v1173 = vunpack.c.l.b16 %v1169
      %v1174 = vunpack.c.l.b16 %v1170
      %v1175 = vpack.c.b16 %v1174, %v1173
      %v1177 = vsel %vm599, %v1175, 0
      %1179 = vmatprep.subr.bf16.mxu0 0
      %1180 = vmatpush1.bf16.msra.mxu0 0
      %1181 = vmatprep.subr.bf16.mxu0 0
      %1182 = vmatpush1.bf16.msra.mxu0 0
      %1183 = vmatprep.subr.bf16.mxu0 0
      %1184 = vmatpush1.bf16.msra.mxu0 0
      %1185 = vmatprep.subr.bf16.mxu0 0
      %1186 = vmatpush1.bf16.msra.mxu0 0
      %1187 = vmatprep.subr.bf16.mxu0 0
      %1188 = vmatpush1.bf16.msra.mxu0 %v591
      %1189 = vmatprep.subr.bf16.mxu0 0
      %1190 = vmatpush1.bf16.msra.mxu0 %v590
      %1191 = vmatprep.subr.bf16.mxu0 0
      %1192 = vmatpush1.bf16.msra.mxu0 %v589
      %1193 = vmatprep.subr.bf16.mxu0 0
      %1194 = vmatpush1.bf16.msra.mxu0 %v588
      %1195 = vmatprep.subr.bf16.mxu0 0
      %1196 = vmatpush2.bf16.msra.mxu0 0
      %1197 = vmatprep.subr.bf16.mxu0 0
      %1198 = vmatpush2.bf16.msra.mxu0 0
      %1199 = vmatprep.subr.bf16.mxu0 0
      %1200 = vmatpush2.bf16.msra.mxu0 0
      %1201 = vmatprep.subr.bf16.mxu0 0
      %1202 = vmatpush2.bf16.msra.mxu0 0
      %1203 = vmatprep.subr.bf16.mxu0 0
      %1204 = vmatpush2.bf16.msra.mxu0 0
      %1205 = vmatprep.subr.bf16.mxu0 0
      %1206 = vmatpush2.bf16.msra.mxu0 0
      %1207 = vmatprep.subr.bf16.mxu0 0
      %1208 = vmatpush2.bf16.msra.mxu0 0
      %1209 = vmatprep.subr.bf16.mxu0 0
      %1210 = vmatpush2.bf16.msra.mxu0 0
      %1211 = vmatprep.mubr.bf16.mxu0 0
      %1212 = vmatmul.mubr.bf16.gmra.mxu0 %v1177
      %v1213 = vpop.f32.mrf.mxu0
      %v1214 = vadd.f32 0.0, %v1213
      %v1215 = vpop.f32.mrf.mxu0
      %v1216 = vpop.f32.mrf.mxu0
      %v1217 = vadd.f32 0.0, %v1216
      %v1218 = vpop.f32.mrf.mxu0
      %1219 = vdwg.mxu0
      %v1220 = vpack.c.bf16 %v1217, %v1214
      %s1221 = scalar_lea.vmem %s4, 80
      %v1222 = vld [vmem:[%s1221] sm:$0xf]
      %v1223 = vld [vmem:[%s1221 + $0x4] sm:$0xf]
      %v1224 = vld [vmem:[%s1221 + $0x8] sm:$0xf]
      %v1225 = vld [vmem:[%s1221 + $0xc] sm:$0xf]
      %v1230 = vunpack.c.l.b16 %v1222
      %v1231 = vunpack.c.l.b16 %v1223
      %v1232 = vunpack.c.l.b16 %v1224
      %v1233 = vunpack.c.l.b16 %v1225
      %v1234 = vpack.c.b16 %v1231, %v1230
      %v1235 = vpack.c.b16 %v1233, %v1232
      %v1239 = vsel %vm719, %v1220, 0
      %1241 = vmatprep.subr.bf16.mxu0 0
      %1242 = vmatpush1.bf16.msra.mxu0 0
      %1243 = vmatprep.subr.bf16.mxu0 0
      %1244 = vmatpush1.bf16.msra.mxu0 0
      %1245 = vmatprep.subr.bf16.mxu0 0
      %1246 = vmatpush1.bf16.msra.mxu0 0
      %1247 = vmatprep.subr.bf16.mxu0 0
      %1248 = vmatpush1.bf16.msra.mxu0 0
      %1249 = vmatprep.subr.bf16.mxu0 0
      %1250 = vmatpush1.bf16.msra.mxu0 0
      %1251 = vmatprep.subr.bf16.mxu0 0
      %1252 = vmatpush1.bf16.msra.mxu0 0
      %1253 = vmatprep.subr.bf16.mxu0 0
      %1254 = vmatpush1.bf16.msra.mxu0 %v1235
      %1255 = vmatprep.subr.bf16.mxu0 0
      %1256 = vmatpush1.bf16.msra.mxu0 %v1234
      %1257 = vmatprep.subr.bf16.mxu0 0
      %1258 = vmatpush2.bf16.msra.mxu0 0
      %1259 = vmatprep.subr.bf16.mxu0 0
      %1260 = vmatpush2.bf16.msra.mxu0 0
      %1261 = vmatprep.subr.bf16.mxu0 0
      %1262 = vmatpush2.bf16.msra.mxu0 0
      %1263 = vmatprep.subr.bf16.mxu0 0
      %1264 = vmatpush2.bf16.msra.mxu0 0
      %1265 = vmatprep.subr.bf16.mxu0 0
      %1266 = vmatpush2.bf16.msra.mxu0 0
      %1267 = vmatprep.subr.bf16.mxu0 0
      %1268 = vmatpush2.bf16.msra.mxu0 0
      %1269 = vmatprep.subr.bf16.mxu0 0
      %1270 = vmatpush2.bf16.msra.mxu0 0
      %1271 = vmatprep.subr.bf16.mxu0 0
      %1272 = vmatpush2.bf16.msra.mxu0 0
      %1273 = vmatprep.mubr.bf16.mxu0 0
      %1274 = vmatmul.mubr.bf16.gmra.mxu0 %v1239
      %v1275 = vpop.f32.mrf.mxu0
      %v1276 = vadd.f32 0.0, %v1275
      %v1277 = vpop.f32.mrf.mxu0
      %v1278 = vpop.f32.mrf.mxu0
      %v1279 = vadd.f32 0.0, %v1278
      %v1280 = vpop.f32.mrf.mxu0
      %1281 = vdwg.mxu0
      %v1282 = vadd.f32 %v1166, %v1276
      %v1283 = vadd.f32 %v1167, %v1279
      %s1284 = scalar_lea.vmem %s3, 48
      %v1285 = vld [vmem:[%s1284] sm:$0xf]
      %v1286 = vld [vmem:[%s1284 + $0x4] sm:$0xf]
      %v1289 = vunpack.c.l.b16 %v1285
      %v1290 = vunpack.c.l.b16 %v1286
      %v1291 = vpack.c.b16 %v1290, %v1289
      %v1293 = vsel %vm599, %v1291, 0
      %1295 = vmatprep.subr.bf16.mxu0 0
      %1296 = vmatpush1.bf16.msra.mxu0 0
      %1297 = vmatprep.subr.bf16.mxu0 0
      %1298 = vmatpush1.bf16.msra.mxu0 0
      %1299 = vmatprep.subr.bf16.mxu0 0
      %1300 = vmatpush1.bf16.msra.mxu0 0
      %1301 = vmatprep.subr.bf16.mxu0 0
      %1302 = vmatpush1.bf16.msra.mxu0 0
      %1303 = vmatprep.subr.bf16.mxu0 0
      %1304 = vmatpush1.bf16.msra.mxu0 %v591
      %1305 = vmatprep.subr.bf16.mxu0 0
      %1306 = vmatpush1.bf16.msra.mxu0 %v590
      %1307 = vmatprep.subr.bf16.mxu0 0
      %1308 = vmatpush1.bf16.msra.mxu0 %v589
      %1309 = vmatprep.subr.bf16.mxu0 0
      %1310 = vmatpush1.bf16.msra.mxu0 %v588
      %1311 = vmatprep.subr.bf16.mxu0 0
      %1312 = vmatpush2.bf16.msra.mxu0 0
      %1313 = vmatprep.subr.bf16.mxu0 0
      %1314 = vmatpush2.bf16.msra.mxu0 0
      %1315 = vmatprep.subr.bf16.mxu0 0
      %1316 = vmatpush2.bf16.msra.mxu0 0
      %1317 = vmatprep.subr.bf16.mxu0 0
      %1318 = vmatpush2.bf16.msra.mxu0 0
      %1319 = vmatprep.subr.bf16.mxu0 0
      %1320 = vmatpush2.bf16.msra.mxu0 0
      %1321 = vmatprep.subr.bf16.mxu0 0
      %1322 = vmatpush2.bf16.msra.mxu0 0
      %1323 = vmatprep.subr.bf16.mxu0 0
      %1324 = vmatpush2.bf16.msra.mxu0 0
      %1325 = vmatprep.subr.bf16.mxu0 0
      %1326 = vmatpush2.bf16.msra.mxu0 0
      %1327 = vmatprep.mubr.bf16.mxu0 0
      %1328 = vmatmul.mubr.bf16.gmra.mxu0 %v1293
      %v1329 = vpop.f32.mrf.mxu0
      %v1330 = vadd.f32 0.0, %v1329
      %v1331 = vpop.f32.mrf.mxu0
      %v1332 = vpop.f32.mrf.mxu0
      %v1333 = vadd.f32 0.0, %v1332
      %v1334 = vpop.f32.mrf.mxu0
      %1335 = vdwg.mxu0
      %v1336 = vpack.c.bf16 %v1333, %v1330
      %s1337 = scalar_lea.vmem %s4, 96
      %v1338 = vld [vmem:[%s1337] sm:$0xf]
      %v1339 = vld [vmem:[%s1337 + $0x4] sm:$0xf]
      %v1340 = vld [vmem:[%s1337 + $0x8] sm:$0xf]
      %v1341 = vld [vmem:[%s1337 + $0xc] sm:$0xf]
      %v1346 = vunpack.c.l.b16 %v1338
      %v1347 = vunpack.c.l.b16 %v1339
      %v1348 = vunpack.c.l.b16 %v1340
      %v1349 = vunpack.c.l.b16 %v1341
      %v1350 = vpack.c.b16 %v1347, %v1346
      %v1351 = vpack.c.b16 %v1349, %v1348
      %v1355 = vsel %vm719, %v1336, 0
      %1357 = vmatprep.subr.bf16.mxu0 0
      %1358 = vmatpush1.bf16.msra.mxu0 0
      %1359 = vmatprep.subr.bf16.mxu0 0
      %1360 = vmatpush1.bf16.msra.mxu0 0
      %1361 = vmatprep.subr.bf16.mxu0 0
      %1362 = vmatpush1.bf16.msra.mxu0 0
      %1363 = vmatprep.subr.bf16.mxu0 0
      %1364 = vmatpush1.bf16.msra.mxu0 0
      %1365 = vmatprep.subr.bf16.mxu0 0
      %1366 = vmatpush1.bf16.msra.mxu0 0
      %1367 = vmatprep.subr.bf16.mxu0 0
      %1368 = vmatpush1.bf16.msra.mxu0 0
      %1369 = vmatprep.subr.bf16.mxu0 0
      %1370 = vmatpush1.bf16.msra.mxu0 %v1351
      %1371 = vmatprep.subr.bf16.mxu0 0
      %1372 = vmatpush1.bf16.msra.mxu0 %v1350
      %1373 = vmatprep.subr.bf16.mxu0 0
      %1374 = vmatpush2.bf16.msra.mxu0 0
      %1375 = vmatprep.subr.bf16.mxu0 0
      %1376 = vmatpush2.bf16.msra.mxu0 0
      %1377 = vmatprep.subr.bf16.mxu0 0
      %1378 = vmatpush2.bf16.msra.mxu0 0
      %1379 = vmatprep.subr.bf16.mxu0 0
      %1380 = vmatpush2.bf16.msra.mxu0 0
      %1381 = vmatprep.subr.bf16.mxu0 0
      %1382 = vmatpush2.bf16.msra.mxu0 0
      %1383 = vmatprep.subr.bf16.mxu0 0
      %1384 = vmatpush2.bf16.msra.mxu0 0
      %1385 = vmatprep.subr.bf16.mxu0 0
      %1386 = vmatpush2.bf16.msra.mxu0 0
      %1387 = vmatprep.subr.bf16.mxu0 0
      %1388 = vmatpush2.bf16.msra.mxu0 0
      %1389 = vmatprep.mubr.bf16.mxu0 0
      %1390 = vmatmul.mubr.bf16.gmra.mxu0 %v1355
      %v1391 = vpop.f32.mrf.mxu0
      %v1392 = vadd.f32 0.0, %v1391
      %v1393 = vpop.f32.mrf.mxu0
      %v1394 = vpop.f32.mrf.mxu0
      %v1395 = vadd.f32 0.0, %v1394
      %v1396 = vpop.f32.mrf.mxu0
      %1397 = vdwg.mxu0
      %v1398 = vadd.f32 %v1282, %v1392
      %v1399 = vadd.f32 %v1283, %v1395
      %s1400 = scalar_lea.vmem %s3, 56
      %v1401 = vld [vmem:[%s1400] sm:$0xf]
      %v1402 = vld [vmem:[%s1400 + $0x4] sm:$0xf]
      %v1405 = vunpack.c.l.b16 %v1401
      %v1406 = vunpack.c.l.b16 %v1402
      %v1407 = vpack.c.b16 %v1406, %v1405
      %v1409 = vsel %vm599, %v1407, 0
      %1411 = vmatprep.subr.bf16.mxu0 0
      %1412 = vmatpush1.bf16.msra.mxu0 0
      %1413 = vmatprep.subr.bf16.mxu0 0
      %1414 = vmatpush1.bf16.msra.mxu0 0
      %1415 = vmatprep.subr.bf16.mxu0 0
      %1416 = vmatpush1.bf16.msra.mxu0 0
      %1417 = vmatprep.subr.bf16.mxu0 0
      %1418 = vmatpush1.bf16.msra.mxu0 0
      %1419 = vmatprep.subr.bf16.mxu0 0
      %1420 = vmatpush1.bf16.msra.mxu0 %v591
      %1421 = vmatprep.subr.bf16.mxu0 0
      %1422 = vmatpush1.bf16.msra.mxu0 %v590
      %1423 = vmatprep.subr.bf16.mxu0 0
      %1424 = vmatpush1.bf16.msra.mxu0 %v589
      %1425 = vmatprep.subr.bf16.mxu0 0
      %1426 = vmatpush1.bf16.msra.mxu0 %v588
      %1427 = vmatprep.subr.bf16.mxu0 0
      %1428 = vmatpush2.bf16.msra.mxu0 0
      %1429 = vmatprep.subr.bf16.mxu0 0
      %1430 = vmatpush2.bf16.msra.mxu0 0
      %1431 = vmatprep.subr.bf16.mxu0 0
      %1432 = vmatpush2.bf16.msra.mxu0 0
      %1433 = vmatprep.subr.bf16.mxu0 0
      %1434 = vmatpush2.bf16.msra.mxu0 0
      %1435 = vmatprep.subr.bf16.mxu0 0
      %1436 = vmatpush2.bf16.msra.mxu0 0
      %1437 = vmatprep.subr.bf16.mxu0 0
      %1438 = vmatpush2.bf16.msra.mxu0 0
      %1439 = vmatprep.subr.bf16.mxu0 0
      %1440 = vmatpush2.bf16.msra.mxu0 0
      %1441 = vmatprep.subr.bf16.mxu0 0
      %1442 = vmatpush2.bf16.msra.mxu0 0
      %1443 = vmatprep.mubr.bf16.mxu0 0
      %1444 = vmatmul.mubr.bf16.gmra.mxu0 %v1409
      %v1445 = vpop.f32.mrf.mxu0
      %v1446 = vadd.f32 0.0, %v1445
      %v1447 = vpop.f32.mrf.mxu0
      %v1448 = vpop.f32.mrf.mxu0
      %v1449 = vadd.f32 0.0, %v1448
      %v1450 = vpop.f32.mrf.mxu0
      %1451 = vdwg.mxu0
      %v1452 = vpack.c.bf16 %v1449, %v1446
      %s1453 = scalar_lea.vmem %s4, 112
      %v1454 = vld [vmem:[%s1453] sm:$0xf]
      %v1455 = vld [vmem:[%s1453 + $0x4] sm:$0xf]
      %v1456 = vld [vmem:[%s1453 + $0x8] sm:$0xf]
      %v1457 = vld [vmem:[%s1453 + $0xc] sm:$0xf]
      %v1462 = vunpack.c.l.b16 %v1454
      %v1463 = vunpack.c.l.b16 %v1455
      %v1464 = vunpack.c.l.b16 %v1456
      %v1465 = vunpack.c.l.b16 %v1457
      %v1466 = vpack.c.b16 %v1463, %v1462
      %v1467 = vpack.c.b16 %v1465, %v1464
      %v1471 = vsel %vm719, %v1452, 0
      %1473 = vmatprep.subr.bf16.mxu0 0
      %1474 = vmatpush1.bf16.msra.mxu0 0
      %1475 = vmatprep.subr.bf16.mxu0 0
      %1476 = vmatpush1.bf16.msra.mxu0 0
      %1477 = vmatprep.subr.bf16.mxu0 0
      %1478 = vmatpush1.bf16.msra.mxu0 0
      %1479 = vmatprep.subr.bf16.mxu0 0
      %1480 = vmatpush1.bf16.msra.mxu0 0
      %1481 = vmatprep.subr.bf16.mxu0 0
      %1482 = vmatpush1.bf16.msra.mxu0 0
      %1483 = vmatprep.subr.bf16.mxu0 0
      %1484 = vmatpush1.bf16.msra.mxu0 0
      %1485 = vmatprep.subr.bf16.mxu0 0
      %1486 = vmatpush1.bf16.msra.mxu0 %v1467
      %1487 = vmatprep.subr.bf16.mxu0 0
      %1488 = vmatpush1.bf16.msra.mxu0 %v1466
      %1489 = vmatprep.subr.bf16.mxu0 0
      %1490 = vmatpush2.bf16.msra.mxu0 0
      %1491 = vmatprep.subr.bf16.mxu0 0
      %1492 = vmatpush2.bf16.msra.mxu0 0
      %1493 = vmatprep.subr.bf16.mxu0 0
      %1494 = vmatpush2.bf16.msra.mxu0 0
      %1495 = vmatprep.subr.bf16.mxu0 0
      %1496 = vmatpush2.bf16.msra.mxu0 0
      %1497 = vmatprep.subr.bf16.mxu0 0
      %1498 = vmatpush2.bf16.msra.mxu0 0
      %1499 = vmatprep.subr.bf16.mxu0 0
      %1500 = vmatpush2.bf16.msra.mxu0 0
      %1501 = vmatprep.subr.bf16.mxu0 0
      %1502 = vmatpush2.bf16.msra.mxu0 0
      %1503 = vmatprep.subr.bf16.mxu0 0
      %1504 = vmatpush2.bf16.msra.mxu0 0
      %1505 = vmatprep.mubr.bf16.mxu0 0
      %1506 = vmatmul.mubr.bf16.gmra.mxu0 %v1471
      %v1507 = vpop.f32.mrf.mxu0
      %v1508 = vadd.f32 0.0, %v1507
      %v1509 = vpop.f32.mrf.mxu0
      %v1510 = vpop.f32.mrf.mxu0
      %v1511 = vadd.f32 0.0, %v1510
      %v1512 = vpop.f32.mrf.mxu0
      %1513 = vdwg.mxu0
      %v1514 = vadd.f32 %v1398, %v1508
      %v1515 = vadd.f32 %v1399, %v1511
      %s1516 = scalar_lea.vmem %s3, 64
      %v1517 = vld [vmem:[%s1516] sm:$0xf]
      %v1518 = vld [vmem:[%s1516 + $0x4] sm:$0xf]
      %v1521 = vunpack.c.l.b16 %v1517
      %v1522 = vunpack.c.l.b16 %v1518
      %v1523 = vpack.c.b16 %v1522, %v1521
      %v1525 = vsel %vm599, %v1523, 0
      %1527 = vmatprep.subr.bf16.mxu0 0
      %1528 = vmatpush1.bf16.msra.mxu0 0
      %1529 = vmatprep.subr.bf16.mxu0 0
      %1530 = vmatpush1.bf16.msra.mxu0 0
      %1531 = vmatprep.subr.bf16.mxu0 0
      %1532 = vmatpush1.bf16.msra.mxu0 0
      %1533 = vmatprep.subr.bf16.mxu0 0
      %1534 = vmatpush1.bf16.msra.mxu0 0
      %1535 = vmatprep.subr.bf16.mxu0 0
      %1536 = vmatpush1.bf16.msra.mxu0 %v591
      %1537 = vmatprep.subr.bf16.mxu0 0
      %1538 = vmatpush1.bf16.msra.mxu0 %v590
      %1539 = vmatprep.subr.bf16.mxu0 0
      %1540 = vmatpush1.bf16.msra.mxu0 %v589
      %1541 = vmatprep.subr.bf16.mxu0 0
      %1542 = vmatpush1.bf16.msra.mxu0 %v588
      %1543 = vmatprep.subr.bf16.mxu0 0
      %1544 = vmatpush2.bf16.msra.mxu0 0
      %1545 = vmatprep.subr.bf16.mxu0 0
      %1546 = vmatpush2.bf16.msra.mxu0 0
      %1547 = vmatprep.subr.bf16.mxu0 0
      %1548 = vmatpush2.bf16.msra.mxu0 0
      %1549 = vmatprep.subr.bf16.mxu0 0
      %1550 = vmatpush2.bf16.msra.mxu0 0
      %1551 = vmatprep.subr.bf16.mxu0 0
      %1552 = vmatpush2.bf16.msra.mxu0 0
      %1553 = vmatprep.subr.bf16.mxu0 0
      %1554 = vmatpush2.bf16.msra.mxu0 0
      %1555 = vmatprep.subr.bf16.mxu0 0
      %1556 = vmatpush2.bf16.msra.mxu0 0
      %1557 = vmatprep.subr.bf16.mxu0 0
      %1558 = vmatpush2.bf16.msra.mxu0 0
      %1559 = vmatprep.mubr.bf16.mxu0 0
      %1560 = vmatmul.mubr.bf16.gmra.mxu0 %v1525
      %v1561 = vpop.f32.mrf.mxu0
      %v1562 = vadd.f32 0.0, %v1561
      %v1563 = vpop.f32.mrf.mxu0
      %v1564 = vpop.f32.mrf.mxu0
      %v1565 = vadd.f32 0.0, %v1564
      %v1566 = vpop.f32.mrf.mxu0
      %1567 = vdwg.mxu0
      %v1568 = vpack.c.bf16 %v1565, %v1562
      %s1569 = scalar_lea.vmem %s4, 128
      %v1570 = vld [vmem:[%s1569] sm:$0xf]
      %v1571 = vld [vmem:[%s1569 + $0x4] sm:$0xf]
      %v1572 = vld [vmem:[%s1569 + $0x8] sm:$0xf]
      %v1573 = vld [vmem:[%s1569 + $0xc] sm:$0xf]
      %v1578 = vunpack.c.l.b16 %v1570
      %v1579 = vunpack.c.l.b16 %v1571
      %v1580 = vunpack.c.l.b16 %v1572
      %v1581 = vunpack.c.l.b16 %v1573
      %v1582 = vpack.c.b16 %v1579, %v1578
      %v1583 = vpack.c.b16 %v1581, %v1580
      %v1587 = vsel %vm719, %v1568, 0
      %1589 = vmatprep.subr.bf16.mxu0 0
      %1590 = vmatpush1.bf16.msra.mxu0 0
      %1591 = vmatprep.subr.bf16.mxu0 0
      %1592 = vmatpush1.bf16.msra.mxu0 0
      %1593 = vmatprep.subr.bf16.mxu0 0
      %1594 = vmatpush1.bf16.msra.mxu0 0
      %1595 = vmatprep.subr.bf16.mxu0 0
      %1596 = vmatpush1.bf16.msra.mxu0 0
      %1597 = vmatprep.subr.bf16.mxu0 0
      %1598 = vmatpush1.bf16.msra.mxu0 0
      %1599 = vmatprep.subr.bf16.mxu0 0
      %1600 = vmatpush1.bf16.msra.mxu0 0
      %1601 = vmatprep.subr.bf16.mxu0 0
      %1602 = vmatpush1.bf16.msra.mxu0 %v1583
      %1603 = vmatprep.subr.bf16.mxu0 0
      %1604 = vmatpush1.bf16.msra.mxu0 %v1582
      %1605 = vmatprep.subr.bf16.mxu0 0
      %1606 = vmatpush2.bf16.msra.mxu0 0
      %1607 = vmatprep.subr.bf16.mxu0 0
      %1608 = vmatpush2.bf16.msra.mxu0 0
      %1609 = vmatprep.subr.bf16.mxu0 0
      %1610 = vmatpush2.bf16.msra.mxu0 0
      %1611 = vmatprep.subr.bf16.mxu0 0
      %1612 = vmatpush2.bf16.msra.mxu0 0
      %1613 = vmatprep.subr.bf16.mxu0 0
      %1614 = vmatpush2.bf16.msra.mxu0 0
      %1615 = vmatprep.subr.bf16.mxu0 0
      %1616 = vmatpush2.bf16.msra.mxu0 0
      %1617 = vmatprep.subr.bf16.mxu0 0
      %1618 = vmatpush2.bf16.msra.mxu0 0
      %1619 = vmatprep.subr.bf16.mxu0 0
      %1620 = vmatpush2.bf16.msra.mxu0 0
      %1621 = vmatprep.mubr.bf16.mxu0 0
      %1622 = vmatmul.mubr.bf16.gmra.mxu0 %v1587
      %v1623 = vpop.f32.mrf.mxu0
      %v1624 = vadd.f32 0.0, %v1623
      %v1625 = vpop.f32.mrf.mxu0
      %v1626 = vpop.f32.mrf.mxu0
      %v1627 = vadd.f32 0.0, %v1626
      %v1628 = vpop.f32.mrf.mxu0
      %1629 = vdwg.mxu0
      %v1630 = vadd.f32 %v1514, %v1624
      %v1631 = vadd.f32 %v1515, %v1627
      %s1632 = scalar_lea.vmem %s3, 72
      %v1633 = vld [vmem:[%s1632] sm:$0xf]
      %v1634 = vld [vmem:[%s1632 + $0x4] sm:$0xf]
      %v1637 = vunpack.c.l.b16 %v1633
      %v1638 = vunpack.c.l.b16 %v1634
      %v1639 = vpack.c.b16 %v1638, %v1637
      %v1641 = vsel %vm599, %v1639, 0
      %1643 = vmatprep.subr.bf16.mxu0 0
      %1644 = vmatpush1.bf16.msra.mxu0 0
      %1645 = vmatprep.subr.bf16.mxu0 0
      %1646 = vmatpush1.bf16.msra.mxu0 0
      %1647 = vmatprep.subr.bf16.mxu0 0
      %1648 = vmatpush1.bf16.msra.mxu0 0
      %1649 = vmatprep.subr.bf16.mxu0 0
      %1650 = vmatpush1.bf16.msra.mxu0 0
      %1651 = vmatprep.subr.bf16.mxu0 0
      %1652 = vmatpush1.bf16.msra.mxu0 %v591
      %1653 = vmatprep.subr.bf16.mxu0 0
      %1654 = vmatpush1.bf16.msra.mxu0 %v590
      %1655 = vmatprep.subr.bf16.mxu0 0
      %1656 = vmatpush1.bf16.msra.mxu0 %v589
      %1657 = vmatprep.subr.bf16.mxu0 0
      %1658 = vmatpush1.bf16.msra.mxu0 %v588
      %1659 = vmatprep.subr.bf16.mxu0 0
      %1660 = vmatpush2.bf16.msra.mxu0 0
      %1661 = vmatprep.subr.bf16.mxu0 0
      %1662 = vmatpush2.bf16.msra.mxu0 0
      %1663 = vmatprep.subr.bf16.mxu0 0
      %1664 = vmatpush2.bf16.msra.mxu0 0
      %1665 = vmatprep.subr.bf16.mxu0 0
      %1666 = vmatpush2.bf16.msra.mxu0 0
      %1667 = vmatprep.subr.bf16.mxu0 0
      %1668 = vmatpush2.bf16.msra.mxu0 0
      %1669 = vmatprep.subr.bf16.mxu0 0
      %1670 = vmatpush2.bf16.msra.mxu0 0
      %1671 = vmatprep.subr.bf16.mxu0 0
      %1672 = vmatpush2.bf16.msra.mxu0 0
      %1673 = vmatprep.subr.bf16.mxu0 0
      %1674 = vmatpush2.bf16.msra.mxu0 0
      %1675 = vmatprep.mubr.bf16.mxu0 0
      %1676 = vmatmul.mubr.bf16.gmra.mxu0 %v1641
      %v1677 = vpop.f32.mrf.mxu0
      %v1678 = vadd.f32 0.0, %v1677
      %v1679 = vpop.f32.mrf.mxu0
      %v1680 = vpop.f32.mrf.mxu0
      %v1681 = vadd.f32 0.0, %v1680
      %v1682 = vpop.f32.mrf.mxu0
      %1683 = vdwg.mxu0
      %v1684 = vpack.c.bf16 %v1681, %v1678
      %s1685 = scalar_lea.vmem %s4, 144
      %v1686 = vld [vmem:[%s1685] sm:$0xf]
      %v1687 = vld [vmem:[%s1685 + $0x4] sm:$0xf]
      %v1688 = vld [vmem:[%s1685 + $0x8] sm:$0xf]
      %v1689 = vld [vmem:[%s1685 + $0xc] sm:$0xf]
      %v1694 = vunpack.c.l.b16 %v1686
      %v1695 = vunpack.c.l.b16 %v1687
      %v1696 = vunpack.c.l.b16 %v1688
      %v1697 = vunpack.c.l.b16 %v1689
      %v1698 = vpack.c.b16 %v1695, %v1694
      %v1699 = vpack.c.b16 %v1697, %v1696
      %v1703 = vsel %vm719, %v1684, 0
      %1705 = vmatprep.subr.bf16.mxu0 0
      %1706 = vmatpush1.bf16.msra.mxu0 0
      %1707 = vmatprep.subr.bf16.mxu0 0
      %1708 = vmatpush1.bf16.msra.mxu0 0
      %1709 = vmatprep.subr.bf16.mxu0 0
      %1710 = vmatpush1.bf16.msra.mxu0 0
      %1711 = vmatprep.subr.bf16.mxu0 0
      %1712 = vmatpush1.bf16.msra.mxu0 0
      %1713 = vmatprep.subr.bf16.mxu0 0
      %1714 = vmatpush1.bf16.msra.mxu0 0
      %1715 = vmatprep.subr.bf16.mxu0 0
      %1716 = vmatpush1.bf16.msra.mxu0 0
      %1717 = vmatprep.subr.bf16.mxu0 0
      %1718 = vmatpush1.bf16.msra.mxu0 %v1699
      %1719 = vmatprep.subr.bf16.mxu0 0
      %1720 = vmatpush1.bf16.msra.mxu0 %v1698
      %1721 = vmatprep.subr.bf16.mxu0 0
      %1722 = vmatpush2.bf16.msra.mxu0 0
      %1723 = vmatprep.subr.bf16.mxu0 0
      %1724 = vmatpush2.bf16.msra.mxu0 0
      %1725 = vmatprep.subr.bf16.mxu0 0
      %1726 = vmatpush2.bf16.msra.mxu0 0
      %1727 = vmatprep.subr.bf16.mxu0 0
      %1728 = vmatpush2.bf16.msra.mxu0 0
      %1729 = vmatprep.subr.bf16.mxu0 0
      %1730 = vmatpush2.bf16.msra.mxu0 0
      %1731 = vmatprep.subr.bf16.mxu0 0
      %1732 = vmatpush2.bf16.msra.mxu0 0
      %1733 = vmatprep.subr.bf16.mxu0 0
      %1734 = vmatpush2.bf16.msra.mxu0 0
      %1735 = vmatprep.subr.bf16.mxu0 0
      %1736 = vmatpush2.bf16.msra.mxu0 0
      %1737 = vmatprep.mubr.bf16.mxu0 0
      %1738 = vmatmul.mubr.bf16.gmra.mxu0 %v1703
      %v1739 = vpop.f32.mrf.mxu0
      %v1740 = vadd.f32 0.0, %v1739
      %v1741 = vpop.f32.mrf.mxu0
      %v1742 = vpop.f32.mrf.mxu0
      %v1743 = vadd.f32 0.0, %v1742
      %v1744 = vpop.f32.mrf.mxu0
      %1745 = vdwg.mxu0
      %v1746 = vadd.f32 %v1630, %v1740
      %v1747 = vadd.f32 %v1631, %v1743
      %s1748 = scalar_lea.vmem %s3, 80
      %v1749 = vld [vmem:[%s1748] sm:$0xf]
      %v1750 = vld [vmem:[%s1748 + $0x4] sm:$0xf]
      %v1753 = vunpack.c.l.b16 %v1749
      %v1754 = vunpack.c.l.b16 %v1750
      %v1755 = vpack.c.b16 %v1754, %v1753
      %v1757 = vsel %vm599, %v1755, 0
      %1759 = vmatprep.subr.bf16.mxu0 0
      %1760 = vmatpush1.bf16.msra.mxu0 0
      %1761 = vmatprep.subr.bf16.mxu0 0
      %1762 = vmatpush1.bf16.msra.mxu0 0
      %1763 = vmatprep.subr.bf16.mxu0 0
      %1764 = vmatpush1.bf16.msra.mxu0 0
      %1765 = vmatprep.subr.bf16.mxu0 0
      %1766 = vmatpush1.bf16.msra.mxu0 0
      %1767 = vmatprep.subr.bf16.mxu0 0
      %1768 = vmatpush1.bf16.msra.mxu0 %v591
      %1769 = vmatprep.subr.bf16.mxu0 0
      %1770 = vmatpush1.bf16.msra.mxu0 %v590
      %1771 = vmatprep.subr.bf16.mxu0 0
      %1772 = vmatpush1.bf16.msra.mxu0 %v589
      %1773 = vmatprep.subr.bf16.mxu0 0
      %1774 = vmatpush1.bf16.msra.mxu0 %v588
      %1775 = vmatprep.subr.bf16.mxu0 0
      %1776 = vmatpush2.bf16.msra.mxu0 0
      %1777 = vmatprep.subr.bf16.mxu0 0
      %1778 = vmatpush2.bf16.msra.mxu0 0
      %1779 = vmatprep.subr.bf16.mxu0 0
      %1780 = vmatpush2.bf16.msra.mxu0 0
      %1781 = vmatprep.subr.bf16.mxu0 0
      %1782 = vmatpush2.bf16.msra.mxu0 0
      %1783 = vmatprep.subr.bf16.mxu0 0
      %1784 = vmatpush2.bf16.msra.mxu0 0
      %1785 = vmatprep.subr.bf16.mxu0 0
      %1786 = vmatpush2.bf16.msra.mxu0 0
      %1787 = vmatprep.subr.bf16.mxu0 0
      %1788 = vmatpush2.bf16.msra.mxu0 0
      %1789 = vmatprep.subr.bf16.mxu0 0
      %1790 = vmatpush2.bf16.msra.mxu0 0
      %1791 = vmatprep.mubr.bf16.mxu0 0
      %1792 = vmatmul.mubr.bf16.gmra.mxu0 %v1757
      %v1793 = vpop.f32.mrf.mxu0
      %v1794 = vadd.f32 0.0, %v1793
      %v1795 = vpop.f32.mrf.mxu0
      %v1796 = vpop.f32.mrf.mxu0
      %v1797 = vadd.f32 0.0, %v1796
      %v1798 = vpop.f32.mrf.mxu0
      %1799 = vdwg.mxu0
      %v1800 = vpack.c.bf16 %v1797, %v1794
      %s1801 = scalar_lea.vmem %s4, 160
      %v1802 = vld [vmem:[%s1801] sm:$0xf]
      %v1803 = vld [vmem:[%s1801 + $0x4] sm:$0xf]
      %v1804 = vld [vmem:[%s1801 + $0x8] sm:$0xf]
      %v1805 = vld [vmem:[%s1801 + $0xc] sm:$0xf]
      %v1810 = vunpack.c.l.b16 %v1802
      %v1811 = vunpack.c.l.b16 %v1803
      %v1812 = vunpack.c.l.b16 %v1804
      %v1813 = vunpack.c.l.b16 %v1805
      %v1814 = vpack.c.b16 %v1811, %v1810
      %v1815 = vpack.c.b16 %v1813, %v1812
      %v1819 = vsel %vm719, %v1800, 0
      %1821 = vmatprep.subr.bf16.mxu0 0
      %1822 = vmatpush1.bf16.msra.mxu0 0
      %1823 = vmatprep.subr.bf16.mxu0 0
      %1824 = vmatpush1.bf16.msra.mxu0 0
      %1825 = vmatprep.subr.bf16.mxu0 0
      %1826 = vmatpush1.bf16.msra.mxu0 0
      %1827 = vmatprep.subr.bf16.mxu0 0
      %1828 = vmatpush1.bf16.msra.mxu0 0
      %1829 = vmatprep.subr.bf16.mxu0 0
      %1830 = vmatpush1.bf16.msra.mxu0 0
      %1831 = vmatprep.subr.bf16.mxu0 0
      %1832 = vmatpush1.bf16.msra.mxu0 0
      %1833 = vmatprep.subr.bf16.mxu0 0
      %1834 = vmatpush1.bf16.msra.mxu0 %v1815
      %1835 = vmatprep.subr.bf16.mxu0 0
      %1836 = vmatpush1.bf16.msra.mxu0 %v1814
      %1837 = vmatprep.subr.bf16.mxu0 0
      %1838 = vmatpush2.bf16.msra.mxu0 0
      %1839 = vmatprep.subr.bf16.mxu0 0
      %1840 = vmatpush2.bf16.msra.mxu0 0
      %1841 = vmatprep.subr.bf16.mxu0 0
      %1842 = vmatpush2.bf16.msra.mxu0 0
      %1843 = vmatprep.subr.bf16.mxu0 0
      %1844 = vmatpush2.bf16.msra.mxu0 0
      %1845 = vmatprep.subr.bf16.mxu0 0
      %1846 = vmatpush2.bf16.msra.mxu0 0
      %1847 = vmatprep.subr.bf16.mxu0 0
      %1848 = vmatpush2.bf16.msra.mxu0 0
      %1849 = vmatprep.subr.bf16.mxu0 0
      %1850 = vmatpush2.bf16.msra.mxu0 0
      %1851 = vmatprep.subr.bf16.mxu0 0
      %1852 = vmatpush2.bf16.msra.mxu0 0
      %1853 = vmatprep.mubr.bf16.mxu0 0
      %1854 = vmatmul.mubr.bf16.gmra.mxu0 %v1819
      %v1855 = vpop.f32.mrf.mxu0
      %v1856 = vadd.f32 0.0, %v1855
      %v1857 = vpop.f32.mrf.mxu0
      %v1858 = vpop.f32.mrf.mxu0
      %v1859 = vadd.f32 0.0, %v1858
      %v1860 = vpop.f32.mrf.mxu0
      %1861 = vdwg.mxu0
      %v1862 = vadd.f32 %v1746, %v1856
      %v1863 = vadd.f32 %v1747, %v1859
      %s1864 = scalar_lea.vmem %s3, 88
      %v1865 = vld [vmem:[%s1864] sm:$0xf]
      %v1866 = vld [vmem:[%s1864 + $0x4] sm:$0xf]
      %v1869 = vunpack.c.l.b16 %v1865
      %v1870 = vunpack.c.l.b16 %v1866
      %v1871 = vpack.c.b16 %v1870, %v1869
      %v1873 = vsel %vm599, %v1871, 0
      %1875 = vmatprep.subr.bf16.mxu0 0
      %1876 = vmatpush1.bf16.msra.mxu0 0
      %1877 = vmatprep.subr.bf16.mxu0 0
      %1878 = vmatpush1.bf16.msra.mxu0 0
      %1879 = vmatprep.subr.bf16.mxu0 0
      %1880 = vmatpush1.bf16.msra.mxu0 0
      %1881 = vmatprep.subr.bf16.mxu0 0
      %1882 = vmatpush1.bf16.msra.mxu0 0
      %1883 = vmatprep.subr.bf16.mxu0 0
      %1884 = vmatpush1.bf16.msra.mxu0 %v591
      %1885 = vmatprep.subr.bf16.mxu0 0
      %1886 = vmatpush1.bf16.msra.mxu0 %v590
      %1887 = vmatprep.subr.bf16.mxu0 0
      %1888 = vmatpush1.bf16.msra.mxu0 %v589
      %1889 = vmatprep.subr.bf16.mxu0 0
      %1890 = vmatpush1.bf16.msra.mxu0 %v588
      %1891 = vmatprep.subr.bf16.mxu0 0
      %1892 = vmatpush2.bf16.msra.mxu0 0
      %1893 = vmatprep.subr.bf16.mxu0 0
      %1894 = vmatpush2.bf16.msra.mxu0 0
      %1895 = vmatprep.subr.bf16.mxu0 0
      %1896 = vmatpush2.bf16.msra.mxu0 0
      %1897 = vmatprep.subr.bf16.mxu0 0
      %1898 = vmatpush2.bf16.msra.mxu0 0
      %1899 = vmatprep.subr.bf16.mxu0 0
      %1900 = vmatpush2.bf16.msra.mxu0 0
      %1901 = vmatprep.subr.bf16.mxu0 0
      %1902 = vmatpush2.bf16.msra.mxu0 0
      %1903 = vmatprep.subr.bf16.mxu0 0
      %1904 = vmatpush2.bf16.msra.mxu0 0
      %1905 = vmatprep.subr.bf16.mxu0 0
      %1906 = vmatpush2.bf16.msra.mxu0 0
      %1907 = vmatprep.mubr.bf16.mxu0 0
      %1908 = vmatmul.mubr.bf16.gmra.mxu0 %v1873
      %v1909 = vpop.f32.mrf.mxu0
      %v1910 = vadd.f32 0.0, %v1909
      %v1911 = vpop.f32.mrf.mxu0
      %v1912 = vpop.f32.mrf.mxu0
      %v1913 = vadd.f32 0.0, %v1912
      %v1914 = vpop.f32.mrf.mxu0
      %1915 = vdwg.mxu0
      %v1916 = vpack.c.bf16 %v1913, %v1910
      %s1917 = scalar_lea.vmem %s4, 176
      %v1918 = vld [vmem:[%s1917] sm:$0xf]
      %v1919 = vld [vmem:[%s1917 + $0x4] sm:$0xf]
      %v1920 = vld [vmem:[%s1917 + $0x8] sm:$0xf]
      %v1921 = vld [vmem:[%s1917 + $0xc] sm:$0xf]
      %v1926 = vunpack.c.l.b16 %v1918
      %v1927 = vunpack.c.l.b16 %v1919
      %v1928 = vunpack.c.l.b16 %v1920
      %v1929 = vunpack.c.l.b16 %v1921
      %v1930 = vpack.c.b16 %v1927, %v1926
      %v1931 = vpack.c.b16 %v1929, %v1928
      %v1935 = vsel %vm719, %v1916, 0
      %1937 = vmatprep.subr.bf16.mxu0 0
      %1938 = vmatpush1.bf16.msra.mxu0 0
      %1939 = vmatprep.subr.bf16.mxu0 0
      %1940 = vmatpush1.bf16.msra.mxu0 0
      %1941 = vmatprep.subr.bf16.mxu0 0
      %1942 = vmatpush1.bf16.msra.mxu0 0
      %1943 = vmatprep.subr.bf16.mxu0 0
      %1944 = vmatpush1.bf16.msra.mxu0 0
      %1945 = vmatprep.subr.bf16.mxu0 0
      %1946 = vmatpush1.bf16.msra.mxu0 0
      %1947 = vmatprep.subr.bf16.mxu0 0
      %1948 = vmatpush1.bf16.msra.mxu0 0
      %1949 = vmatprep.subr.bf16.mxu0 0
      %1950 = vmatpush1.bf16.msra.mxu0 %v1931
      %1951 = vmatprep.subr.bf16.mxu0 0
      %1952 = vmatpush1.bf16.msra.mxu0 %v1930
      %1953 = vmatprep.subr.bf16.mxu0 0
      %1954 = vmatpush2.bf16.msra.mxu0 0
      %1955 = vmatprep.subr.bf16.mxu0 0
      %1956 = vmatpush2.bf16.msra.mxu0 0
      %1957 = vmatprep.subr.bf16.mxu0 0
      %1958 = vmatpush2.bf16.msra.mxu0 0
      %1959 = vmatprep.subr.bf16.mxu0 0
      %1960 = vmatpush2.bf16.msra.mxu0 0
      %1961 = vmatprep.subr.bf16.mxu0 0
      %1962 = vmatpush2.bf16.msra.mxu0 0
      %1963 = vmatprep.subr.bf16.mxu0 0
      %1964 = vmatpush2.bf16.msra.mxu0 0
      %1965 = vmatprep.subr.bf16.mxu0 0
      %1966 = vmatpush2.bf16.msra.mxu0 0
      %1967 = vmatprep.subr.bf16.mxu0 0
      %1968 = vmatpush2.bf16.msra.mxu0 0
      %1969 = vmatprep.mubr.bf16.mxu0 0
      %1970 = vmatmul.mubr.bf16.gmra.mxu0 %v1935
      %v1971 = vpop.f32.mrf.mxu0
      %v1972 = vadd.f32 0.0, %v1971
      %v1973 = vpop.f32.mrf.mxu0
      %v1974 = vpop.f32.mrf.mxu0
      %v1975 = vadd.f32 0.0, %v1974
      %v1976 = vpop.f32.mrf.mxu0
      %1977 = vdwg.mxu0
      %v1978 = vadd.f32 %v1862, %v1972
      %v1979 = vadd.f32 %v1863, %v1975
      %s1980 = scalar_lea.vmem %s3, 96
      %v1981 = vld [vmem:[%s1980] sm:$0xf]
      %v1982 = vld [vmem:[%s1980 + $0x4] sm:$0xf]
      %v1985 = vunpack.c.l.b16 %v1981
      %v1986 = vunpack.c.l.b16 %v1982
      %v1987 = vpack.c.b16 %v1986, %v1985
      %v1989 = vsel %vm599, %v1987, 0
      %1991 = vmatprep.subr.bf16.mxu0 0
      %1992 = vmatpush1.bf16.msra.mxu0 0
      %1993 = vmatprep.subr.bf16.mxu0 0
      %1994 = vmatpush1.bf16.msra.mxu0 0
      %1995 = vmatprep.subr.bf16.mxu0 0
      %1996 = vmatpush1.bf16.msra.mxu0 0
      %1997 = vmatprep.subr.bf16.mxu0 0
      %1998 = vmatpush1.bf16.msra.mxu0 0
      %1999 = vmatprep.subr.bf16.mxu0 0
      %2000 = vmatpush1.bf16.msra.mxu0 %v591
      %2001 = vmatprep.subr.bf16.mxu0 0
      %2002 = vmatpush1.bf16.msra.mxu0 %v590
      %2003 = vmatprep.subr.bf16.mxu0 0
      %2004 = vmatpush1.bf16.msra.mxu0 %v589
      %2005 = vmatprep.subr.bf16.mxu0 0
      %2006 = vmatpush1.bf16.msra.mxu0 %v588
      %2007 = vmatprep.subr.bf16.mxu0 0
      %2008 = vmatpush2.bf16.msra.mxu0 0
      %2009 = vmatprep.subr.bf16.mxu0 0
      %2010 = vmatpush2.bf16.msra.mxu0 0
      %2011 = vmatprep.subr.bf16.mxu0 0
      %2012 = vmatpush2.bf16.msra.mxu0 0
      %2013 = vmatprep.subr.bf16.mxu0 0
      %2014 = vmatpush2.bf16.msra.mxu0 0
      %2015 = vmatprep.subr.bf16.mxu0 0
      %2016 = vmatpush2.bf16.msra.mxu0 0
      %2017 = vmatprep.subr.bf16.mxu0 0
      %2018 = vmatpush2.bf16.msra.mxu0 0
      %2019 = vmatprep.subr.bf16.mxu0 0
      %2020 = vmatpush2.bf16.msra.mxu0 0
      %2021 = vmatprep.subr.bf16.mxu0 0
      %2022 = vmatpush2.bf16.msra.mxu0 0
      %2023 = vmatprep.mubr.bf16.mxu0 0
      %2024 = vmatmul.mubr.bf16.gmra.mxu0 %v1989
      %v2025 = vpop.f32.mrf.mxu0
      %v2026 = vadd.f32 0.0, %v2025
      %v2027 = vpop.f32.mrf.mxu0
      %v2028 = vpop.f32.mrf.mxu0
      %v2029 = vadd.f32 0.0, %v2028
      %v2030 = vpop.f32.mrf.mxu0
      %2031 = vdwg.mxu0
      %v2032 = vpack.c.bf16 %v2029, %v2026
      %s2033 = scalar_lea.vmem %s4, 192
      %v2034 = vld [vmem:[%s2033] sm:$0xf]
      %v2035 = vld [vmem:[%s2033 + $0x4] sm:$0xf]
      %v2036 = vld [vmem:[%s2033 + $0x8] sm:$0xf]
      %v2037 = vld [vmem:[%s2033 + $0xc] sm:$0xf]
      %v2042 = vunpack.c.l.b16 %v2034
      %v2043 = vunpack.c.l.b16 %v2035
      %v2044 = vunpack.c.l.b16 %v2036
      %v2045 = vunpack.c.l.b16 %v2037
      %v2046 = vpack.c.b16 %v2043, %v2042
      %v2047 = vpack.c.b16 %v2045, %v2044
      %v2051 = vsel %vm719, %v2032, 0
      %2053 = vmatprep.subr.bf16.mxu0 0
      %2054 = vmatpush1.bf16.msra.mxu0 0
      %2055 = vmatprep.subr.bf16.mxu0 0
      %2056 = vmatpush1.bf16.msra.mxu0 0
      %2057 = vmatprep.subr.bf16.mxu0 0
      %2058 = vmatpush1.bf16.msra.mxu0 0
      %2059 = vmatprep.subr.bf16.mxu0 0
      %2060 = vmatpush1.bf16.msra.mxu0 0
      %2061 = vmatprep.subr.bf16.mxu0 0
      %2062 = vmatpush1.bf16.msra.mxu0 0
      %2063 = vmatprep.subr.bf16.mxu0 0
      %2064 = vmatpush1.bf16.msra.mxu0 0
      %2065 = vmatprep.subr.bf16.mxu0 0
      %2066 = vmatpush1.bf16.msra.mxu0 %v2047
      %2067 = vmatprep.subr.bf16.mxu0 0
      %2068 = vmatpush1.bf16.msra.mxu0 %v2046
      %2069 = vmatprep.subr.bf16.mxu0 0
      %2070 = vmatpush2.bf16.msra.mxu0 0
      %2071 = vmatprep.subr.bf16.mxu0 0
      %2072 = vmatpush2.bf16.msra.mxu0 0
      %2073 = vmatprep.subr.bf16.mxu0 0
      %2074 = vmatpush2.bf16.msra.mxu0 0
      %2075 = vmatprep.subr.bf16.mxu0 0
      %2076 = vmatpush2.bf16.msra.mxu0 0
      %2077 = vmatprep.subr.bf16.mxu0 0
      %2078 = vmatpush2.bf16.msra.mxu0 0
      %2079 = vmatprep.subr.bf16.mxu0 0
      %2080 = vmatpush2.bf16.msra.mxu0 0
      %2081 = vmatprep.subr.bf16.mxu0 0
      %2082 = vmatpush2.bf16.msra.mxu0 0
      %2083 = vmatprep.subr.bf16.mxu0 0
      %2084 = vmatpush2.bf16.msra.mxu0 0
      %2085 = vmatprep.mubr.bf16.mxu0 0
      %2086 = vmatmul.mubr.bf16.gmra.mxu0 %v2051
      %v2087 = vpop.f32.mrf.mxu0
      %v2088 = vadd.f32 0.0, %v2087
      %v2089 = vpop.f32.mrf.mxu0
      %v2090 = vpop.f32.mrf.mxu0
      %v2091 = vadd.f32 0.0, %v2090
      %v2092 = vpop.f32.mrf.mxu0
      %2093 = vdwg.mxu0
      %v2094 = vadd.f32 %v1978, %v2088
      %v2095 = vadd.f32 %v1979, %v2091
      %s2096 = scalar_lea.vmem %s3, 104
      %v2097 = vld [vmem:[%s2096] sm:$0xf]
      %v2098 = vld [vmem:[%s2096 + $0x4] sm:$0xf]
      %v2101 = vunpack.c.l.b16 %v2097
      %v2102 = vunpack.c.l.b16 %v2098
      %v2103 = vpack.c.b16 %v2102, %v2101
      %v2105 = vsel %vm599, %v2103, 0
      %2107 = vmatprep.subr.bf16.mxu0 0
      %2108 = vmatpush1.bf16.msra.mxu0 0
      %2109 = vmatprep.subr.bf16.mxu0 0
      %2110 = vmatpush1.bf16.msra.mxu0 0
      %2111 = vmatprep.subr.bf16.mxu0 0
      %2112 = vmatpush1.bf16.msra.mxu0 0
      %2113 = vmatprep.subr.bf16.mxu0 0
      %2114 = vmatpush1.bf16.msra.mxu0 0
      %2115 = vmatprep.subr.bf16.mxu0 0
      %2116 = vmatpush1.bf16.msra.mxu0 %v591
      %2117 = vmatprep.subr.bf16.mxu0 0
      %2118 = vmatpush1.bf16.msra.mxu0 %v590
      %2119 = vmatprep.subr.bf16.mxu0 0
      %2120 = vmatpush1.bf16.msra.mxu0 %v589
      %2121 = vmatprep.subr.bf16.mxu0 0
      %2122 = vmatpush1.bf16.msra.mxu0 %v588
      %2123 = vmatprep.subr.bf16.mxu0 0
      %2124 = vmatpush2.bf16.msra.mxu0 0
      %2125 = vmatprep.subr.bf16.mxu0 0
      %2126 = vmatpush2.bf16.msra.mxu0 0
      %2127 = vmatprep.subr.bf16.mxu0 0
      %2128 = vmatpush2.bf16.msra.mxu0 0
      %2129 = vmatprep.subr.bf16.mxu0 0
      %2130 = vmatpush2.bf16.msra.mxu0 0
      %2131 = vmatprep.subr.bf16.mxu0 0
      %2132 = vmatpush2.bf16.msra.mxu0 0
      %2133 = vmatprep.subr.bf16.mxu0 0
      %2134 = vmatpush2.bf16.msra.mxu0 0
      %2135 = vmatprep.subr.bf16.mxu0 0
      %2136 = vmatpush2.bf16.msra.mxu0 0
      %2137 = vmatprep.subr.bf16.mxu0 0
      %2138 = vmatpush2.bf16.msra.mxu0 0
      %2139 = vmatprep.mubr.bf16.mxu0 0
      %2140 = vmatmul.mubr.bf16.gmra.mxu0 %v2105
      %v2141 = vpop.f32.mrf.mxu0
      %v2142 = vadd.f32 0.0, %v2141
      %v2143 = vpop.f32.mrf.mxu0
      %v2144 = vpop.f32.mrf.mxu0
      %v2145 = vadd.f32 0.0, %v2144
      %v2146 = vpop.f32.mrf.mxu0
      %2147 = vdwg.mxu0
      %v2148 = vpack.c.bf16 %v2145, %v2142
      %s2149 = scalar_lea.vmem %s4, 208
      %v2150 = vld [vmem:[%s2149] sm:$0xf]
      %v2151 = vld [vmem:[%s2149 + $0x4] sm:$0xf]
      %v2152 = vld [vmem:[%s2149 + $0x8] sm:$0xf]
      %v2153 = vld [vmem:[%s2149 + $0xc] sm:$0xf]
      %v2158 = vunpack.c.l.b16 %v2150
      %v2159 = vunpack.c.l.b16 %v2151
      %v2160 = vunpack.c.l.b16 %v2152
      %v2161 = vunpack.c.l.b16 %v2153
      %v2162 = vpack.c.b16 %v2159, %v2158
      %v2163 = vpack.c.b16 %v2161, %v2160
      %v2167 = vsel %vm719, %v2148, 0
      %2169 = vmatprep.subr.bf16.mxu0 0
      %2170 = vmatpush1.bf16.msra.mxu0 0
      %2171 = vmatprep.subr.bf16.mxu0 0
      %2172 = vmatpush1.bf16.msra.mxu0 0
      %2173 = vmatprep.subr.bf16.mxu0 0
      %2174 = vmatpush1.bf16.msra.mxu0 0
      %2175 = vmatprep.subr.bf16.mxu0 0
      %2176 = vmatpush1.bf16.msra.mxu0 0
      %2177 = vmatprep.subr.bf16.mxu0 0
      %2178 = vmatpush1.bf16.msra.mxu0 0
      %2179 = vmatprep.subr.bf16.mxu0 0
      %2180 = vmatpush1.bf16.msra.mxu0 0
      %2181 = vmatprep.subr.bf16.mxu0 0
      %2182 = vmatpush1.bf16.msra.mxu0 %v2163
      %2183 = vmatprep.subr.bf16.mxu0 0
      %2184 = vmatpush1.bf16.msra.mxu0 %v2162
      %2185 = vmatprep.subr.bf16.mxu0 0
      %2186 = vmatpush2.bf16.msra.mxu0 0
      %2187 = vmatprep.subr.bf16.mxu0 0
      %2188 = vmatpush2.bf16.msra.mxu0 0
      %2189 = vmatprep.subr.bf16.mxu0 0
      %2190 = vmatpush2.bf16.msra.mxu0 0
      %2191 = vmatprep.subr.bf16.mxu0 0
      %2192 = vmatpush2.bf16.msra.mxu0 0
      %2193 = vmatprep.subr.bf16.mxu0 0
      %2194 = vmatpush2.bf16.msra.mxu0 0
      %2195 = vmatprep.subr.bf16.mxu0 0
      %2196 = vmatpush2.bf16.msra.mxu0 0
      %2197 = vmatprep.subr.bf16.mxu0 0
      %2198 = vmatpush2.bf16.msra.mxu0 0
      %2199 = vmatprep.subr.bf16.mxu0 0
      %2200 = vmatpush2.bf16.msra.mxu0 0
      %2201 = vmatprep.mubr.bf16.mxu0 0
      %2202 = vmatmul.mubr.bf16.gmra.mxu0 %v2167
      %v2203 = vpop.f32.mrf.mxu0
      %v2204 = vadd.f32 0.0, %v2203
      %v2205 = vpop.f32.mrf.mxu0
      %v2206 = vpop.f32.mrf.mxu0
      %v2207 = vadd.f32 0.0, %v2206
      %v2208 = vpop.f32.mrf.mxu0
      %2209 = vdwg.mxu0
      %v2210 = vadd.f32 %v2094, %v2204
      %v2211 = vadd.f32 %v2095, %v2207
      %s2212 = scalar_lea.vmem %s3, 112
      %v2213 = vld [vmem:[%s2212] sm:$0xf]
      %v2214 = vld [vmem:[%s2212 + $0x4] sm:$0xf]
      %v2217 = vunpack.c.l.b16 %v2213
      %v2218 = vunpack.c.l.b16 %v2214
      %v2219 = vpack.c.b16 %v2218, %v2217
      %v2221 = vsel %vm599, %v2219, 0
      %2223 = vmatprep.subr.bf16.mxu0 0
      %2224 = vmatpush1.bf16.msra.mxu0 0
      %2225 = vmatprep.subr.bf16.mxu0 0
      %2226 = vmatpush1.bf16.msra.mxu0 0
      %2227 = vmatprep.subr.bf16.mxu0 0
      %2228 = vmatpush1.bf16.msra.mxu0 0
      %2229 = vmatprep.subr.bf16.mxu0 0
      %2230 = vmatpush1.bf16.msra.mxu0 0
      %2231 = vmatprep.subr.bf16.mxu0 0
      %2232 = vmatpush1.bf16.msra.mxu0 %v591
      %2233 = vmatprep.subr.bf16.mxu0 0
      %2234 = vmatpush1.bf16.msra.mxu0 %v590
      %2235 = vmatprep.subr.bf16.mxu0 0
      %2236 = vmatpush1.bf16.msra.mxu0 %v589
      %2237 = vmatprep.subr.bf16.mxu0 0
      %2238 = vmatpush1.bf16.msra.mxu0 %v588
      %2239 = vmatprep.subr.bf16.mxu0 0
      %2240 = vmatpush2.bf16.msra.mxu0 0
      %2241 = vmatprep.subr.bf16.mxu0 0
      %2242 = vmatpush2.bf16.msra.mxu0 0
      %2243 = vmatprep.subr.bf16.mxu0 0
      %2244 = vmatpush2.bf16.msra.mxu0 0
      %2245 = vmatprep.subr.bf16.mxu0 0
      %2246 = vmatpush2.bf16.msra.mxu0 0
      %2247 = vmatprep.subr.bf16.mxu0 0
      %2248 = vmatpush2.bf16.msra.mxu0 0
      %2249 = vmatprep.subr.bf16.mxu0 0
      %2250 = vmatpush2.bf16.msra.mxu0 0
      %2251 = vmatprep.subr.bf16.mxu0 0
      %2252 = vmatpush2.bf16.msra.mxu0 0
      %2253 = vmatprep.subr.bf16.mxu0 0
      %2254 = vmatpush2.bf16.msra.mxu0 0
      %2255 = vmatprep.mubr.bf16.mxu0 0
      %2256 = vmatmul.mubr.bf16.gmra.mxu0 %v2221
      %v2257 = vpop.f32.mrf.mxu0
      %v2258 = vadd.f32 0.0, %v2257
      %v2259 = vpop.f32.mrf.mxu0
      %v2260 = vpop.f32.mrf.mxu0
      %v2261 = vadd.f32 0.0, %v2260
      %v2262 = vpop.f32.mrf.mxu0
      %2263 = vdwg.mxu0
      %v2264 = vpack.c.bf16 %v2261, %v2258
      %s2265 = scalar_lea.vmem %s4, 224
      %v2266 = vld [vmem:[%s2265] sm:$0xf]
      %v2267 = vld [vmem:[%s2265 + $0x4] sm:$0xf]
      %v2268 = vld [vmem:[%s2265 + $0x8] sm:$0xf]
      %v2269 = vld [vmem:[%s2265 + $0xc] sm:$0xf]
      %v2274 = vunpack.c.l.b16 %v2266
      %v2275 = vunpack.c.l.b16 %v2267
      %v2276 = vunpack.c.l.b16 %v2268
      %v2277 = vunpack.c.l.b16 %v2269
      %v2278 = vpack.c.b16 %v2275, %v2274
      %v2279 = vpack.c.b16 %v2277, %v2276
      %v2283 = vsel %vm719, %v2264, 0
      %2285 = vmatprep.subr.bf16.mxu0 0
      %2286 = vmatpush1.bf16.msra.mxu0 0
      %2287 = vmatprep.subr.bf16.mxu0 0
      %2288 = vmatpush1.bf16.msra.mxu0 0
      %2289 = vmatprep.subr.bf16.mxu0 0
      %2290 = vmatpush1.bf16.msra.mxu0 0
      %2291 = vmatprep.subr.bf16.mxu0 0
      %2292 = vmatpush1.bf16.msra.mxu0 0
      %2293 = vmatprep.subr.bf16.mxu0 0
      %2294 = vmatpush1.bf16.msra.mxu0 0
      %2295 = vmatprep.subr.bf16.mxu0 0
      %2296 = vmatpush1.bf16.msra.mxu0 0
      %2297 = vmatprep.subr.bf16.mxu0 0
      %2298 = vmatpush1.bf16.msra.mxu0 %v2279
      %2299 = vmatprep.subr.bf16.mxu0 0
      %2300 = vmatpush1.bf16.msra.mxu0 %v2278
      %2301 = vmatprep.subr.bf16.mxu0 0
      %2302 = vmatpush2.bf16.msra.mxu0 0
      %2303 = vmatprep.subr.bf16.mxu0 0
      %2304 = vmatpush2.bf16.msra.mxu0 0
      %2305 = vmatprep.subr.bf16.mxu0 0
      %2306 = vmatpush2.bf16.msra.mxu0 0
      %2307 = vmatprep.subr.bf16.mxu0 0
      %2308 = vmatpush2.bf16.msra.mxu0 0
      %2309 = vmatprep.subr.bf16.mxu0 0
      %2310 = vmatpush2.bf16.msra.mxu0 0
      %2311 = vmatprep.subr.bf16.mxu0 0
      %2312 = vmatpush2.bf16.msra.mxu0 0
      %2313 = vmatprep.subr.bf16.mxu0 0
      %2314 = vmatpush2.bf16.msra.mxu0 0
      %2315 = vmatprep.subr.bf16.mxu0 0
      %2316 = vmatpush2.bf16.msra.mxu0 0
      %2317 = vmatprep.mubr.bf16.mxu0 0
      %2318 = vmatmul.mubr.bf16.gmra.mxu0 %v2283
      %v2319 = vpop.f32.mrf.mxu0
      %v2320 = vadd.f32 0.0, %v2319
      %v2321 = vpop.f32.mrf.mxu0
      %v2322 = vpop.f32.mrf.mxu0
      %v2323 = vadd.f32 0.0, %v2322
      %v2324 = vpop.f32.mrf.mxu0
      %2325 = vdwg.mxu0
      %v2326 = vadd.f32 %v2210, %v2320
      %v2327 = vadd.f32 %v2211, %v2323
      %s2328 = scalar_lea.vmem %s3, 120
      %v2329 = vld [vmem:[%s2328] sm:$0xf]
      %v2330 = vld [vmem:[%s2328 + $0x4] sm:$0xf]
      %v2333 = vunpack.c.l.b16 %v2329
      %v2334 = vunpack.c.l.b16 %v2330
      %v2335 = vpack.c.b16 %v2334, %v2333
      %v2337 = vsel %vm599, %v2335, 0
      %2339 = vmatprep.subr.bf16.mxu0 0
      %2340 = vmatpush1.bf16.msra.mxu0 0
      %2341 = vmatprep.subr.bf16.mxu0 0
      %2342 = vmatpush1.bf16.msra.mxu0 0
      %2343 = vmatprep.subr.bf16.mxu0 0
      %2344 = vmatpush1.bf16.msra.mxu0 0
      %2345 = vmatprep.subr.bf16.mxu0 0
      %2346 = vmatpush1.bf16.msra.mxu0 0
      %2347 = vmatprep.subr.bf16.mxu0 0
      %2348 = vmatpush1.bf16.msra.mxu0 %v591
      %2349 = vmatprep.subr.bf16.mxu0 0
      %2350 = vmatpush1.bf16.msra.mxu0 %v590
      %2351 = vmatprep.subr.bf16.mxu0 0
      %2352 = vmatpush1.bf16.msra.mxu0 %v589
      %2353 = vmatprep.subr.bf16.mxu0 0
      %2354 = vmatpush1.bf16.msra.mxu0 %v588
      %2355 = vmatprep.subr.bf16.mxu0 0
      %2356 = vmatpush2.bf16.msra.mxu0 0
      %2357 = vmatprep.subr.bf16.mxu0 0
      %2358 = vmatpush2.bf16.msra.mxu0 0
      %2359 = vmatprep.subr.bf16.mxu0 0
      %2360 = vmatpush2.bf16.msra.mxu0 0
      %2361 = vmatprep.subr.bf16.mxu0 0
      %2362 = vmatpush2.bf16.msra.mxu0 0
      %2363 = vmatprep.subr.bf16.mxu0 0
      %2364 = vmatpush2.bf16.msra.mxu0 0
      %2365 = vmatprep.subr.bf16.mxu0 0
      %2366 = vmatpush2.bf16.msra.mxu0 0
      %2367 = vmatprep.subr.bf16.mxu0 0
      %2368 = vmatpush2.bf16.msra.mxu0 0
      %2369 = vmatprep.subr.bf16.mxu0 0
      %2370 = vmatpush2.bf16.msra.mxu0 0
      %2371 = vmatprep.mubr.bf16.mxu0 0
      %2372 = vmatmul.mubr.bf16.gmra.mxu0 %v2337
      %v2373 = vpop.f32.mrf.mxu0
      %v2374 = vadd.f32 0.0, %v2373
      %v2375 = vpop.f32.mrf.mxu0
      %v2376 = vpop.f32.mrf.mxu0
      %v2377 = vadd.f32 0.0, %v2376
      %v2378 = vpop.f32.mrf.mxu0
      %2379 = vdwg.mxu0
      %v2380 = vpack.c.bf16 %v2377, %v2374
      %s2381 = scalar_lea.vmem %s4, 240
      %v2382 = vld [vmem:[%s2381] sm:$0xf]
      %v2383 = vld [vmem:[%s2381 + $0x4] sm:$0xf]
      %v2384 = vld [vmem:[%s2381 + $0x8] sm:$0xf]
      %v2385 = vld [vmem:[%s2381 + $0xc] sm:$0xf]
      %v2390 = vunpack.c.l.b16 %v2382
      %v2391 = vunpack.c.l.b16 %v2383
      %v2392 = vunpack.c.l.b16 %v2384
      %v2393 = vunpack.c.l.b16 %v2385
      %v2394 = vpack.c.b16 %v2391, %v2390
      %v2395 = vpack.c.b16 %v2393, %v2392
      %v2399 = vsel %vm719, %v2380, 0
      %2401 = vmatprep.subr.bf16.mxu0 0
      %2402 = vmatpush1.bf16.msra.mxu0 0
      %2403 = vmatprep.subr.bf16.mxu0 0
      %2404 = vmatpush1.bf16.msra.mxu0 0
      %2405 = vmatprep.subr.bf16.mxu0 0
      %2406 = vmatpush1.bf16.msra.mxu0 0
      %2407 = vmatprep.subr.bf16.mxu0 0
      %2408 = vmatpush1.bf16.msra.mxu0 0
      %2409 = vmatprep.subr.bf16.mxu0 0
      %2410 = vmatpush1.bf16.msra.mxu0 0
      %2411 = vmatprep.subr.bf16.mxu0 0
      %2412 = vmatpush1.bf16.msra.mxu0 0
      %2413 = vmatprep.subr.bf16.mxu0 0
      %2414 = vmatpush1.bf16.msra.mxu0 %v2395
      %2415 = vmatprep.subr.bf16.mxu0 0
      %2416 = vmatpush1.bf16.msra.mxu0 %v2394
      %2417 = vmatprep.subr.bf16.mxu0 0
      %2418 = vmatpush2.bf16.msra.mxu0 0
      %2419 = vmatprep.subr.bf16.mxu0 0
      %2420 = vmatpush2.bf16.msra.mxu0 0
      %2421 = vmatprep.subr.bf16.mxu0 0
      %2422 = vmatpush2.bf16.msra.mxu0 0
      %2423 = vmatprep.subr.bf16.mxu0 0
      %2424 = vmatpush2.bf16.msra.mxu0 0
      %2425 = vmatprep.subr.bf16.mxu0 0
      %2426 = vmatpush2.bf16.msra.mxu0 0
      %2427 = vmatprep.subr.bf16.mxu0 0
      %2428 = vmatpush2.bf16.msra.mxu0 0
      %2429 = vmatprep.subr.bf16.mxu0 0
      %2430 = vmatpush2.bf16.msra.mxu0 0
      %2431 = vmatprep.subr.bf16.mxu0 0
      %2432 = vmatpush2.bf16.msra.mxu0 0
      %2433 = vmatprep.mubr.bf16.mxu0 0
      %2434 = vmatmul.mubr.bf16.gmra.mxu0 %v2399
      %v2435 = vpop.f32.mrf.mxu0
      %v2436 = vadd.f32 0.0, %v2435
      %v2437 = vpop.f32.mrf.mxu0
      %v2438 = vpop.f32.mrf.mxu0
      %v2439 = vadd.f32 0.0, %v2438
      %v2440 = vpop.f32.mrf.mxu0
      %2441 = vdwg.mxu0
      %v2442 = vadd.f32 %v2326, %v2436
      %v2443 = vadd.f32 %v2327, %v2439
      %v2444 = vld [vmem:[%s5] sm:$0x1]
      %v2446 = vlaneseq
      %v2447 = vshrl.u32 %v2446, 7
      %v2448 = vsub.s32 0, %v2447
      %v2449 = vrot.slane %v2444, %v2448
      %v2451 = vadd.f32 %v2442, %v2449
      %v2452 = vadd.f32 %v2443, %v2449
      %v2453 = vmax.f32 %v2451, 0.0
      %v2454 = vmax.f32 %v2452, 0.0
      %v2455 = vpack.c.bf16 %v2454, %v2453
      %v2456 = vld [vmem:[%s6] sm:$0xf]
      %vm2457 = vcmask 130048
      %v2459 = vsel %vm2457, %v2456, 0
      %2461 = vmatprep.subr.bf16.mxu0 0
      %2462 = vmatpush1.bf16.msra.mxu0 0
      %2463 = vmatprep.subr.bf16.mxu0 0
      %2464 = vmatpush1.bf16.msra.mxu0 0
      %2465 = vmatprep.subr.bf16.mxu0 0
      %2466 = vmatpush1.bf16.msra.mxu0 0
      %2467 = vmatprep.subr.bf16.mxu0 0
      %2468 = vmatpush1.bf16.msra.mxu0 0
      %2469 = vmatprep.subr.bf16.mxu0 0
      %2470 = vmatpush1.bf16.msra.mxu0 0
      %2471 = vmatprep.subr.bf16.mxu0 0
      %2472 = vmatpush1.bf16.msra.mxu0 0
      %2473 = vmatprep.subr.bf16.mxu0 0
      %2474 = vmatpush1.bf16.msra.mxu0 0
      %2475 = vmatprep.subr.bf16.mxu0 0
      %2476 = vmatpush1.bf16.msra.mxu0 %v2455
      %2477 = vmatprep.subr.bf16.mxu0 0
      %2478 = vmatpush2.bf16.msra.mxu0 0
      %2479 = vmatprep.subr.bf16.mxu0 0
      %2480 = vmatpush2.bf16.msra.mxu0 0
      %2481 = vmatprep.subr.bf16.mxu0 0
      %2482 = vmatpush2.bf16.msra.mxu0 0
      %2483 = vmatprep.subr.bf16.mxu0 0
      %2484 = vmatpush2.bf16.msra.mxu0 0
      %2485 = vmatprep.subr.bf16.mxu0 0
      %2486 = vmatpush2.bf16.msra.mxu0 0
      %2487 = vmatprep.subr.bf16.mxu0 0
      %2488 = vmatpush2.bf16.msra.mxu0 0
      %2489 = vmatprep.subr.bf16.mxu0 0
      %2490 = vmatpush2.bf16.msra.mxu0 0
      %2491 = vmatprep.subr.bf16.mxu0 0
      %2492 = vmatpush2.bf16.msra.mxu0 0
      %2493 = vmatprep.mubr.bf16.mxu0 0
      %2494 = vmatmul.mubr.bf16.gmra.mxu0 %v2459
      %v2495 = vpop.f32.mrf.mxu0
      %v2496 = vadd.f32 0.0, %v2495
      %v2497 = vpop.f32.mrf.mxu0
      %v2498 = vpop.f32.mrf.mxu0
      %v2499 = vpop.f32.mrf.mxu0
      %2500 = vdwg.mxu0
      %v2501 = vpack.c.bf16 %v2496, %v2496
      %v2502 = vld [vmem:[%s7] sm:$0xf]
      %v2503 = vld [vmem:[%s7 + $0x4] sm:$0xf]
      %v2504 = vld [vmem:[%s7 + $0x8] sm:$0xf]
      %v2505 = vld [vmem:[%s7 + $0xc] sm:$0xf]
      %v2506 = vld [vmem:[%s7 + $0x10] sm:$0xf]
      %v2507 = vld [vmem:[%s7 + $0x14] sm:$0xf]
      %v2508 = vld [vmem:[%s7 + $0x18] sm:$0xf]
      %v2509 = vld [vmem:[%s7 + $0x1c] sm:$0xf]
      %s2510 = scalar_lea.vmem %s6, 4
      %v2511 = vld [vmem:[%s2510] sm:$0xf]
      %v2513 = vsel %vm2457, %v2511, 0
      %2515 = vmatprep.subr.bf16.mxu0 0
      %2516 = vmatpush1.bf16.msra.mxu0 0
      %2517 = vmatprep.subr.bf16.mxu0 0
      %2518 = vmatpush1.bf16.msra.mxu0 0
      %2519 = vmatprep.subr.bf16.mxu0 0
      %2520 = vmatpush1.bf16.msra.mxu0 0
      %2521 = vmatprep.subr.bf16.mxu0 0
      %2522 = vmatpush1.bf16.msra.mxu0 0
      %2523 = vmatprep.subr.bf16.mxu0 0
      %2524 = vmatpush1.bf16.msra.mxu0 0
      %2525 = vmatprep.subr.bf16.mxu0 0
      %2526 = vmatpush1.bf16.msra.mxu0 0
      %2527 = vmatprep.subr.bf16.mxu0 0
      %2528 = vmatpush1.bf16.msra.mxu0 0
      %2529 = vmatprep.subr.bf16.mxu0 0
      %2530 = vmatpush1.bf16.msra.mxu0 %v2455
      %2531 = vmatprep.subr.bf16.mxu0 0
      %2532 = vmatpush2.bf16.msra.mxu0 0
      %2533 = vmatprep.subr.bf16.mxu0 0
      %2534 = vmatpush2.bf16.msra.mxu0 0
      %2535 = vmatprep.subr.bf16.mxu0 0
      %2536 = vmatpush2.bf16.msra.mxu0 0
      %2537 = vmatprep.subr.bf16.mxu0 0
      %2538 = vmatpush2.bf16.msra.mxu0 0
      %2539 = vmatprep.subr.bf16.mxu0 0
      %2540 = vmatpush2.bf16.msra.mxu0 0
      %2541 = vmatprep.subr.bf16.mxu0 0
      %2542 = vmatpush2.bf16.msra.mxu0 0
      %2543 = vmatprep.subr.bf16.mxu0 0
      %2544 = vmatpush2.bf16.msra.mxu0 0
      %2545 = vmatprep.subr.bf16.mxu0 0
      %2546 = vmatpush2.bf16.msra.mxu0 0
      %2547 = vmatprep.mubr.bf16.mxu0 0
      %2548 = vmatmul.mubr.bf16.gmra.mxu0 %v2513
      %v2549 = vpop.f32.mrf.mxu0
      %v2550 = vadd.f32 0.0, %v2549
      %v2551 = vpop.f32.mrf.mxu0
      %v2552 = vpop.f32.mrf.mxu0
      %v2553 = vpop.f32.mrf.mxu0
      %2554 = vdwg.mxu0
      %v2555 = vpack.c.bf16 %v2550, %v2550
      %s2556 = scalar_lea.vmem %s7, 32
      %v2557 = vld [vmem:[%s2556] sm:$0xf]
      %v2558 = vld [vmem:[%s2556 + $0x4] sm:$0xf]
      %v2559 = vld [vmem:[%s2556 + $0x8] sm:$0xf]
      %v2560 = vld [vmem:[%s2556 + $0xc] sm:$0xf]
      %v2561 = vld [vmem:[%s2556 + $0x10] sm:$0xf]
      %v2562 = vld [vmem:[%s2556 + $0x14] sm:$0xf]
      %v2563 = vld [vmem:[%s2556 + $0x18] sm:$0xf]
      %v2564 = vld [vmem:[%s2556 + $0x1c] sm:$0xf]
      %v2573 = vunpack.c.l.b16 %v2557
      %v2574 = vunpack.c.l.b16 %v2558
      %v2575 = vunpack.c.l.b16 %v2559
      %v2576 = vunpack.c.l.b16 %v2560
      %v2577 = vunpack.c.l.b16 %v2561
      %v2578 = vunpack.c.l.b16 %v2562
      %v2579 = vunpack.c.l.b16 %v2563
      %v2580 = vunpack.c.l.b16 %v2564
      %v2581 = vpack.c.b16 %v2574, %v2573
      %v2582 = vpack.c.b16 %v2576, %v2575
      %v2583 = vpack.c.b16 %v2578, %v2577
      %v2584 = vpack.c.b16 %v2580, %v2579
      %v2590 = vsel %vm599, %v2555, 0
      %2592 = vmatprep.subr.bf16.mxu0 0
      %2593 = vmatpush1.bf16.msra.mxu0 0
      %2594 = vmatprep.subr.bf16.mxu0 0
      %2595 = vmatpush1.bf16.msra.mxu0 0
      %2596 = vmatprep.subr.bf16.mxu0 0
      %2597 = vmatpush1.bf16.msra.mxu0 0
      %2598 = vmatprep.subr.bf16.mxu0 0
      %2599 = vmatpush1.bf16.msra.mxu0 0
      %2600 = vmatprep.subr.bf16.mxu0 0
      %2601 = vmatpush1.bf16.msra.mxu0 %v2584
      %2602 = vmatprep.subr.bf16.mxu0 0
      %2603 = vmatpush1.bf16.msra.mxu0 %v2583
      %2604 = vmatprep.subr.bf16.mxu0 0
      %2605 = vmatpush1.bf16.msra.mxu0 %v2582
      %2606 = vmatprep.subr.bf16.mxu0 0
      %2607 = vmatpush1.bf16.msra.mxu0 %v2581
      %2608 = vmatprep.subr.bf16.mxu0 0
      %2609 = vmatpush2.bf16.msra.mxu0 0
      %2610 = vmatprep.subr.bf16.mxu0 0
      %2611 = vmatpush2.bf16.msra.mxu0 0
      %2612 = vmatprep.subr.bf16.mxu0 0
      %2613 = vmatpush2.bf16.msra.mxu0 0
      %2614 = vmatprep.subr.bf16.mxu0 0
      %2615 = vmatpush2.bf16.msra.mxu0 0
      %2616 = vmatprep.subr.bf16.mxu0 0
      %2617 = vmatpush2.bf16.msra.mxu0 0
      %2618 = vmatprep.subr.bf16.mxu0 0
      %2619 = vmatpush2.bf16.msra.mxu0 0
      %2620 = vmatprep.subr.bf16.mxu0 0
      %2621 = vmatpush2.bf16.msra.mxu0 0
      %2622 = vmatprep.subr.bf16.mxu0 0
      %2623 = vmatpush2.bf16.msra.mxu0 0
      %2624 = vmatprep.mubr.bf16.mxu0 0
      %2625 = vmatmul.mubr.bf16.gmra.mxu0 %v2590
      %v2626 = vpop.f32.mrf.mxu0
      %v2627 = vadd.f32 0.0, %v2626
      %v2628 = vpop.f32.mrf.mxu0
      %v2629 = vpop.f32.mrf.mxu0
      %v2630 = vpop.f32.mrf.mxu0
      %2631 = vdwg.mxu0
      %v2640 = vunpack.c.l.b16 %v2502
      %v2641 = vunpack.c.l.b16 %v2503
      %v2642 = vunpack.c.l.b16 %v2504
      %v2643 = vunpack.c.l.b16 %v2505
      %v2644 = vunpack.c.l.b16 %v2506
      %v2645 = vunpack.c.l.b16 %v2507
      %v2646 = vunpack.c.l.b16 %v2508
      %v2647 = vunpack.c.l.b16 %v2509
      %v2648 = vpack.c.b16 %v2641, %v2640
      %v2649 = vpack.c.b16 %v2643, %v2642
      %v2650 = vpack.c.b16 %v2645, %v2644
      %v2651 = vpack.c.b16 %v2647, %v2646
      %v2657 = vsel %vm599, %v2501, 0
      %2659 = vmatprep.subr.bf16.mxu0 0
      %2660 = vmatpush1.bf16.msra.mxu0 0
      %2661 = vmatprep.subr.bf16.mxu0 0
      %2662 = vmatpush1.bf16.msra.mxu0 0
      %2663 = vmatprep.subr.bf16.mxu0 0
      %2664 = vmatpush1.bf16.msra.mxu0 0
      %2665 = vmatprep.subr.bf16.mxu0 0
      %2666 = vmatpush1.bf16.msra.mxu0 0
      %2667 = vmatprep.subr.bf16.mxu0 0
      %2668 = vmatpush1.bf16.msra.mxu0 %v2651
      %2669 = vmatprep.subr.bf16.mxu0 0
      %2670 = vmatpush1.bf16.msra.mxu0 %v2650
      %2671 = vmatprep.subr.bf16.mxu0 0
      %2672 = vmatpush1.bf16.msra.mxu0 %v2649
      %2673 = vmatprep.subr.bf16.mxu0 0
      %2674 = vmatpush1.bf16.msra.mxu0 %v2648
      %2675 = vmatprep.subr.bf16.mxu0 0
      %2676 = vmatpush2.bf16.msra.mxu0 0
      %2677 = vmatprep.subr.bf16.mxu0 0
      %2678 = vmatpush2.bf16.msra.mxu0 0
      %2679 = vmatprep.subr.bf16.mxu0 0
      %2680 = vmatpush2.bf16.msra.mxu0 0
      %2681 = vmatprep.subr.bf16.mxu0 0
      %2682 = vmatpush2.bf16.msra.mxu0 0
      %2683 = vmatprep.subr.bf16.mxu0 0
      %2684 = vmatpush2.bf16.msra.mxu0 0
      %2685 = vmatprep.subr.bf16.mxu0 0
      %2686 = vmatpush2.bf16.msra.mxu0 0
      %2687 = vmatprep.subr.bf16.mxu0 0
      %2688 = vmatpush2.bf16.msra.mxu0 0
      %2689 = vmatprep.subr.bf16.mxu0 0
      %2690 = vmatpush2.bf16.msra.mxu0 0
      %2691 = vmatprep.mubr.bf16.mxu0 0
      %2692 = vmatmul.mubr.bf16.gmra.mxu0 %v2657
      %v2693 = vpop.f32.mrf.mxu0
      %v2694 = vadd.f32 %v2627, %v2693
      %v2695 = vpop.f32.mrf.mxu0
      %v2696 = vpop.f32.mrf.mxu0
      %v2697 = vpop.f32.mrf.mxu0
      %2698 = vdwg.mxu0
      %s2699 = scalar_lea.vmem %s6, 8
      %v2700 = vld [vmem:[%s2699] sm:$0xf]
      %v2702 = vsel %vm2457, %v2700, 0
      %2704 = vmatprep.subr.bf16.mxu0 0
      %2705 = vmatpush1.bf16.msra.mxu0 0
      %2706 = vmatprep.subr.bf16.mxu0 0
      %2707 = vmatpush1.bf16.msra.mxu0 0
      %2708 = vmatprep.subr.bf16.mxu0 0
      %2709 = vmatpush1.bf16.msra.mxu0 0
      %2710 = vmatprep.subr.bf16.mxu0 0
      %2711 = vmatpush1.bf16.msra.mxu0 0
      %2712 = vmatprep.subr.bf16.mxu0 0
      %2713 = vmatpush1.bf16.msra.mxu0 0
      %2714 = vmatprep.subr.bf16.mxu0 0
      %2715 = vmatpush1.bf16.msra.mxu0 0
      %2716 = vmatprep.subr.bf16.mxu0 0
      %2717 = vmatpush1.bf16.msra.mxu0 0
      %2718 = vmatprep.subr.bf16.mxu0 0
      %2719 = vmatpush1.bf16.msra.mxu0 %v2455
      %2720 = vmatprep.subr.bf16.mxu0 0
      %2721 = vmatpush2.bf16.msra.mxu0 0
      %2722 = vmatprep.subr.bf16.mxu0 0
      %2723 = vmatpush2.bf16.msra.mxu0 0
      %2724 = vmatprep.subr.bf16.mxu0 0
      %2725 = vmatpush2.bf16.msra.mxu0 0
      %2726 = vmatprep.subr.bf16.mxu0 0
      %2727 = vmatpush2.bf16.msra.mxu0 0
      %2728 = vmatprep.subr.bf16.mxu0 0
      %2729 = vmatpush2.bf16.msra.mxu0 0
      %2730 = vmatprep.subr.bf16.mxu0 0
      %2731 = vmatpush2.bf16.msra.mxu0 0
      %2732 = vmatprep.subr.bf16.mxu0 0
      %2733 = vmatpush2.bf16.msra.mxu0 0
      %2734 = vmatprep.subr.bf16.mxu0 0
      %2735 = vmatpush2.bf16.msra.mxu0 0
      %2736 = vmatprep.mubr.bf16.mxu0 0
      %2737 = vmatmul.mubr.bf16.gmra.mxu0 %v2702
      %v2738 = vpop.f32.mrf.mxu0
      %v2739 = vadd.f32 0.0, %v2738
      %v2740 = vpop.f32.mrf.mxu0
      %v2741 = vpop.f32.mrf.mxu0
      %v2742 = vpop.f32.mrf.mxu0
      %2743 = vdwg.mxu0
      %v2744 = vpack.c.bf16 %v2739, %v2739
      %s2745 = scalar_lea.vmem %s7, 64
      %v2746 = vld [vmem:[%s2745] sm:$0xf]
      %v2747 = vld [vmem:[%s2745 + $0x4] sm:$0xf]
      %v2748 = vld [vmem:[%s2745 + $0x8] sm:$0xf]
      %v2749 = vld [vmem:[%s2745 + $0xc] sm:$0xf]
      %v2750 = vld [vmem:[%s2745 + $0x10] sm:$0xf]
      %v2751 = vld [vmem:[%s2745 + $0x14] sm:$0xf]
      %v2752 = vld [vmem:[%s2745 + $0x18] sm:$0xf]
      %v2753 = vld [vmem:[%s2745 + $0x1c] sm:$0xf]
      %v2762 = vunpack.c.l.b16 %v2746
      %v2763 = vunpack.c.l.b16 %v2747
      %v2764 = vunpack.c.l.b16 %v2748
      %v2765 = vunpack.c.l.b16 %v2749
      %v2766 = vunpack.c.l.b16 %v2750
      %v2767 = vunpack.c.l.b16 %v2751
      %v2768 = vunpack.c.l.b16 %v2752
      %v2769 = vunpack.c.l.b16 %v2753
      %v2770 = vpack.c.b16 %v2763, %v2762
      %v2771 = vpack.c.b16 %v2765, %v2764
      %v2772 = vpack.c.b16 %v2767, %v2766
      %v2773 = vpack.c.b16 %v2769, %v2768
      %v2779 = vsel %vm599, %v2744, 0
      %2781 = vmatprep.subr.bf16.mxu0 0
      %2782 = vmatpush1.bf16.msra.mxu0 0
      %2783 = vmatprep.subr.bf16.mxu0 0
      %2784 = vmatpush1.bf16.msra.mxu0 0
      %2785 = vmatprep.subr.bf16.mxu0 0
      %2786 = vmatpush1.bf16.msra.mxu0 0
      %2787 = vmatprep.subr.bf16.mxu0 0
      %2788 = vmatpush1.bf16.msra.mxu0 0
      %2789 = vmatprep.subr.bf16.mxu0 0
      %2790 = vmatpush1.bf16.msra.mxu0 %v2773
      %2791 = vmatprep.subr.bf16.mxu0 0
      %2792 = vmatpush1.bf16.msra.mxu0 %v2772
      %2793 = vmatprep.subr.bf16.mxu0 0
      %2794 = vmatpush1.bf16.msra.mxu0 %v2771
      %2795 = vmatprep.subr.bf16.mxu0 0
      %2796 = vmatpush1.bf16.msra.mxu0 %v2770
      %2797 = vmatprep.subr.bf16.mxu0 0
      %2798 = vmatpush2.bf16.msra.mxu0 0
      %2799 = vmatprep.subr.bf16.mxu0 0
      %2800 = vmatpush2.bf16.msra.mxu0 0
      %2801 = vmatprep.subr.bf16.mxu0 0
      %2802 = vmatpush2.bf16.msra.mxu0 0
      %2803 = vmatprep.subr.bf16.mxu0 0
      %2804 = vmatpush2.bf16.msra.mxu0 0
      %2805 = vmatprep.subr.bf16.mxu0 0
      %2806 = vmatpush2.bf16.msra.mxu0 0
      %2807 = vmatprep.subr.bf16.mxu0 0
      %2808 = vmatpush2.bf16.msra.mxu0 0
      %2809 = vmatprep.subr.bf16.mxu0 0
      %2810 = vmatpush2.bf16.msra.mxu0 0
      %2811 = vmatprep.subr.bf16.mxu0 0
      %2812 = vmatpush2.bf16.msra.mxu0 0
      %2813 = vmatprep.mubr.bf16.mxu0 0
      %2814 = vmatmul.mubr.bf16.gmra.mxu0 %v2779
      %v2815 = vpop.f32.mrf.mxu0
      %v2816 = vadd.f32 0.0, %v2815
      %v2817 = vpop.f32.mrf.mxu0
      %v2818 = vpop.f32.mrf.mxu0
      %v2819 = vpop.f32.mrf.mxu0
      %2820 = vdwg.mxu0
      %v2821 = vadd.f32 %v2694, %v2816
      %s2822 = scalar_lea.vmem %s6, 12
      %v2823 = vld [vmem:[%s2822] sm:$0xf]
      %v2825 = vsel %vm2457, %v2823, 0
      %2827 = vmatprep.subr.bf16.mxu0 0
      %2828 = vmatpush1.bf16.msra.mxu0 0
      %2829 = vmatprep.subr.bf16.mxu0 0
      %2830 = vmatpush1.bf16.msra.mxu0 0
      %2831 = vmatprep.subr.bf16.mxu0 0
      %2832 = vmatpush1.bf16.msra.mxu0 0
      %2833 = vmatprep.subr.bf16.mxu0 0
      %2834 = vmatpush1.bf16.msra.mxu0 0
      %2835 = vmatprep.subr.bf16.mxu0 0
      %2836 = vmatpush1.bf16.msra.mxu0 0
      %2837 = vmatprep.subr.bf16.mxu0 0
      %2838 = vmatpush1.bf16.msra.mxu0 0
      %2839 = vmatprep.subr.bf16.mxu0 0
      %2840 = vmatpush1.bf16.msra.mxu0 0
      %2841 = vmatprep.subr.bf16.mxu0 0
      %2842 = vmatpush1.bf16.msra.mxu0 %v2455
      %2843 = vmatprep.subr.bf16.mxu0 0
      %2844 = vmatpush2.bf16.msra.mxu0 0
      %2845 = vmatprep.subr.bf16.mxu0 0
      %2846 = vmatpush2.bf16.msra.mxu0 0
      %2847 = vmatprep.subr.bf16.mxu0 0
      %2848 = vmatpush2.bf16.msra.mxu0 0
      %2849 = vmatprep.subr.bf16.mxu0 0
      %2850 = vmatpush2.bf16.msra.mxu0 0
      %2851 = vmatprep.subr.bf16.mxu0 0
      %2852 = vmatpush2.bf16.msra.mxu0 0
      %2853 = vmatprep.subr.bf16.mxu0 0
      %2854 = vmatpush2.bf16.msra.mxu0 0
      %2855 = vmatprep.subr.bf16.mxu0 0
      %2856 = vmatpush2.bf16.msra.mxu0 0
      %2857 = vmatprep.subr.bf16.mxu0 0
      %2858 = vmatpush2.bf16.msra.mxu0 0
      %2859 = vmatprep.mubr.bf16.mxu0 0
      %2860 = vmatmul.mubr.bf16.gmra.mxu0 %v2825
      %v2861 = vpop.f32.mrf.mxu0
      %v2862 = vadd.f32 0.0, %v2861
      %v2863 = vpop.f32.mrf.mxu0
      %v2864 = vpop.f32.mrf.mxu0
      %v2865 = vpop.f32.mrf.mxu0
      %2866 = vdwg.mxu0
      %v2867 = vpack.c.bf16 %v2862, %v2862
      %s2868 = scalar_lea.vmem %s7, 96
      %v2869 = vld [vmem:[%s2868] sm:$0xf]
      %v2870 = vld [vmem:[%s2868 + $0x4] sm:$0xf]
      %v2871 = vld [vmem:[%s2868 + $0x8] sm:$0xf]
      %v2872 = vld [vmem:[%s2868 + $0xc] sm:$0xf]
      %v2873 = vld [vmem:[%s2868 + $0x10] sm:$0xf]
      %v2874 = vld [vmem:[%s2868 + $0x14] sm:$0xf]
      %v2875 = vld [vmem:[%s2868 + $0x18] sm:$0xf]
      %v2876 = vld [vmem:[%s2868 + $0x1c] sm:$0xf]
      %v2885 = vunpack.c.l.b16 %v2869
      %v2886 = vunpack.c.l.b16 %v2870
      %v2887 = vunpack.c.l.b16 %v2871
      %v2888 = vunpack.c.l.b16 %v2872
      %v2889 = vunpack.c.l.b16 %v2873
      %v2890 = vunpack.c.l.b16 %v2874
      %v2891 = vunpack.c.l.b16 %v2875
      %v2892 = vunpack.c.l.b16 %v2876
      %v2893 = vpack.c.b16 %v2886, %v2885
      %v2894 = vpack.c.b16 %v2888, %v2887
      %v2895 = vpack.c.b16 %v2890, %v2889
      %v2896 = vpack.c.b16 %v2892, %v2891
      %v2902 = vsel %vm599, %v2867, 0
      %2904 = vmatprep.subr.bf16.mxu0 0
      %2905 = vmatpush1.bf16.msra.mxu0 0
      %2906 = vmatprep.subr.bf16.mxu0 0
      %2907 = vmatpush1.bf16.msra.mxu0 0
      %2908 = vmatprep.subr.bf16.mxu0 0
      %2909 = vmatpush1.bf16.msra.mxu0 0
      %2910 = vmatprep.subr.bf16.mxu0 0
      %2911 = vmatpush1.bf16.msra.mxu0 0
      %2912 = vmatprep.subr.bf16.mxu0 0
      %2913 = vmatpush1.bf16.msra.mxu0 %v2896
      %2914 = vmatprep.subr.bf16.mxu0 0
      %2915 = vmatpush1.bf16.msra.mxu0 %v2895
      %2916 = vmatprep.subr.bf16.mxu0 0
      %2917 = vmatpush1.bf16.msra.mxu0 %v2894
      %2918 = vmatprep.subr.bf16.mxu0 0
      %2919 = vmatpush1.bf16.msra.mxu0 %v2893
      %2920 = vmatprep.subr.bf16.mxu0 0
      %2921 = vmatpush2.bf16.msra.mxu0 0
      %2922 = vmatprep.subr.bf16.mxu0 0
      %2923 = vmatpush2.bf16.msra.mxu0 0
      %2924 = vmatprep.subr.bf16.mxu0 0
      %2925 = vmatpush2.bf16.msra.mxu0 0
      %2926 = vmatprep.subr.bf16.mxu0 0
      %2927 = vmatpush2.bf16.msra.mxu0 0
      %2928 = vmatprep.subr.bf16.mxu0 0
      %2929 = vmatpush2.bf16.msra.mxu0 0
      %2930 = vmatprep.subr.bf16.mxu0 0
      %2931 = vmatpush2.bf16.msra.mxu0 0
      %2932 = vmatprep.subr.bf16.mxu0 0
      %2933 = vmatpush2.bf16.msra.mxu0 0
      %2934 = vmatprep.subr.bf16.mxu0 0
      %2935 = vmatpush2.bf16.msra.mxu0 0
      %2936 = vmatprep.mubr.bf16.mxu0 0
      %2937 = vmatmul.mubr.bf16.gmra.mxu0 %v2902
      %v2938 = vpop.f32.mrf.mxu0
      %v2939 = vadd.f32 0.0, %v2938
      %v2940 = vpop.f32.mrf.mxu0
      %v2941 = vpop.f32.mrf.mxu0
      %v2942 = vpop.f32.mrf.mxu0
      %2943 = vdwg.mxu0
      %v2944 = vadd.f32 %v2821, %v2939
      %s2945 = scalar_lea.vmem %s6, 16
      %v2946 = vld [vmem:[%s2945] sm:$0xf]
      %v2948 = vsel %vm2457, %v2946, 0
      %2950 = vmatprep.subr.bf16.mxu0 0
      %2951 = vmatpush1.bf16.msra.mxu0 0
      %2952 = vmatprep.subr.bf16.mxu0 0
      %2953 = vmatpush1.bf16.msra.mxu0 0
      %2954 = vmatprep.subr.bf16.mxu0 0
      %2955 = vmatpush1.bf16.msra.mxu0 0
      %2956 = vmatprep.subr.bf16.mxu0 0
      %2957 = vmatpush1.bf16.msra.mxu0 0
      %2958 = vmatprep.subr.bf16.mxu0 0
      %2959 = vmatpush1.bf16.msra.mxu0 0
      %2960 = vmatprep.subr.bf16.mxu0 0
      %2961 = vmatpush1.bf16.msra.mxu0 0
      %2962 = vmatprep.subr.bf16.mxu0 0
      %2963 = vmatpush1.bf16.msra.mxu0 0
      %2964 = vmatprep.subr.bf16.mxu0 0
      %2965 = vmatpush1.bf16.msra.mxu0 %v2455
      %2966 = vmatprep.subr.bf16.mxu0 0
      %2967 = vmatpush2.bf16.msra.mxu0 0
      %2968 = vmatprep.subr.bf16.mxu0 0
      %2969 = vmatpush2.bf16.msra.mxu0 0
      %2970 = vmatprep.subr.bf16.mxu0 0
      %2971 = vmatpush2.bf16.msra.mxu0 0
      %2972 = vmatprep.subr.bf16.mxu0 0
      %2973 = vmatpush2.bf16.msra.mxu0 0
      %2974 = vmatprep.subr.bf16.mxu0 0
      %2975 = vmatpush2.bf16.msra.mxu0 0
      %2976 = vmatprep.subr.bf16.mxu0 0
      %2977 = vmatpush2.bf16.msra.mxu0 0
      %2978 = vmatprep.subr.bf16.mxu0 0
      %2979 = vmatpush2.bf16.msra.mxu0 0
      %2980 = vmatprep.subr.bf16.mxu0 0
      %2981 = vmatpush2.bf16.msra.mxu0 0
      %2982 = vmatprep.mubr.bf16.mxu0 0
      %2983 = vmatmul.mubr.bf16.gmra.mxu0 %v2948
      %v2984 = vpop.f32.mrf.mxu0
      %v2985 = vadd.f32 0.0, %v2984
      %v2986 = vpop.f32.mrf.mxu0
      %v2987 = vpop.f32.mrf.mxu0
      %v2988 = vpop.f32.mrf.mxu0
      %2989 = vdwg.mxu0
      %v2990 = vpack.c.bf16 %v2985, %v2985
      %s2991 = scalar_lea.vmem %s7, 128
      %v2992 = vld [vmem:[%s2991] sm:$0xf]
      %v2993 = vld [vmem:[%s2991 + $0x4] sm:$0xf]
      %v2994 = vld [vmem:[%s2991 + $0x8] sm:$0xf]
      %v2995 = vld [vmem:[%s2991 + $0xc] sm:$0xf]
      %v2996 = vld [vmem:[%s2991 + $0x10] sm:$0xf]
      %v2997 = vld [vmem:[%s2991 + $0x14] sm:$0xf]
      %v2998 = vld [vmem:[%s2991 + $0x18] sm:$0xf]
      %v2999 = vld [vmem:[%s2991 + $0x1c] sm:$0xf]
      %v3008 = vunpack.c.l.b16 %v2992
      %v3009 = vunpack.c.l.b16 %v2993
      %v3010 = vunpack.c.l.b16 %v2994
      %v3011 = vunpack.c.l.b16 %v2995
      %v3012 = vunpack.c.l.b16 %v2996
      %v3013 = vunpack.c.l.b16 %v2997
      %v3014 = vunpack.c.l.b16 %v2998
      %v3015 = vunpack.c.l.b16 %v2999
      %v3016 = vpack.c.b16 %v3009, %v3008
      %v3017 = vpack.c.b16 %v3011, %v3010
      %v3018 = vpack.c.b16 %v3013, %v3012
      %v3019 = vpack.c.b16 %v3015, %v3014
      %v3025 = vsel %vm599, %v2990, 0
      %3027 = vmatprep.subr.bf16.mxu0 0
      %3028 = vmatpush1.bf16.msra.mxu0 0
      %3029 = vmatprep.subr.bf16.mxu0 0
      %3030 = vmatpush1.bf16.msra.mxu0 0
      %3031 = vmatprep.subr.bf16.mxu0 0
      %3032 = vmatpush1.bf16.msra.mxu0 0
      %3033 = vmatprep.subr.bf16.mxu0 0
      %3034 = vmatpush1.bf16.msra.mxu0 0
      %3035 = vmatprep.subr.bf16.mxu0 0
      %3036 = vmatpush1.bf16.msra.mxu0 %v3019
      %3037 = vmatprep.subr.bf16.mxu0 0
      %3038 = vmatpush1.bf16.msra.mxu0 %v3018
      %3039 = vmatprep.subr.bf16.mxu0 0
      %3040 = vmatpush1.bf16.msra.mxu0 %v3017
      %3041 = vmatprep.subr.bf16.mxu0 0
      %3042 = vmatpush1.bf16.msra.mxu0 %v3016
      %3043 = vmatprep.subr.bf16.mxu0 0
      %3044 = vmatpush2.bf16.msra.mxu0 0
      %3045 = vmatprep.subr.bf16.mxu0 0
      %3046 = vmatpush2.bf16.msra.mxu0 0
      %3047 = vmatprep.subr.bf16.mxu0 0
      %3048 = vmatpush2.bf16.msra.mxu0 0
      %3049 = vmatprep.subr.bf16.mxu0 0
      %3050 = vmatpush2.bf16.msra.mxu0 0
      %3051 = vmatprep.subr.bf16.mxu0 0
      %3052 = vmatpush2.bf16.msra.mxu0 0
      %3053 = vmatprep.subr.bf16.mxu0 0
      %3054 = vmatpush2.bf16.msra.mxu0 0
      %3055 = vmatprep.subr.bf16.mxu0 0
      %3056 = vmatpush2.bf16.msra.mxu0 0
      %3057 = vmatprep.subr.bf16.mxu0 0
      %3058 = vmatpush2.bf16.msra.mxu0 0
      %3059 = vmatprep.mubr.bf16.mxu0 0
      %3060 = vmatmul.mubr.bf16.gmra.mxu0 %v3025
      %v3061 = vpop.f32.mrf.mxu0
      %v3062 = vadd.f32 0.0, %v3061
      %v3063 = vpop.f32.mrf.mxu0
      %v3064 = vpop.f32.mrf.mxu0
      %v3065 = vpop.f32.mrf.mxu0
      %3066 = vdwg.mxu0
      %v3067 = vadd.f32 %v2944, %v3062
      %s3068 = scalar_lea.vmem %s6, 20
      %v3069 = vld [vmem:[%s3068] sm:$0xf]
      %v3071 = vsel %vm2457, %v3069, 0
      %3073 = vmatprep.subr.bf16.mxu0 0
      %3074 = vmatpush1.bf16.msra.mxu0 0
      %3075 = vmatprep.subr.bf16.mxu0 0
      %3076 = vmatpush1.bf16.msra.mxu0 0
      %3077 = vmatprep.subr.bf16.mxu0 0
      %3078 = vmatpush1.bf16.msra.mxu0 0
      %3079 = vmatprep.subr.bf16.mxu0 0
      %3080 = vmatpush1.bf16.msra.mxu0 0
      %3081 = vmatprep.subr.bf16.mxu0 0
      %3082 = vmatpush1.bf16.msra.mxu0 0
      %3083 = vmatprep.subr.bf16.mxu0 0
      %3084 = vmatpush1.bf16.msra.mxu0 0
      %3085 = vmatprep.subr.bf16.mxu0 0
      %3086 = vmatpush1.bf16.msra.mxu0 0
      %3087 = vmatprep.subr.bf16.mxu0 0
      %3088 = vmatpush1.bf16.msra.mxu0 %v2455
      %3089 = vmatprep.subr.bf16.mxu0 0
      %3090 = vmatpush2.bf16.msra.mxu0 0
      %3091 = vmatprep.subr.bf16.mxu0 0
      %3092 = vmatpush2.bf16.msra.mxu0 0
      %3093 = vmatprep.subr.bf16.mxu0 0
      %3094 = vmatpush2.bf16.msra.mxu0 0
      %3095 = vmatprep.subr.bf16.mxu0 0
      %3096 = vmatpush2.bf16.msra.mxu0 0
      %3097 = vmatprep.subr.bf16.mxu0 0
      %3098 = vmatpush2.bf16.msra.mxu0 0
      %3099 = vmatprep.subr.bf16.mxu0 0
      %3100 = vmatpush2.bf16.msra.mxu0 0
      %3101 = vmatprep.subr.bf16.mxu0 0
      %3102 = vmatpush2.bf16.msra.mxu0 0
      %3103 = vmatprep.subr.bf16.mxu0 0
      %3104 = vmatpush2.bf16.msra.mxu0 0
      %3105 = vmatprep.mubr.bf16.mxu0 0
      %3106 = vmatmul.mubr.bf16.gmra.mxu0 %v3071
      %v3107 = vpop.f32.mrf.mxu0
      %v3108 = vadd.f32 0.0, %v3107
      %v3109 = vpop.f32.mrf.mxu0
      %v3110 = vpop.f32.mrf.mxu0
      %v3111 = vpop.f32.mrf.mxu0
      %3112 = vdwg.mxu0
      %v3113 = vpack.c.bf16 %v3108, %v3108
      %s3114 = scalar_lea.vmem %s7, 160
      %v3115 = vld [vmem:[%s3114] sm:$0xf]
      %v3116 = vld [vmem:[%s3114 + $0x4] sm:$0xf]
      %v3117 = vld [vmem:[%s3114 + $0x8] sm:$0xf]
      %v3118 = vld [vmem:[%s3114 + $0xc] sm:$0xf]
      %v3119 = vld [vmem:[%s3114 + $0x10] sm:$0xf]
      %v3120 = vld [vmem:[%s3114 + $0x14] sm:$0xf]
      %v3121 = vld [vmem:[%s3114 + $0x18] sm:$0xf]
      %v3122 = vld [vmem:[%s3114 + $0x1c] sm:$0xf]
      %v3131 = vunpack.c.l.b16 %v3115
      %v3132 = vunpack.c.l.b16 %v3116
      %v3133 = vunpack.c.l.b16 %v3117
      %v3134 = vunpack.c.l.b16 %v3118
      %v3135 = vunpack.c.l.b16 %v3119
      %v3136 = vunpack.c.l.b16 %v3120
      %v3137 = vunpack.c.l.b16 %v3121
      %v3138 = vunpack.c.l.b16 %v3122
      %v3139 = vpack.c.b16 %v3132, %v3131
      %v3140 = vpack.c.b16 %v3134, %v3133
      %v3141 = vpack.c.b16 %v3136, %v3135
      %v3142 = vpack.c.b16 %v3138, %v3137
      %v3148 = vsel %vm599, %v3113, 0
      %3150 = vmatprep.subr.bf16.mxu0 0
      %3151 = vmatpush1.bf16.msra.mxu0 0
      %3152 = vmatprep.subr.bf16.mxu0 0
      %3153 = vmatpush1.bf16.msra.mxu0 0
      %3154 = vmatprep.subr.bf16.mxu0 0
      %3155 = vmatpush1.bf16.msra.mxu0 0
      %3156 = vmatprep.subr.bf16.mxu0 0
      %3157 = vmatpush1.bf16.msra.mxu0 0
      %3158 = vmatprep.subr.bf16.mxu0 0
      %3159 = vmatpush1.bf16.msra.mxu0 %v3142
      %3160 = vmatprep.subr.bf16.mxu0 0
      %3161 = vmatpush1.bf16.msra.mxu0 %v3141
      %3162 = vmatprep.subr.bf16.mxu0 0
      %3163 = vmatpush1.bf16.msra.mxu0 %v3140
      %3164 = vmatprep.subr.bf16.mxu0 0
      %3165 = vmatpush1.bf16.msra.mxu0 %v3139
      %3166 = vmatprep.subr.bf16.mxu0 0
      %3167 = vmatpush2.bf16.msra.mxu0 0
      %3168 = vmatprep.subr.bf16.mxu0 0
      %3169 = vmatpush2.bf16.msra.mxu0 0
      %3170 = vmatprep.subr.bf16.mxu0 0
      %3171 = vmatpush2.bf16.msra.mxu0 0
      %3172 = vmatprep.subr.bf16.mxu0 0
      %3173 = vmatpush2.bf16.msra.mxu0 0
      %3174 = vmatprep.subr.bf16.mxu0 0
      %3175 = vmatpush2.bf16.msra.mxu0 0
      %3176 = vmatprep.subr.bf16.mxu0 0
      %3177 = vmatpush2.bf16.msra.mxu0 0
      %3178 = vmatprep.subr.bf16.mxu0 0
      %3179 = vmatpush2.bf16.msra.mxu0 0
      %3180 = vmatprep.subr.bf16.mxu0 0
      %3181 = vmatpush2.bf16.msra.mxu0 0
      %3182 = vmatprep.mubr.bf16.mxu0 0
      %3183 = vmatmul.mubr.bf16.gmra.mxu0 %v3148
      %v3184 = vpop.f32.mrf.mxu0
      %v3185 = vadd.f32 0.0, %v3184
      %v3186 = vpop.f32.mrf.mxu0
      %v3187 = vpop.f32.mrf.mxu0
      %v3188 = vpop.f32.mrf.mxu0
      %3189 = vdwg.mxu0
      %v3190 = vadd.f32 %v3067, %v3185
      %s3191 = scalar_lea.vmem %s6, 24
      %v3192 = vld [vmem:[%s3191] sm:$0xf]
      %v3194 = vsel %vm2457, %v3192, 0
      %3196 = vmatprep.subr.bf16.mxu0 0
      %3197 = vmatpush1.bf16.msra.mxu0 0
      %3198 = vmatprep.subr.bf16.mxu0 0
      %3199 = vmatpush1.bf16.msra.mxu0 0
      %3200 = vmatprep.subr.bf16.mxu0 0
      %3201 = vmatpush1.bf16.msra.mxu0 0
      %3202 = vmatprep.subr.bf16.mxu0 0
      %3203 = vmatpush1.bf16.msra.mxu0 0
      %3204 = vmatprep.subr.bf16.mxu0 0
      %3205 = vmatpush1.bf16.msra.mxu0 0
      %3206 = vmatprep.subr.bf16.mxu0 0
      %3207 = vmatpush1.bf16.msra.mxu0 0
      %3208 = vmatprep.subr.bf16.mxu0 0
      %3209 = vmatpush1.bf16.msra.mxu0 0
      %3210 = vmatprep.subr.bf16.mxu0 0
      %3211 = vmatpush1.bf16.msra.mxu0 %v2455
      %3212 = vmatprep.subr.bf16.mxu0 0
      %3213 = vmatpush2.bf16.msra.mxu0 0
      %3214 = vmatprep.subr.bf16.mxu0 0
      %3215 = vmatpush2.bf16.msra.mxu0 0
      %3216 = vmatprep.subr.bf16.mxu0 0
      %3217 = vmatpush2.bf16.msra.mxu0 0
      %3218 = vmatprep.subr.bf16.mxu0 0
      %3219 = vmatpush2.bf16.msra.mxu0 0
      %3220 = vmatprep.subr.bf16.mxu0 0
      %3221 = vmatpush2.bf16.msra.mxu0 0
      %3222 = vmatprep.subr.bf16.mxu0 0
      %3223 = vmatpush2.bf16.msra.mxu0 0
      %3224 = vmatprep.subr.bf16.mxu0 0
      %3225 = vmatpush2.bf16.msra.mxu0 0
      %3226 = vmatprep.subr.bf16.mxu0 0
      %3227 = vmatpush2.bf16.msra.mxu0 0
      %3228 = vmatprep.mubr.bf16.mxu0 0
      %3229 = vmatmul.mubr.bf16.gmra.mxu0 %v3194
      %v3230 = vpop.f32.mrf.mxu0
      %v3231 = vadd.f32 0.0, %v3230
      %v3232 = vpop.f32.mrf.mxu0
      %v3233 = vpop.f32.mrf.mxu0
      %v3234 = vpop.f32.mrf.mxu0
      %3235 = vdwg.mxu0
      %v3236 = vpack.c.bf16 %v3231, %v3231
      %s3237 = scalar_lea.vmem %s7, 192
      %v3238 = vld [vmem:[%s3237] sm:$0xf]
      %v3239 = vld [vmem:[%s3237 + $0x4] sm:$0xf]
      %v3240 = vld [vmem:[%s3237 + $0x8] sm:$0xf]
      %v3241 = vld [vmem:[%s3237 + $0xc] sm:$0xf]
      %v3242 = vld [vmem:[%s3237 + $0x10] sm:$0xf]
      %v3243 = vld [vmem:[%s3237 + $0x14] sm:$0xf]
      %v3244 = vld [vmem:[%s3237 + $0x18] sm:$0xf]
      %v3245 = vld [vmem:[%s3237 + $0x1c] sm:$0xf]
      %v3254 = vunpack.c.l.b16 %v3238
      %v3255 = vunpack.c.l.b16 %v3239
      %v3256 = vunpack.c.l.b16 %v3240
      %v3257 = vunpack.c.l.b16 %v3241
      %v3258 = vunpack.c.l.b16 %v3242
      %v3259 = vunpack.c.l.b16 %v3243
      %v3260 = vunpack.c.l.b16 %v3244
      %v3261 = vunpack.c.l.b16 %v3245
      %v3262 = vpack.c.b16 %v3255, %v3254
      %v3263 = vpack.c.b16 %v3257, %v3256
      %v3264 = vpack.c.b16 %v3259, %v3258
      %v3265 = vpack.c.b16 %v3261, %v3260
      %v3271 = vsel %vm599, %v3236, 0
      %3273 = vmatprep.subr.bf16.mxu0 0
      %3274 = vmatpush1.bf16.msra.mxu0 0
      %3275 = vmatprep.subr.bf16.mxu0 0
      %3276 = vmatpush1.bf16.msra.mxu0 0
      %3277 = vmatprep.subr.bf16.mxu0 0
      %3278 = vmatpush1.bf16.msra.mxu0 0
      %3279 = vmatprep.subr.bf16.mxu0 0
      %3280 = vmatpush1.bf16.msra.mxu0 0
      %3281 = vmatprep.subr.bf16.mxu0 0
      %3282 = vmatpush1.bf16.msra.mxu0 %v3265
      %3283 = vmatprep.subr.bf16.mxu0 0
      %3284 = vmatpush1.bf16.msra.mxu0 %v3264
      %3285 = vmatprep.subr.bf16.mxu0 0
      %3286 = vmatpush1.bf16.msra.mxu0 %v3263
      %3287 = vmatprep.subr.bf16.mxu0 0
      %3288 = vmatpush1.bf16.msra.mxu0 %v3262
      %3289 = vmatprep.subr.bf16.mxu0 0
      %3290 = vmatpush2.bf16.msra.mxu0 0
      %3291 = vmatprep.subr.bf16.mxu0 0
      %3292 = vmatpush2.bf16.msra.mxu0 0
      %3293 = vmatprep.subr.bf16.mxu0 0
      %3294 = vmatpush2.bf16.msra.mxu0 0
      %3295 = vmatprep.subr.bf16.mxu0 0
      %3296 = vmatpush2.bf16.msra.mxu0 0
      %3297 = vmatprep.subr.bf16.mxu0 0
      %3298 = vmatpush2.bf16.msra.mxu0 0
      %3299 = vmatprep.subr.bf16.mxu0 0
      %3300 = vmatpush2.bf16.msra.mxu0 0
      %3301 = vmatprep.subr.bf16.mxu0 0
      %3302 = vmatpush2.bf16.msra.mxu0 0
      %3303 = vmatprep.subr.bf16.mxu0 0
      %3304 = vmatpush2.bf16.msra.mxu0 0
      %3305 = vmatprep.mubr.bf16.mxu0 0
      %3306 = vmatmul.mubr.bf16.gmra.mxu0 %v3271
      %v3307 = vpop.f32.mrf.mxu0
      %v3308 = vadd.f32 0.0, %v3307
      %v3309 = vpop.f32.mrf.mxu0
      %v3310 = vpop.f32.mrf.mxu0
      %v3311 = vpop.f32.mrf.mxu0
      %3312 = vdwg.mxu0
      %v3313 = vadd.f32 %v3190, %v3308
      %s3314 = scalar_lea.vmem %s6, 28
      %v3315 = vld [vmem:[%s3314] sm:$0xf]
      %v3317 = vsel %vm2457, %v3315, 0
      %3319 = vmatprep.subr.bf16.mxu0 0
      %3320 = vmatpush1.bf16.msra.mxu0 0
      %3321 = vmatprep.subr.bf16.mxu0 0
      %3322 = vmatpush1.bf16.msra.mxu0 0
      %3323 = vmatprep.subr.bf16.mxu0 0
      %3324 = vmatpush1.bf16.msra.mxu0 0
      %3325 = vmatprep.subr.bf16.mxu0 0
      %3326 = vmatpush1.bf16.msra.mxu0 0
      %3327 = vmatprep.subr.bf16.mxu0 0
      %3328 = vmatpush1.bf16.msra.mxu0 0
      %3329 = vmatprep.subr.bf16.mxu0 0
      %3330 = vmatpush1.bf16.msra.mxu0 0
      %3331 = vmatprep.subr.bf16.mxu0 0
      %3332 = vmatpush1.bf16.msra.mxu0 0
      %3333 = vmatprep.subr.bf16.mxu0 0
      %3334 = vmatpush1.bf16.msra.mxu0 %v2455
      %3335 = vmatprep.subr.bf16.mxu0 0
      %3336 = vmatpush2.bf16.msra.mxu0 0
      %3337 = vmatprep.subr.bf16.mxu0 0
      %3338 = vmatpush2.bf16.msra.mxu0 0
      %3339 = vmatprep.subr.bf16.mxu0 0
      %3340 = vmatpush2.bf16.msra.mxu0 0
      %3341 = vmatprep.subr.bf16.mxu0 0
      %3342 = vmatpush2.bf16.msra.mxu0 0
      %3343 = vmatprep.subr.bf16.mxu0 0
      %3344 = vmatpush2.bf16.msra.mxu0 0
      %3345 = vmatprep.subr.bf16.mxu0 0
      %3346 = vmatpush2.bf16.msra.mxu0 0
      %3347 = vmatprep.subr.bf16.mxu0 0
      %3348 = vmatpush2.bf16.msra.mxu0 0
      %3349 = vmatprep.subr.bf16.mxu0 0
      %3350 = vmatpush2.bf16.msra.mxu0 0
      %3351 = vmatprep.mubr.bf16.mxu0 0
      %3352 = vmatmul.mubr.bf16.gmra.mxu0 %v3317
      %v3353 = vpop.f32.mrf.mxu0
      %v3354 = vadd.f32 0.0, %v3353
      %v3355 = vpop.f32.mrf.mxu0
      %v3356 = vpop.f32.mrf.mxu0
      %v3357 = vpop.f32.mrf.mxu0
      %3358 = vdwg.mxu0
      %v3359 = vpack.c.bf16 %v3354, %v3354
      %s3360 = scalar_lea.vmem %s7, 224
      %v3361 = vld [vmem:[%s3360] sm:$0xf]
      %v3362 = vld [vmem:[%s3360 + $0x4] sm:$0xf]
      %v3363 = vld [vmem:[%s3360 + $0x8] sm:$0xf]
      %v3364 = vld [vmem:[%s3360 + $0xc] sm:$0xf]
      %v3365 = vld [vmem:[%s3360 + $0x10] sm:$0xf]
      %v3366 = vld [vmem:[%s3360 + $0x14] sm:$0xf]
      %v3367 = vld [vmem:[%s3360 + $0x18] sm:$0xf]
      %v3368 = vld [vmem:[%s3360 + $0x1c] sm:$0xf]
      %v3377 = vunpack.c.l.b16 %v3361
      %v3378 = vunpack.c.l.b16 %v3362
      %v3379 = vunpack.c.l.b16 %v3363
      %v3380 = vunpack.c.l.b16 %v3364
      %v3381 = vunpack.c.l.b16 %v3365
      %v3382 = vunpack.c.l.b16 %v3366
      %v3383 = vunpack.c.l.b16 %v3367
      %v3384 = vunpack.c.l.b16 %v3368
      %v3385 = vpack.c.b16 %v3378, %v3377
      %v3386 = vpack.c.b16 %v3380, %v3379
      %v3387 = vpack.c.b16 %v3382, %v3381
      %v3388 = vpack.c.b16 %v3384, %v3383
      %v3394 = vsel %vm599, %v3359, 0
      %3396 = vmatprep.subr.bf16.mxu0 0
      %3397 = vmatpush1.bf16.msra.mxu0 0
      %3398 = vmatprep.subr.bf16.mxu0 0
      %3399 = vmatpush1.bf16.msra.mxu0 0
      %3400 = vmatprep.subr.bf16.mxu0 0
      %3401 = vmatpush1.bf16.msra.mxu0 0
      %3402 = vmatprep.subr.bf16.mxu0 0
      %3403 = vmatpush1.bf16.msra.mxu0 0
      %3404 = vmatprep.subr.bf16.mxu0 0
      %3405 = vmatpush1.bf16.msra.mxu0 %v3388
      %3406 = vmatprep.subr.bf16.mxu0 0
      %3407 = vmatpush1.bf16.msra.mxu0 %v3387
      %3408 = vmatprep.subr.bf16.mxu0 0
      %3409 = vmatpush1.bf16.msra.mxu0 %v3386
      %3410 = vmatprep.subr.bf16.mxu0 0
      %3411 = vmatpush1.bf16.msra.mxu0 %v3385
      %3412 = vmatprep.subr.bf16.mxu0 0
      %3413 = vmatpush2.bf16.msra.mxu0 0
      %3414 = vmatprep.subr.bf16.mxu0 0
      %3415 = vmatpush2.bf16.msra.mxu0 0
      %3416 = vmatprep.subr.bf16.mxu0 0
      %3417 = vmatpush2.bf16.msra.mxu0 0
      %3418 = vmatprep.subr.bf16.mxu0 0
      %3419 = vmatpush2.bf16.msra.mxu0 0
      %3420 = vmatprep.subr.bf16.mxu0 0
      %3421 = vmatpush2.bf16.msra.mxu0 0
      %3422 = vmatprep.subr.bf16.mxu0 0
      %3423 = vmatpush2.bf16.msra.mxu0 0
      %3424 = vmatprep.subr.bf16.mxu0 0
      %3425 = vmatpush2.bf16.msra.mxu0 0
      %3426 = vmatprep.subr.bf16.mxu0 0
      %3427 = vmatpush2.bf16.msra.mxu0 0
      %3428 = vmatprep.mubr.bf16.mxu0 0
      %3429 = vmatmul.mubr.bf16.gmra.mxu0 %v3394
      %v3430 = vpop.f32.mrf.mxu0
      %v3431 = vadd.f32 0.0, %v3430
      %v3432 = vpop.f32.mrf.mxu0
      %v3433 = vpop.f32.mrf.mxu0
      %v3434 = vpop.f32.mrf.mxu0
      %3435 = vdwg.mxu0
      %v3436 = vadd.f32 %v3313, %v3431
      %s3437 = scalar_lea.vmem %s6, 32
      %v3438 = vld [vmem:[%s3437] sm:$0xf]
      %v3440 = vsel %vm2457, %v3438, 0
      %3442 = vmatprep.subr.bf16.mxu0 0
      %3443 = vmatpush1.bf16.msra.mxu0 0
      %3444 = vmatprep.subr.bf16.mxu0 0
      %3445 = vmatpush1.bf16.msra.mxu0 0
      %3446 = vmatprep.subr.bf16.mxu0 0
      %3447 = vmatpush1.bf16.msra.mxu0 0
      %3448 = vmatprep.subr.bf16.mxu0 0
      %3449 = vmatpush1.bf16.msra.mxu0 0
      %3450 = vmatprep.subr.bf16.mxu0 0
      %3451 = vmatpush1.bf16.msra.mxu0 0
      %3452 = vmatprep.subr.bf16.mxu0 0
      %3453 = vmatpush1.bf16.msra.mxu0 0
      %3454 = vmatprep.subr.bf16.mxu0 0
      %3455 = vmatpush1.bf16.msra.mxu0 0
      %3456 = vmatprep.subr.bf16.mxu0 0
      %3457 = vmatpush1.bf16.msra.mxu0 %v2455
      %3458 = vmatprep.subr.bf16.mxu0 0
      %3459 = vmatpush2.bf16.msra.mxu0 0
      %3460 = vmatprep.subr.bf16.mxu0 0
      %3461 = vmatpush2.bf16.msra.mxu0 0
      %3462 = vmatprep.subr.bf16.mxu0 0
      %3463 = vmatpush2.bf16.msra.mxu0 0
      %3464 = vmatprep.subr.bf16.mxu0 0
      %3465 = vmatpush2.bf16.msra.mxu0 0
      %3466 = vmatprep.subr.bf16.mxu0 0
      %3467 = vmatpush2.bf16.msra.mxu0 0
      %3468 = vmatprep.subr.bf16.mxu0 0
      %3469 = vmatpush2.bf16.msra.mxu0 0
      %3470 = vmatprep.subr.bf16.mxu0 0
      %3471 = vmatpush2.bf16.msra.mxu0 0
      %3472 = vmatprep.subr.bf16.mxu0 0
      %3473 = vmatpush2.bf16.msra.mxu0 0
      %3474 = vmatprep.mubr.bf16.mxu0 0
      %3475 = vmatmul.mubr.bf16.gmra.mxu0 %v3440
      %v3476 = vpop.f32.mrf.mxu0
      %v3477 = vadd.f32 0.0, %v3476
      %v3478 = vpop.f32.mrf.mxu0
      %v3479 = vpop.f32.mrf.mxu0
      %v3480 = vpop.f32.mrf.mxu0
      %3481 = vdwg.mxu0
      %v3482 = vpack.c.bf16 %v3477, %v3477
      %s3483 = scalar_lea.vmem %s7, 256
      %v3484 = vld [vmem:[%s3483] sm:$0xf]
      %v3485 = vld [vmem:[%s3483 + $0x4] sm:$0xf]
      %v3486 = vld [vmem:[%s3483 + $0x8] sm:$0xf]
      %v3487 = vld [vmem:[%s3483 + $0xc] sm:$0xf]
      %v3488 = vld [vmem:[%s3483 + $0x10] sm:$0xf]
      %v3489 = vld [vmem:[%s3483 + $0x14] sm:$0xf]
      %v3490 = vld [vmem:[%s3483 + $0x18] sm:$0xf]
      %v3491 = vld [vmem:[%s3483 + $0x1c] sm:$0xf]
      %v3500 = vunpack.c.l.b16 %v3484
      %v3501 = vunpack.c.l.b16 %v3485
      %v3502 = vunpack.c.l.b16 %v3486
      %v3503 = vunpack.c.l.b16 %v3487
      %v3504 = vunpack.c.l.b16 %v3488
      %v3505 = vunpack.c.l.b16 %v3489
      %v3506 = vunpack.c.l.b16 %v3490
      %v3507 = vunpack.c.l.b16 %v3491
      %v3508 = vpack.c.b16 %v3501, %v3500
      %v3509 = vpack.c.b16 %v3503, %v3502
      %v3510 = vpack.c.b16 %v3505, %v3504
      %v3511 = vpack.c.b16 %v3507, %v3506
      %v3517 = vsel %vm599, %v3482, 0
      %3519 = vmatprep.subr.bf16.mxu0 0
      %3520 = vmatpush1.bf16.msra.mxu0 0
      %3521 = vmatprep.subr.bf16.mxu0 0
      %3522 = vmatpush1.bf16.msra.mxu0 0
      %3523 = vmatprep.subr.bf16.mxu0 0
      %3524 = vmatpush1.bf16.msra.mxu0 0
      %3525 = vmatprep.subr.bf16.mxu0 0
      %3526 = vmatpush1.bf16.msra.mxu0 0
      %3527 = vmatprep.subr.bf16.mxu0 0
      %3528 = vmatpush1.bf16.msra.mxu0 %v3511
      %3529 = vmatprep.subr.bf16.mxu0 0
      %3530 = vmatpush1.bf16.msra.mxu0 %v3510
      %3531 = vmatprep.subr.bf16.mxu0 0
      %3532 = vmatpush1.bf16.msra.mxu0 %v3509
      %3533 = vmatprep.subr.bf16.mxu0 0
      %3534 = vmatpush1.bf16.msra.mxu0 %v3508
      %3535 = vmatprep.subr.bf16.mxu0 0
      %3536 = vmatpush2.bf16.msra.mxu0 0
      %3537 = vmatprep.subr.bf16.mxu0 0
      %3538 = vmatpush2.bf16.msra.mxu0 0
      %3539 = vmatprep.subr.bf16.mxu0 0
      %3540 = vmatpush2.bf16.msra.mxu0 0
      %3541 = vmatprep.subr.bf16.mxu0 0
      %3542 = vmatpush2.bf16.msra.mxu0 0
      %3543 = vmatprep.subr.bf16.mxu0 0
      %3544 = vmatpush2.bf16.msra.mxu0 0
      %3545 = vmatprep.subr.bf16.mxu0 0
      %3546 = vmatpush2.bf16.msra.mxu0 0
      %3547 = vmatprep.subr.bf16.mxu0 0
      %3548 = vmatpush2.bf16.msra.mxu0 0
      %3549 = vmatprep.subr.bf16.mxu0 0
      %3550 = vmatpush2.bf16.msra.mxu0 0
      %3551 = vmatprep.mubr.bf16.mxu0 0
      %3552 = vmatmul.mubr.bf16.gmra.mxu0 %v3517
      %v3553 = vpop.f32.mrf.mxu0
      %v3554 = vadd.f32 0.0, %v3553
      %v3555 = vpop.f32.mrf.mxu0
      %v3556 = vpop.f32.mrf.mxu0
      %v3557 = vpop.f32.mrf.mxu0
      %3558 = vdwg.mxu0
      %v3559 = vadd.f32 %v3436, %v3554
      %v3560 = vld [vmem:[%s8] sm:$0x1]
      %v3562 = vlaneseq
      %v3563 = vshrl.u32 %v3562, 7
      %v3564 = vsub.s32 0, %v3563
      %v3565 = vrot.slane %v3560, %v3564
      %v3567 = vadd.f32 %v3559, %v3565
      %v3568 = vmax.f32 %v3567, 0.0
      %3569 = vst.msk [vmem:[%s330] sm:$0xff] %vm599, %v3568
      %p3570 = scmp.lt.s32.totalorder %s20, 1
      %s3571 = scalar_select %p3570, %s20, 1
      %s3572 = smul.addr %s3571, 8
      %s3573 = scalar_lea.vmem %s9, %s3572
      // Predicated region
      $region57: #{_lambda_.1} parent=55 // pred_check
        %p3574 = pneg %p232
      $region58: #{_lambda_.1} parent=55 // pred_check_branch
        %3576 = sbr.rel (%p3574) target = $region60
      $region59: #{_lambda_.1} parent=55 // pred_region
        _
      $region60: #{_lambda_.1} parent=55 // pred_fallthru
        _
    $region56: #{_lambda_.1} parent=5 // pred_fallthru
      _
    %p3577 = scmp.le.s32.totalorder 2, %s15
    // Predicated region
    $region61: #{_lambda_.1} parent=5 // pred_check
      %p3578 = pneg %p3577
    $region62: #{_lambda_.1} parent=5 // pred_check_branch
      %3580 = sbr.rel (%p3578) target = $region64
    $region63: #{_lambda_.1} parent=5 // pred_region
      %s3581 = ssub.s32 %s15, 2
      // Predicated region
      $region65: #{_lambda_.1} parent=63 // pred_check
        %p3582 = pneg %p238
      $region66: #{_lambda_.1} parent=63 // pred_check_branch
        %3584 = sbr.rel (%p3582) target = $region68
      $region67: #{_lambda_.1} parent=63 // pred_region
        %p3585 = scmp.lt.s32.totalorder %s21, 1
        %s3586 = scalar_select %p3585, %s21, 1
        %s3587 = smul.addr %s3586, 8
        %s3588 = scalar_lea.vmem %s9, %s3587
      $region68: #{_lambda_.1} parent=63 // pred_fallthru
        _
    $region64: #{_lambda_.1} parent=5 // pred_fallthru
      _
  $region6: #{_lambda_.1} parent=0 // loop_footer
    %s19 = sadd.s32 1, %s15
  $region7: #{_lambda_.1} parent=0 // loop_footer_branch
    %14 = sbr.rel target = $region3
  $region8: #{_lambda_.1} parent=0 // loop_exit
    _

</llo_original>
